<compile_context>
chip_gen: v7x
topology: tpu7x:2x2x1
jax: 0.10.0
libtpu: 0.0.40
codegen_flags: <defaults>
</compile_context>

<pallas_src>
import functools

import jax
import jax.numpy as jnp
from jax import lax
from jax.experimental import pallas as pl
from jax.experimental.pallas import tpu as pltpu


def ngcf_partition_kernel(r_ref, ego_src_ref, ego_row_ref, wcat_ref, bcat_ref,
                          *out_and_scratch, tk, transpose_lhs, store_ego):
    """One NGCF layer for one bipartite partition (user rows or item rows).

    r_ref       : (tm, tk) [or (tk, tm) if transpose_lhs] bf16 tile of R
    ego_src_ref : (n_src, d_in) bf16   other-side embeddings, VMEM-resident
    ego_row_ref : (tm, d_in)   f32     this partition's ego rows (bi product)
    wcat_ref    : (2*d_in, d_out) f32  [W_gc; W_bi]
    bcat_ref    : (1, d_out)   f32     (b_gc + b_bi)
    outputs     : ego_out (tm, d_out) [only if store_ego], norm_out (tm, d_out)
    side_acc    : (tm, d_in)   f32     VMEM accumulator for side = A @ ego
    """
    if store_ego:
        ego_out_ref, norm_out_ref, side_acc = out_and_scratch
    else:
        norm_out_ref, side_acc = out_and_scratch
        ego_out_ref = None

    k = pl.program_id(1)

    @pl.when(k == 0)
    def _():
        side_acc[...] = jnp.zeros_like(side_acc)

    # Slice the VMEM-resident ego source for this K block (no per-step HBM DMA).
    start = pl.multiple_of(k * tk, 128)
    ego_k = ego_src_ref[pl.ds(start, tk), :]                 # (tk, d_in) bf16

    if transpose_lhs:
        # r_ref is the (tk, tm) block R[k_blk, i_blk]; contracting dim 0 of
        # both operands computes R^T @ ego for this tile without ever
        # materializing R^T in HBM.
        part = lax.dot_general(r_ref[...], ego_k,
                               dimension_numbers=(((0,), (0,)), ((), ())),
                               preferred_element_type=jnp.float32)
    else:
        part = jnp.dot(r_ref[...], ego_k, preferred_element_type=jnp.float32)
    side_acc[...] += part

    @pl.when(k == pl.num_programs(1) - 1)
    def _():
        side = side_acc[...]                                  # (tm, d_in) f32
        ego_row = ego_row_ref[...]                            # (tm, d_in) f32

        # Fused: side @ W_gc + (ego*side) @ W_bi == [side, ego*side] @ [Wgc;Wbi]
        lhs = jnp.concatenate([side, ego_row * side], axis=1)  # (tm, 2*d_in)
        x = jnp.dot(lhs, wcat_ref[...],
                    preferred_element_type=jnp.float32) + bcat_ref[...]

        # LeakyReLU(negative_slope=0.2)
        x = jnp.where(x >= 0, x, 0.2 * x)

        # mess_dropout modeled as identity (rate 0.0)
        # F.normalize(p=2, dim=1): x / max(||x||_2, 1e-12), via EUP rsqrt.
        sq = jnp.sum(x * x, axis=1, keepdims=True)
        x_norm = x * lax.rsqrt(jnp.maximum(sq, 1e-24))

        if store_ego:
            ego_out_ref[...] = x
        norm_out_ref[...] = x_norm


def _ngcf_partition(r_bf16, ego_src_bf16, ego_rows_f32, w_cat, b_cat, *,
                    tm, tk, transpose_lhs, store_ego):
    """Run one partition's propagation.  Returns (ego_out, norm) or norm."""
    n_rows, d_in = ego_rows_f32.shape
    n_src = ego_src_bf16.shape[0]
    d_out = w_cat.shape[1]

    assert tm % 128 == 0 and tk % 128 == 0, "tm/tk must be 128-multiples (bf16 tiling)"
    # TODO(synk): real graphs need padding of R / embeddings to tile multiples.
    assert n_rows % tm == 0 and n_src % tk == 0, "graph dims must divide tiles"

    if transpose_lhs:
        assert r_bf16.shape == (n_src, n_rows)
        r_spec = pl.BlockSpec((tk, tm), lambda i, k: (k, i))   # transposed blocks of R
    else:
        assert r_bf16.shape == (n_rows, n_src)
        r_spec = pl.BlockSpec((tm, tk), lambda i, k: (i, k))

    out_blk = pl.BlockSpec((tm, d_out), lambda i, k: (i, 0))
    out_sds = jax.ShapeDtypeStruct((n_rows, d_out), jnp.float32)
    if store_ego:
        out_shape = (out_sds, out_sds)
        out_specs = (out_blk, out_blk)
    else:
        out_shape = out_sds
        out_specs = out_blk

    # VMEM budget derived from the real footprint (v7x has only 64 MiB physical).
    lane = lambda d: max(d, 128)
    need = (2 * tm * tk * 2                                   # double-buffered bf16 R tiles
            + 2 * n_src * lane(d_in) * 2                      # resident bf16 ego source
            + 2 * tm * lane(d_in) * 4                         # ego row tile
            + 2 * (2 * d_in * lane(d_out) + lane(d_out)) * 4  # weights + bias
            + 2 * 2 * tm * lane(d_out) * 4                    # outputs
            + tm * lane(d_in) * 4)                            # side accumulator
    vmem_limit = int(min(3 * need + (8 << 20), 64 << 20))

    kernel = functools.partial(ngcf_partition_kernel, tk=tk,
                               transpose_lhs=transpose_lhs, store_ego=store_ego)

    return pl.pallas_call(
        kernel,
        out_shape=out_shape,
        grid_spec=pltpu.PrefetchScalarGridSpec(
            num_scalar_prefetch=0,
            grid=(n_rows // tm, n_src // tk),                 # reduction axis last
            in_specs=[
                r_spec,                                                 # R tile
                pl.BlockSpec((n_src, d_in), lambda i, k: (0, 0)),       # resident ego src
                pl.BlockSpec((tm, d_in), lambda i, k: (i, 0)),          # ego row tile
                pl.BlockSpec((2 * d_in, d_out), lambda i, k: (0, 0)),   # [Wgc;Wbi]
                pl.BlockSpec((1, d_out), lambda i, k: (0, 0)),          # b_gc+b_bi
            ],
            out_specs=out_specs,
            scratch_shapes=[pltpu.VMEM((tm, d_in), jnp.float32)],
        ),
        compiler_params=pltpu.CompilerParams(
            dimension_semantics=("parallel", "arbitrary"),    # row axis parallel (megacore)
            vmem_limit_bytes=vmem_limit),
    )(r_bf16, ego_src_bf16, ego_rows_f32, w_cat, b_cat)


def ngcf_layer(r_bf16, user_ego, item_ego, w_cat, b_cat, *, tm, tk, last):
    """One NGCF propagation layer over the bipartite graph (both partitions)."""
    item_src = item_ego.astype(jnp.bfloat16)
    user_src = user_ego.astype(jnp.bfloat16)

    # user rows: side_u = R @ item_ego
    u_out = _ngcf_partition(r_bf16, item_src, user_ego, w_cat, b_cat,
                            tm=tm, tk=tk, transpose_lhs=False, store_ego=not last)
    # item rows: side_i = R^T @ user_ego  (transposed-block reads of the same R)
    i_out = _ngcf_partition(r_bf16, user_src, item_ego, w_cat, b_cat,
                            tm=tm, tk=tk, transpose_lhs=True, store_ego=not last)

    if last:
        return None, u_out, None, i_out
    u_ego, u_norm = u_out
    i_ego, i_norm = i_out
    return u_ego, u_norm, i_ego, i_norm


def xavier_uniform(key, shape):
    fan_in, fan_out = shape[0], shape[1]
    bound = jnp.sqrt(6.0 / (fan_in + fan_out))
    return jax.random.uniform(key, shape, jnp.float32, -bound, bound)


def build_norm_r(key, n_user, n_item):
    """Symmetric-normalized user-item interaction block R of the bipartite A."""
    r = (jax.random.uniform(key, (n_user, n_item)) < 0.1).astype(jnp.float32)
    du = jnp.sum(r, axis=1)                        # user degrees
    di = jnp.sum(r, axis=0)                        # item degrees
    du_is = jnp.where(du > 0, 1.0 / jnp.sqrt(jnp.maximum(du, 1e-12)), 0.0)
    di_is = jnp.where(di > 0, 1.0 / jnp.sqrt(jnp.maximum(di, 1e-12)), 0.0)
    return r * du_is[:, None] * di_is[None, :]


@functools.partial(jax.jit, static_argnames=("tm", "tk"))
def ngcf_forward(users, pos_items, neg_items, r_norm, user_emb, item_emb,
                 weights, *, tm, tk):
    # TODO(synk): stochastic sparse_dropout / Dropout not reproduced (rate 0).
    # TODO(synk): int8 (v5e/v6e) / fp8 (v7x) quantization of R would halve the
    #             dominant HBM stream again; kept bf16 here for portability.
    r_bf16 = r_norm.astype(jnp.bfloat16)           # cast once for all layers
    u_ego, i_ego = user_emb, item_emb
    u_all, i_all = [u_ego], [i_ego]
    n_layers = len(weights)
    for li, (w_gc, b_gc, w_bi, b_bi) in enumerate(weights):
        w_cat = jnp.concatenate([w_gc, w_bi], axis=0)   # (2*Din, Dout)
        b_cat = b_gc + b_bi
        last = li == n_layers - 1
        u_ego_n, u_norm, i_ego_n, i_norm = ngcf_layer(
            r_bf16, u_ego, i_ego, w_cat, b_cat, tm=tm, tk=tk, last=last)
        u_all.append(u_norm)
        i_all.append(i_norm)
        if not last:
            u_ego, i_ego = u_ego_n, i_ego_n
    u_g = jnp.concatenate(u_all, axis=1)
    i_g = jnp.concatenate(i_all, axis=1)
    return u_g[users, :], i_g[pos_items, :], i_g[neg_items, :]


def ngcf_forward_ref(users, pos_items, neg_items, r_norm, user_emb, item_emb,
                     weights):
    """Pure-JAX reference with the same bf16 casts as the kernel path."""
    r = r_norm.astype(jnp.bfloat16).astype(jnp.float32)
    u, it = user_emb, item_emb
    u_all, i_all = [u], [it]
    for (w_gc, b_gc, w_bi, b_bi) in weights:
        u_src = u.astype(jnp.bfloat16).astype(jnp.float32)
        i_src = it.astype(jnp.bfloat16).astype(jnp.float32)
        side_u = r @ i_src
        side_i = r.T @ u_src

        def post(side, ego):
            x = side @ w_gc + b_gc + (ego * side) @ w_bi + b_bi
            x = jnp.where(x >= 0, x, 0.2 * x)
            nrm = x / jnp.maximum(
                jnp.sqrt(jnp.sum(x * x, axis=1, keepdims=True)), 1e-12)
            return x, nrm

        u, un = post(side_u, u)
        it, inn = post(side_i, it)
        u_all.append(un)
        i_all.append(inn)
    u_g = jnp.concatenate(u_all, axis=1)
    i_g = jnp.concatenate(i_all, axis=1)
    return u_g[users], i_g[pos_items], i_g[neg_items]


if __name__ == "__main__":
    n_user, n_item = 256, 384
    emb_size = 32
    layer_sizes = [32, 32]            # two propagation layers
    batch = 8
    # Demo tiles; at production graph sizes use tm >= 512, tk >= 1024 within
    # the per-generation VMEM budget (v7x: 64 MiB physical).
    tm, tk = 128, 128

    key = jax.random.PRNGKey(0)
    keys = jax.random.split(key, 24)

    r_norm = build_norm_r(keys[0], n_user, n_item)
    user_emb = xavier_uniform(keys[1], (n_user, emb_size))
    item_emb = xavier_uniform(keys[2], (n_item, emb_size))

    dims = [emb_size] + layer_sizes
    weights = []
    kidx = 3
    for k in range(len(layer_sizes)):
        w_gc = xavier_uniform(keys[kidx + 0], (dims[k], dims[k + 1]))
        b_gc = xavier_uniform(keys[kidx + 1], (1, dims[k + 1]))
        w_bi = xavier_uniform(keys[kidx + 2], (dims[k], dims[k + 1]))
        b_bi = xavier_uniform(keys[kidx + 3], (1, dims[k + 1]))
        weights.append((w_gc, b_gc, w_bi, b_bi))
        kidx += 4

    users = jax.random.randint(keys[kidx + 0], (batch,), 0, n_user)
    pos_items = jax.random.randint(keys[kidx + 1], (batch,), 0, n_item)
    neg_items = jax.random.randint(keys[kidx + 2], (batch,), 0, n_item)

    u_g, pos_i_g, neg_i_g = ngcf_forward(
        users, pos_items, neg_items, r_norm, user_emb, item_emb,
        tuple(weights), tm=tm, tk=tk)
    jax.block_until_ready((u_g, pos_i_g, neg_i_g))

    # Correctness check against a pure-JAX reference (same bf16 casts).
    u_r, p_r, n_r = ngcf_forward_ref(
        users, pos_items, neg_items, r_norm, user_emb, item_emb, tuple(weights))
    max_err = max(float(jnp.max(jnp.abs(u_g - u_r))),
                  float(jnp.max(jnp.abs(pos_i_g - p_r))),
                  float(jnp.max(jnp.abs(neg_i_g - n_r))))

    d_total = emb_size + sum(layer_sizes)
    assert u_g.shape == (batch, d_total)
    assert pos_i_g.shape == (batch, d_total)
    assert neg_i_g.shape == (batch, d_total)
    assert bool(jnp.all(jnp.isfinite(u_g)))
    assert bool(jnp.all(jnp.isfinite(pos_i_g)))
    assert max_err < 3e-2, f"max_err={max_err}"
    print("KERNEL_OK")
</pallas_src>

<mosaic_0001>
module attributes {stable_mosaic.version = 11 : i64} {
  func.func @ngcf_partition_kernel(%arg0: i32, %arg1: i32, %arg2: memref<128x128xbf16, #tpu.memory_space<vmem>>, %arg3: memref<256x32xbf16, #tpu.memory_space<vmem>>, %arg4: memref<128x32xf32, #tpu.memory_space<vmem>>, %arg5: memref<64x32xf32, #tpu.memory_space<vmem>>, %arg6: memref<1x32xf32, #tpu.memory_space<vmem>>, %arg7: memref<128x32xf32, #tpu.memory_space<vmem>>, %arg8: memref<128x32xf32, #tpu.memory_space<vmem>>, %arg9: memref<128x32xf32, #tpu.memory_space<vmem>>) attributes {dimension_semantics = [#tpu.dimension_semantics<parallel>, #tpu.dimension_semantics<arbitrary>], iteration_bounds = array<i64: 3, 2>, scalar_prefetch = 0 : i64, scratch_operands = 1 : i64, tpu.core_type = #tpu.core_type<tc>, window_params = [{transform_indices = @transform_0, window_bounds = array<i64: 128, 128>}, {pipeline_mode = #tpu.pipeline_mode<synchronous>, transform_indices = @transform_1, window_bounds = array<i64: 256, 32>}, {transform_indices = @transform_2, window_bounds = array<i64: 128, 32>}, {pipeline_mode = #tpu.pipeline_mode<synchronous>, transform_indices = @transform_3, window_bounds = array<i64: 64, 32>}, {pipeline_mode = #tpu.pipeline_mode<synchronous>, transform_indices = @transform_4, window_bounds = array<i64: 1, 32>}, {transform_indices = @transform_5, window_bounds = array<i64: 128, 32>}, {transform_indices = @transform_6, window_bounds = array<i64: 128, 32>}]} {
    %c0_i32 = arith.constant 0 : i32
    %0 = arith.cmpi eq, %arg1, %c0_i32 : i32
    %1 = arith.extui %0 : i1 to i32
    %c0_i32_0 = arith.constant 0 : i32
    %2 = arith.cmpi ne, %1, %c0_i32_0 : i32
    scf.if %2 {
      %cst_8 = arith.constant 0.000000e+00 : f32
      %15 = vector.broadcast %cst_8 : f32 to vector<128x32xf32>
      %c0_9 = arith.constant 0 : index
      %c0_10 = arith.constant 0 : index
      %16 = vector.load %arg9[%c0_9, %c0_10] : memref<128x32xf32, #tpu.memory_space<vmem>>, vector<128x32xf32>
      tpu.vector_store %arg9[%c0_9, %c0_10], %15 {strides = array<i32>} : memref<128x32xf32, #tpu.memory_space<vmem>>, vector<128x32xf32>,
    } else {
    }
    %c128_i32 = arith.constant 128 : i32
    %3 = arith.muli %arg1, %c128_i32 : i32
    %4 = tpu.assume_multiple %3, 128 : i32
    %5 = arith.index_cast %4 : i32 to index
    %c0 = arith.constant 0 : index
    %6 = vector.load %arg3[%5, %c0] : memref<256x32xbf16, #tpu.memory_space<vmem>>, vector<128x32xbf16>
    %c0_1 = arith.constant 0 : index
    %c0_2 = arith.constant 0 : index
    %7 = vector.load %arg2[%c0_1, %c0_2] : memref<128x128xbf16, #tpu.memory_space<vmem>>, vector<128x128xbf16>
    %cst = arith.constant dense<0.000000e+00> : vector<128x32xf32>
    %8 = tpu.matmul %7, %6, %cst {dimension_numbers = #tpu.dot_dimension_numbers<[0], [0], [1], [1], [0, 1, 1, 1], [], []>} : vector<128x128xbf16>, vector<128x32xbf16>, vector<128x32xf32> -> vector<128x32xf32>
    %c0_3 = arith.constant 0 : index
    %c0_4 = arith.constant 0 : index
    %9 = vector.load %arg9[%c0_3, %c0_4] : memref<128x32xf32, #tpu.memory_space<vmem>>, vector<128x32xf32>
    %10 = arith.addf %9, %8 : vector<128x32xf32>
    %c0_5 = arith.constant 0 : index
    %c0_6 = arith.constant 0 : index
    %11 = vector.load %arg9[%c0_5, %c0_6] : memref<128x32xf32, #tpu.memory_space<vmem>>, vector<128x32xf32>
    tpu.vector_store %arg9[%c0_5, %c0_6], %10 {strides = array<i32>} : memref<128x32xf32, #tpu.memory_space<vmem>>, vector<128x32xf32>,
    %c1_i32 = arith.constant 1 : i32
    %12 = arith.cmpi eq, %arg1, %c1_i32 : i32
    %13 = arith.extui %12 : i1 to i32
    %c0_i32_7 = arith.constant 0 : i32
    %14 = arith.cmpi ne, %13, %c0_i32_7 : i32
    scf.if %14 {
      %c0_8 = arith.constant 0 : index
      %c0_9 = arith.constant 0 : index
      %15 = vector.load %arg9[%c0_8, %c0_9] : memref<128x32xf32, #tpu.memory_space<vmem>>, vector<128x32xf32>
      %c0_10 = arith.constant 0 : index
      %c0_11 = arith.constant 0 : index
      %16 = vector.load %arg4[%c0_10, %c0_11] : memref<128x32xf32, #tpu.memory_space<vmem>>, vector<128x32xf32>
      %17 = arith.mulf %16, %15 : vector<128x32xf32>
      %18 = tpu.concatenate %15, %17 in 1 : vector<128x32xf32>, vector<128x32xf32> -> vector<128x64xf32>
      %c0_12 = arith.constant 0 : index
      %c0_13 = arith.constant 0 : index
      %19 = vector.load %arg5[%c0_12, %c0_13] : memref<64x32xf32, #tpu.memory_space<vmem>>, vector<64x32xf32>
      %cst_14 = arith.constant dense<0.000000e+00> : vector<128x32xf32>
      %20 = tpu.matmul %18, %19, %cst_14 {dimension_numbers = #tpu.dot_dimension_numbers<[1], [0], [0], [1], [0, 0, 1, 1], [], []>} : vector<128x64xf32>, vector<64x32xf32>, vector<128x32xf32> -> vector<128x32xf32>
      %c0_15 = arith.constant 0 : index
      %c0_16 = arith.constant 0 : index
      %21 = vector.load %arg6[%c0_15, %c0_16] : memref<1x32xf32, #tpu.memory_space<vmem>>, vector<1x32xf32>
      %22 = vector.broadcast %21 : vector<1x32xf32> to vector<128x32xf32>
      %23 = arith.addf %20, %22 : vector<128x32xf32>
      %cst_17 = arith.constant 0.000000e+00 : f32
      %24 = vector.broadcast %cst_17 : f32 to vector<128x32xf32>
      %25 = arith.cmpf oge, %23, %24 : vector<128x32xf32>
      %cst_18 = arith.constant 2.000000e-01 : f32
      %26 = vector.broadcast %cst_18 : f32 to vector<128x32xf32>
      %27 = arith.mulf %26, %23 : vector<128x32xf32>
      %28 = arith.select %25, %23, %27 : vector<128x32xi1>, vector<128x32xf32>
      %29 = arith.mulf %28, %28 : vector<128x32xf32>
      %cst_19 = arith.constant dense<0.000000e+00> : vector<128xf32>
      %30 = vector.multi_reduction <add>, %29, %cst_19 [1] : vector<128x32xf32> to vector<128xf32>
      %31 = vector.shape_cast %30 : vector<128xf32> to vector<128x1xf32>
      %cst_20 = arith.constant 1.000000e-24 : f32
      %32 = vector.broadcast %cst_20 : f32 to vector<128x1xf32>
      %33 = arith.maximumf %31, %32 : vector<128x1xf32>
      %34 = math.rsqrt %33 : vector<128x1xf32>
      %35 = vector.broadcast %34 : vector<128x1xf32> to vector<128x32xf32>
      %36 = arith.mulf %28, %35 : vector<128x32xf32>
      %c0_21 = arith.constant 0 : index
      %c0_22 = arith.constant 0 : index
      %37 = vector.load %arg7[%c0_21, %c0_22] : memref<128x32xf32, #tpu.memory_space<vmem>>, vector<128x32xf32>
      tpu.vector_store %arg7[%c0_21, %c0_22], %28 {strides = array<i32>} : memref<128x32xf32, #tpu.memory_space<vmem>>, vector<128x32xf32>,
      %c0_23 = arith.constant 0 : index
      %c0_24 = arith.constant 0 : index
      %38 = vector.load %arg8[%c0_23, %c0_24] : memref<128x32xf32, #tpu.memory_space<vmem>>, vector<128x32xf32>
      tpu.vector_store %arg8[%c0_23, %c0_24], %36 {strides = array<i32>} : memref<128x32xf32, #tpu.memory_space<vmem>>, vector<128x32xf32>,
    } else {
    }
    return
  }
  func.func @transform_0(%arg0: i32, %arg1: i32) -> (i32, i32) {
    %c0_i32 = arith.constant 0 : i32
    return %arg1, %arg0 : i32, i32
  }
  func.func @transform_1(%arg0: i32, %arg1: i32) -> (i32, i32) {
    %c0_i32 = arith.constant 0 : i32
    %c0_i32_0 = arith.constant 0 : i32
    %c0_i32_1 = arith.constant 0 : i32
    return %c0_i32, %c0_i32_0 : i32, i32
  }
  func.func @transform_2(%arg0: i32, %arg1: i32) -> (i32, i32) {
    %c0_i32 = arith.constant 0 : i32
    %c0_i32_0 = arith.constant 0 : i32
    return %arg0, %c0_i32 : i32, i32
  }
  func.func @transform_3(%arg0: i32, %arg1: i32) -> (i32, i32) {
    %c0_i32 = arith.constant 0 : i32
    %c0_i32_0 = arith.constant 0 : i32
    %c0_i32_1 = arith.constant 0 : i32
    return %c0_i32, %c0_i32_0 : i32, i32
  }
  func.func @transform_4(%arg0: i32, %arg1: i32) -> (i32, i32) {
    %c0_i32 = arith.constant 0 : i32
    %c0_i32_0 = arith.constant 0 : i32
    %c0_i32_1 = arith.constant 0 : i32
    return %c0_i32, %c0_i32_0 : i32, i32
  }
  func.func @transform_5(%arg0: i32, %arg1: i32) -> (i32, i32) {
    %c0_i32 = arith.constant 0 : i32
    %c0_i32_0 = arith.constant 0 : i32
    return %arg0, %c0_i32 : i32, i32
  }
  func.func @transform_6(%arg0: i32, %arg1: i32) -> (i32, i32) {
    %c0_i32 = arith.constant 0 : i32
    %c0_i32_0 = arith.constant 0 : i32
    return %arg0, %c0_i32 : i32, i32
  }
}

module attributes {stable_mosaic.version = 11 : i64} {
  func.func @ngcf_partition_kernel(%arg0: i32, %arg1: i32, %arg2: memref<128x128xbf16, #tpu.memory_space<vmem>>, %arg3: memref<384x32xbf16, #tpu.memory_space<vmem>>, %arg4: memref<128x32xf32, #tpu.memory_space<vmem>>, %arg5: memref<64x32xf32, #tpu.memory_space<vmem>>, %arg6: memref<1x32xf32, #tpu.memory_space<vmem>>, %arg7: memref<128x32xf32, #tpu.memory_space<vmem>>, %arg8: memref<128x32xf32, #tpu.memory_space<vmem>>) attributes {dimension_semantics = [#tpu.dimension_semantics<parallel>, #tpu.dimension_semantics<arbitrary>], iteration_bounds = array<i64: 2, 3>, scalar_prefetch = 0 : i64, scratch_operands = 1 : i64, tpu.core_type = #tpu.core_type<tc>, window_params = [{transform_indices = @transform_0, window_bounds = array<i64: 128, 128>}, {pipeline_mode = #tpu.pipeline_mode<synchronous>, transform_indices = @transform_1, window_bounds = array<i64: 384, 32>}, {transform_indices = @transform_2, window_bounds = array<i64: 128, 32>}, {pipeline_mode = #tpu.pipeline_mode<synchronous>, transform_indices = @transform_3, window_bounds = array<i64: 64, 32>}, {pipeline_mode = #tpu.pipeline_mode<synchronous>, transform_indices = @transform_4, window_bounds = array<i64: 1, 32>}, {transform_indices = @transform_5, window_bounds = array<i64: 128, 32>}]} {
    %c0_i32 = arith.constant 0 : i32
    %0 = arith.cmpi eq, %arg1, %c0_i32 : i32
    %1 = arith.extui %0 : i1 to i32
    %c0_i32_0 = arith.constant 0 : i32
    %2 = arith.cmpi ne, %1, %c0_i32_0 : i32
    scf.if %2 {
      %cst_8 = arith.constant 0.000000e+00 : f32
      %15 = vector.broadcast %cst_8 : f32 to vector<128x32xf32>
      %c0_9 = arith.constant 0 : index
      %c0_10 = arith.constant 0 : index
      %16 = vector.load %arg8[%c0_9, %c0_10] : memref<128x32xf32, #tpu.memory_space<vmem>>, vector<128x32xf32>
      tpu.vector_store %arg8[%c0_9, %c0_10], %15 {strides = array<i32>} : memref<128x32xf32, #tpu.memory_space<vmem>>, vector<128x32xf32>,
    } else {
    }
    %c128_i32 = arith.constant 128 : i32
    %3 = arith.muli %arg1, %c128_i32 : i32
    %4 = tpu.assume_multiple %3, 128 : i32
    %5 = arith.index_cast %4 : i32 to index
    %c0 = arith.constant 0 : index
    %6 = vector.load %arg3[%5, %c0] : memref<384x32xbf16, #tpu.memory_space<vmem>>, vector<128x32xbf16>
    %c0_1 = arith.constant 0 : index
    %c0_2 = arith.constant 0 : index
    %7 = vector.load %arg2[%c0_1, %c0_2] : memref<128x128xbf16, #tpu.memory_space<vmem>>, vector<128x128xbf16>
    %cst = arith.constant dense<0.000000e+00> : vector<128x32xf32>
    %8 = tpu.matmul %7, %6, %cst {dimension_numbers = #tpu.dot_dimension_numbers<[1], [0], [0], [1], [0, 0, 1, 1], [], []>} : vector<128x128xbf16>, vector<128x32xbf16>, vector<128x32xf32> -> vector<128x32xf32>
    %c0_3 = arith.constant 0 : index
    %c0_4 = arith.constant 0 : index
    %9 = vector.load %arg8[%c0_3, %c0_4] : memref<128x32xf32, #tpu.memory_space<vmem>>, vector<128x32xf32>
    %10 = arith.addf %9, %8 : vector<128x32xf32>
    %c0_5 = arith.constant 0 : index
    %c0_6 = arith.constant 0 : index
    %11 = vector.load %arg8[%c0_5, %c0_6] : memref<128x32xf32, #tpu.memory_space<vmem>>, vector<128x32xf32>
    tpu.vector_store %arg8[%c0_5, %c0_6], %10 {strides = array<i32>} : memref<128x32xf32, #tpu.memory_space<vmem>>, vector<128x32xf32>,
    %c2_i32 = arith.constant 2 : i32
    %12 = arith.cmpi eq, %arg1, %c2_i32 : i32
    %13 = arith.extui %12 : i1 to i32
    %c0_i32_7 = arith.constant 0 : i32
    %14 = arith.cmpi ne, %13, %c0_i32_7 : i32
    scf.if %14 {
      %c0_8 = arith.constant 0 : index
      %c0_9 = arith.constant 0 : index
      %15 = vector.load %arg8[%c0_8, %c0_9] : memref<128x32xf32, #tpu.memory_space<vmem>>, vector<128x32xf32>
      %c0_10 = arith.constant 0 : index
      %c0_11 = arith.constant 0 : index
      %16 = vector.load %arg4[%c0_10, %c0_11] : memref<128x32xf32, #tpu.memory_space<vmem>>, vector<128x32xf32>
      %17 = arith.mulf %16, %15 : vector<128x32xf32>
      %18 = tpu.concatenate %15, %17 in 1 : vector<128x32xf32>, vector<128x32xf32> -> vector<128x64xf32>
      %c0_12 = arith.constant 0 : index
      %c0_13 = arith.constant 0 : index
      %19 = vector.load %arg5[%c0_12, %c0_13] : memref<64x32xf32, #tpu.memory_space<vmem>>, vector<64x32xf32>
      %cst_14 = arith.constant dense<0.000000e+00> : vector<128x32xf32>
      %20 = tpu.matmul %18, %19, %cst_14 {dimension_numbers = #tpu.dot_dimension_numbers<[1], [0], [0], [1], [0, 0, 1, 1], [], []>} : vector<128x64xf32>, vector<64x32xf32>, vector<128x32xf32> -> vector<128x32xf32>
      %c0_15 = arith.constant 0 : index
      %c0_16 = arith.constant 0 : index
      %21 = vector.load %arg6[%c0_15, %c0_16] : memref<1x32xf32, #tpu.memory_space<vmem>>, vector<1x32xf32>
      %22 = vector.broadcast %21 : vector<1x32xf32> to vector<128x32xf32>
      %23 = arith.addf %20, %22 : vector<128x32xf32>
      %cst_17 = arith.constant 0.000000e+00 : f32
      %24 = vector.broadcast %cst_17 : f32 to vector<128x32xf32>
      %25 = arith.cmpf oge, %23, %24 : vector<128x32xf32>
      %cst_18 = arith.constant 2.000000e-01 : f32
      %26 = vector.broadcast %cst_18 : f32 to vector<128x32xf32>
      %27 = arith.mulf %26, %23 : vector<128x32xf32>
      %28 = arith.select %25, %23, %27 : vector<128x32xi1>, vector<128x32xf32>
      %29 = arith.mulf %28, %28 : vector<128x32xf32>
      %cst_19 = arith.constant dense<0.000000e+00> : vector<128xf32>
      %30 = vector.multi_reduction <add>, %29, %cst_19 [1] : vector<128x32xf32> to vector<128xf32>
      %31 = vector.shape_cast %30 : vector<128xf32> to vector<128x1xf32>
      %cst_20 = arith.constant 1.000000e-24 : f32
      %32 = vector.broadcast %cst_20 : f32 to vector<128x1xf32>
      %33 = arith.maximumf %31, %32 : vector<128x1xf32>
      %34 = math.rsqrt %33 : vector<128x1xf32>
      %35 = vector.broadcast %34 : vector<128x1xf32> to vector<128x32xf32>
      %36 = arith.mulf %28, %35 : vector<128x32xf32>
      %c0_21 = arith.constant 0 : index
      %c0_22 = arith.constant 0 : index
      %37 = vector.load %arg7[%c0_21, %c0_22] : memref<128x32xf32, #tpu.memory_space<vmem>>, vector<128x32xf32>
      tpu.vector_store %arg7[%c0_21, %c0_22], %36 {strides = array<i32>} : memref<128x32xf32, #tpu.memory_space<vmem>>, vector<128x32xf32>,
    } else {
    }
    return
  }
  func.func @transform_0(%arg0: i32, %arg1: i32) -> (i32, i32) {
    %c0_i32 = arith.constant 0 : i32
    return %arg0, %arg1 : i32, i32
  }
  func.func @transform_1(%arg0: i32, %arg1: i32) -> (i32, i32) {
    %c0_i32 = arith.constant 0 : i32
    %c0_i32_0 = arith.constant 0 : i32
    %c0_i32_1 = arith.constant 0 : i32
    return %c0_i32, %c0_i32_0 : i32, i32
  }
  func.func @transform_2(%arg0: i32, %arg1: i32) -> (i32, i32) {
    %c0_i32 = arith.constant 0 : i32
    %c0_i32_0 = arith.constant 0 : i32
    return %arg0, %c0_i32 : i32, i32
  }
  func.func @transform_3(%arg0: i32, %arg1: i32) -> (i32, i32) {
    %c0_i32 = arith.constant 0 : i32
    %c0_i32_0 = arith.constant 0 : i32
    %c0_i32_1 = arith.constant 0 : i32
    return %c0_i32, %c0_i32_0 : i32, i32
  }
  func.func @transform_4(%arg0: i32, %arg1: i32) -> (i32, i32) {
    %c0_i32 = arith.constant 0 : i32
    %c0_i32_0 = arith.constant 0 : i32
    %c0_i32_1 = arith.constant 0 : i32
    return %c0_i32, %c0_i32_0 : i32, i32
  }
  func.func @transform_5(%arg0: i32, %arg1: i32) -> (i32, i32) {
    %c0_i32 = arith.constant 0 : i32
    %c0_i32_0 = arith.constant 0 : i32
    return %arg0, %c0_i32 : i32, i32
  }
}

module attributes {stable_mosaic.version = 11 : i64} {
  func.func @ngcf_partition_kernel(%arg0: i32, %arg1: i32, %arg2: memref<128x128xbf16, #tpu.memory_space<vmem>>, %arg3: memref<384x32xbf16, #tpu.memory_space<vmem>>, %arg4: memref<128x32xf32, #tpu.memory_space<vmem>>, %arg5: memref<64x32xf32, #tpu.memory_space<vmem>>, %arg6: memref<1x32xf32, #tpu.memory_space<vmem>>, %arg7: memref<128x32xf32, #tpu.memory_space<vmem>>, %arg8: memref<128x32xf32, #tpu.memory_space<vmem>>, %arg9: memref<128x32xf32, #tpu.memory_space<vmem>>) attributes {dimension_semantics = [#tpu.dimension_semantics<parallel>, #tpu.dimension_semantics<arbitrary>], iteration_bounds = array<i64: 2, 3>, scalar_prefetch = 0 : i64, scratch_operands = 1 : i64, tpu.core_type = #tpu.core_type<tc>, window_params = [{transform_indices = @transform_0, window_bounds = array<i64: 128, 128>}, {pipeline_mode = #tpu.pipeline_mode<synchronous>, transform_indices = @transform_1, window_bounds = array<i64: 384, 32>}, {transform_indices = @transform_2, window_bounds = array<i64: 128, 32>}, {pipeline_mode = #tpu.pipeline_mode<synchronous>, transform_indices = @transform_3, window_bounds = array<i64: 64, 32>}, {pipeline_mode = #tpu.pipeline_mode<synchronous>, transform_indices = @transform_4, window_bounds = array<i64: 1, 32>}, {transform_indices = @transform_5, window_bounds = array<i64: 128, 32>}, {transform_indices = @transform_6, window_bounds = array<i64: 128, 32>}]} {
    %c0_i32 = arith.constant 0 : i32
    %0 = arith.cmpi eq, %arg1, %c0_i32 : i32
    %1 = arith.extui %0 : i1 to i32
    %c0_i32_0 = arith.constant 0 : i32
    %2 = arith.cmpi ne, %1, %c0_i32_0 : i32
    scf.if %2 {
      %cst_8 = arith.constant 0.000000e+00 : f32
      %15 = vector.broadcast %cst_8 : f32 to vector<128x32xf32>
      %c0_9 = arith.constant 0 : index
      %c0_10 = arith.constant 0 : index
      %16 = vector.load %arg9[%c0_9, %c0_10] : memref<128x32xf32, #tpu.memory_space<vmem>>, vector<128x32xf32>
      tpu.vector_store %arg9[%c0_9, %c0_10], %15 {strides = array<i32>} : memref<128x32xf32, #tpu.memory_space<vmem>>, vector<128x32xf32>,
    } else {
    }
    %c128_i32 = arith.constant 128 : i32
    %3 = arith.muli %arg1, %c128_i32 : i32
    %4 = tpu.assume_multiple %3, 128 : i32
    %5 = arith.index_cast %4 : i32 to index
    %c0 = arith.constant 0 : index
    %6 = vector.load %arg3[%5, %c0] : memref<384x32xbf16, #tpu.memory_space<vmem>>, vector<128x32xbf16>
    %c0_1 = arith.constant 0 : index
    %c0_2 = arith.constant 0 : index
    %7 = vector.load %arg2[%c0_1, %c0_2] : memref<128x128xbf16, #tpu.memory_space<vmem>>, vector<128x128xbf16>
    %cst = arith.constant dense<0.000000e+00> : vector<128x32xf32>
    %8 = tpu.matmul %7, %6, %cst {dimension_numbers = #tpu.dot_dimension_numbers<[1], [0], [0], [1], [0, 0, 1, 1], [], []>} : vector<128x128xbf16>, vector<128x32xbf16>, vector<128x32xf32> -> vector<128x32xf32>
    %c0_3 = arith.constant 0 : index
    %c0_4 = arith.constant 0 : index
    %9 = vector.load %arg9[%c0_3, %c0_4] : memref<128x32xf32, #tpu.memory_space<vmem>>, vector<128x32xf32>
    %10 = arith.addf %9, %8 : vector<128x32xf32>
    %c0_5 = arith.constant 0 : index
    %c0_6 = arith.constant 0 : index
    %11 = vector.load %arg9[%c0_5, %c0_6] : memref<128x32xf32, #tpu.memory_space<vmem>>, vector<128x32xf32>
    tpu.vector_store %arg9[%c0_5, %c0_6], %10 {strides = array<i32>} : memref<128x32xf32, #tpu.memory_space<vmem>>, vector<128x32xf32>,
    %c2_i32 = arith.constant 2 : i32
    %12 = arith.cmpi eq, %arg1, %c2_i32 : i32
    %13 = arith.extui %12 : i1 to i32
    %c0_i32_7 = arith.constant 0 : i32
    %14 = arith.cmpi ne, %13, %c0_i32_7 : i32
    scf.if %14 {
      %c0_8 = arith.constant 0 : index
      %c0_9 = arith.constant 0 : index
      %15 = vector.load %arg9[%c0_8, %c0_9] : memref<128x32xf32, #tpu.memory_space<vmem>>, vector<128x32xf32>
      %c0_10 = arith.constant 0 : index
      %c0_11 = arith.constant 0 : index
      %16 = vector.load %arg4[%c0_10, %c0_11] : memref<128x32xf32, #tpu.memory_space<vmem>>, vector<128x32xf32>
      %17 = arith.mulf %16, %15 : vector<128x32xf32>
      %18 = tpu.concatenate %15, %17 in 1 : vector<128x32xf32>, vector<128x32xf32> -> vector<128x64xf32>
      %c0_12 = arith.constant 0 : index
      %c0_13 = arith.constant 0 : index
      %19 = vector.load %arg5[%c0_12, %c0_13] : memref<64x32xf32, #tpu.memory_space<vmem>>, vector<64x32xf32>
      %cst_14 = arith.constant dense<0.000000e+00> : vector<128x32xf32>
      %20 = tpu.matmul %18, %19, %cst_14 {dimension_numbers = #tpu.dot_dimension_numbers<[1], [0], [0], [1], [0, 0, 1, 1], [], []>} : vector<128x64xf32>, vector<64x32xf32>, vector<128x32xf32> -> vector<128x32xf32>
      %c0_15 = arith.constant 0 : index
      %c0_16 = arith.constant 0 : index
      %21 = vector.load %arg6[%c0_15, %c0_16] : memref<1x32xf32, #tpu.memory_space<vmem>>, vector<1x32xf32>
      %22 = vector.broadcast %21 : vector<1x32xf32> to vector<128x32xf32>
      %23 = arith.addf %20, %22 : vector<128x32xf32>
      %cst_17 = arith.constant 0.000000e+00 : f32
      %24 = vector.broadcast %cst_17 : f32 to vector<128x32xf32>
      %25 = arith.cmpf oge, %23, %24 : vector<128x32xf32>
      %cst_18 = arith.constant 2.000000e-01 : f32
      %26 = vector.broadcast %cst_18 : f32 to vector<128x32xf32>
      %27 = arith.mulf %26, %23 : vector<128x32xf32>
      %28 = arith.select %25, %23, %27 : vector<128x32xi1>, vector<128x32xf32>
      %29 = arith.mulf %28, %28 : vector<128x32xf32>
      %cst_19 = arith.constant dense<0.000000e+00> : vector<128xf32>
      %30 = vector.multi_reduction <add>, %29, %cst_19 [1] : vector<128x32xf32> to vector<128xf32>
      %31 = vector.shape_cast %30 : vector<128xf32> to vector<128x1xf32>
      %cst_20 = arith.constant 1.000000e-24 : f32
      %32 = vector.broadcast %cst_20 : f32 to vector<128x1xf32>
      %33 = arith.maximumf %31, %32 : vector<128x1xf32>
      %34 = math.rsqrt %33 : vector<128x1xf32>
      %35 = vector.broadcast %34 : vector<128x1xf32> to vector<128x32xf32>
      %36 = arith.mulf %28, %35 : vector<128x32xf32>
      %c0_21 = arith.constant 0 : index
      %c0_22 = arith.constant 0 : index
      %37 = vector.load %arg7[%c0_21, %c0_22] : memref<128x32xf32, #tpu.memory_space<vmem>>, vector<128x32xf32>
      tpu.vector_store %arg7[%c0_21, %c0_22], %28 {strides = array<i32>} : memref<128x32xf32, #tpu.memory_space<vmem>>, vector<128x32xf32>,
      %c0_23 = arith.constant 0 : index
      %c0_24 = arith.constant 0 : index
      %38 = vector.load %arg8[%c0_23, %c0_24] : memref<128x32xf32, #tpu.memory_space<vmem>>, vector<128x32xf32>
      tpu.vector_store %arg8[%c0_23, %c0_24], %36 {strides = array<i32>} : memref<128x32xf32, #tpu.memory_space<vmem>>, vector<128x32xf32>,
    } else {
    }
    return
  }
  func.func @transform_0(%arg0: i32, %arg1: i32) -> (i32, i32) {
    %c0_i32 = arith.constant 0 : i32
    return %arg0, %arg1 : i32, i32
  }
  func.func @transform_1(%arg0: i32, %arg1: i32) -> (i32, i32) {
    %c0_i32 = arith.constant 0 : i32
    %c0_i32_0 = arith.constant 0 : i32
    %c0_i32_1 = arith.constant 0 : i32
    return %c0_i32, %c0_i32_0 : i32, i32
  }
  func.func @transform_2(%arg0: i32, %arg1: i32) -> (i32, i32) {
    %c0_i32 = arith.constant 0 : i32
    %c0_i32_0 = arith.constant 0 : i32
    return %arg0, %c0_i32 : i32, i32
  }
  func.func @transform_3(%arg0: i32, %arg1: i32) -> (i32, i32) {
    %c0_i32 = arith.constant 0 : i32
    %c0_i32_0 = arith.constant 0 : i32
    %c0_i32_1 = arith.constant 0 : i32
    return %c0_i32, %c0_i32_0 : i32, i32
  }
  func.func @transform_4(%arg0: i32, %arg1: i32) -> (i32, i32) {
    %c0_i32 = arith.constant 0 : i32
    %c0_i32_0 = arith.constant 0 : i32
    %c0_i32_1 = arith.constant 0 : i32
    return %c0_i32, %c0_i32_0 : i32, i32
  }
  func.func @transform_5(%arg0: i32, %arg1: i32) -> (i32, i32) {
    %c0_i32 = arith.constant 0 : i32
    %c0_i32_0 = arith.constant 0 : i32
    return %arg0, %c0_i32 : i32, i32
  }
  func.func @transform_6(%arg0: i32, %arg1: i32) -> (i32, i32) {
    %c0_i32 = arith.constant 0 : i32
    %c0_i32_0 = arith.constant 0 : i32
    return %arg0, %c0_i32 : i32, i32
  }
}

module attributes {stable_mosaic.version = 11 : i64} {
  func.func @ngcf_partition_kernel(%arg0: i32, %arg1: i32, %arg2: memref<128x128xbf16, #tpu.memory_space<vmem>>, %arg3: memref<256x32xbf16, #tpu.memory_space<vmem>>, %arg4: memref<128x32xf32, #tpu.memory_space<vmem>>, %arg5: memref<64x32xf32, #tpu.memory_space<vmem>>, %arg6: memref<1x32xf32, #tpu.memory_space<vmem>>, %arg7: memref<128x32xf32, #tpu.memory_space<vmem>>, %arg8: memref<128x32xf32, #tpu.memory_space<vmem>>) attributes {dimension_semantics = [#tpu.dimension_semantics<parallel>, #tpu.dimension_semantics<arbitrary>], iteration_bounds = array<i64: 3, 2>, scalar_prefetch = 0 : i64, scratch_operands = 1 : i64, tpu.core_type = #tpu.core_type<tc>, window_params = [{transform_indices = @transform_0, window_bounds = array<i64: 128, 128>}, {pipeline_mode = #tpu.pipeline_mode<synchronous>, transform_indices = @transform_1, window_bounds = array<i64: 256, 32>}, {transform_indices = @transform_2, window_bounds = array<i64: 128, 32>}, {pipeline_mode = #tpu.pipeline_mode<synchronous>, transform_indices = @transform_3, window_bounds = array<i64: 64, 32>}, {pipeline_mode = #tpu.pipeline_mode<synchronous>, transform_indices = @transform_4, window_bounds = array<i64: 1, 32>}, {transform_indices = @transform_5, window_bounds = array<i64: 128, 32>}]} {
    %c0_i32 = arith.constant 0 : i32
    %0 = arith.cmpi eq, %arg1, %c0_i32 : i32
    %1 = arith.extui %0 : i1 to i32
    %c0_i32_0 = arith.constant 0 : i32
    %2 = arith.cmpi ne, %1, %c0_i32_0 : i32
    scf.if %2 {
      %cst_8 = arith.constant 0.000000e+00 : f32
      %15 = vector.broadcast %cst_8 : f32 to vector<128x32xf32>
      %c0_9 = arith.constant 0 : index
      %c0_10 = arith.constant 0 : index
      %16 = vector.load %arg8[%c0_9, %c0_10] : memref<128x32xf32, #tpu.memory_space<vmem>>, vector<128x32xf32>
      tpu.vector_store %arg8[%c0_9, %c0_10], %15 {strides = array<i32>} : memref<128x32xf32, #tpu.memory_space<vmem>>, vector<128x32xf32>,
    } else {
    }
    %c128_i32 = arith.constant 128 : i32
    %3 = arith.muli %arg1, %c128_i32 : i32
    %4 = tpu.assume_multiple %3, 128 : i32
    %5 = arith.index_cast %4 : i32 to index
    %c0 = arith.constant 0 : index
    %6 = vector.load %arg3[%5, %c0] : memref<256x32xbf16, #tpu.memory_space<vmem>>, vector<128x32xbf16>
    %c0_1 = arith.constant 0 : index
    %c0_2 = arith.constant 0 : index
    %7 = vector.load %arg2[%c0_1, %c0_2] : memref<128x128xbf16, #tpu.memory_space<vmem>>, vector<128x128xbf16>
    %cst = arith.constant dense<0.000000e+00> : vector<128x32xf32>
    %8 = tpu.matmul %7, %6, %cst {dimension_numbers = #tpu.dot_dimension_numbers<[0], [0], [1], [1], [0, 1, 1, 1], [], []>} : vector<128x128xbf16>, vector<128x32xbf16>, vector<128x32xf32> -> vector<128x32xf32>
    %c0_3 = arith.constant 0 : index
    %c0_4 = arith.constant 0 : index
    %9 = vector.load %arg8[%c0_3, %c0_4] : memref<128x32xf32, #tpu.memory_space<vmem>>, vector<128x32xf32>
    %10 = arith.addf %9, %8 : vector<128x32xf32>
    %c0_5 = arith.constant 0 : index
    %c0_6 = arith.constant 0 : index
    %11 = vector.load %arg8[%c0_5, %c0_6] : memref<128x32xf32, #tpu.memory_space<vmem>>, vector<128x32xf32>
    tpu.vector_store %arg8[%c0_5, %c0_6], %10 {strides = array<i32>} : memref<128x32xf32, #tpu.memory_space<vmem>>, vector<128x32xf32>,
    %c1_i32 = arith.constant 1 : i32
    %12 = arith.cmpi eq, %arg1, %c1_i32 : i32
    %13 = arith.extui %12 : i1 to i32
    %c0_i32_7 = arith.constant 0 : i32
    %14 = arith.cmpi ne, %13, %c0_i32_7 : i32
    scf.if %14 {
      %c0_8 = arith.constant 0 : index
      %c0_9 = arith.constant 0 : index
      %15 = vector.load %arg8[%c0_8, %c0_9] : memref<128x32xf32, #tpu.memory_space<vmem>>, vector<128x32xf32>
      %c0_10 = arith.constant 0 : index
      %c0_11 = arith.constant 0 : index
      %16 = vector.load %arg4[%c0_10, %c0_11] : memref<128x32xf32, #tpu.memory_space<vmem>>, vector<128x32xf32>
      %17 = arith.mulf %16, %15 : vector<128x32xf32>
      %18 = tpu.concatenate %15, %17 in 1 : vector<128x32xf32>, vector<128x32xf32> -> vector<128x64xf32>
      %c0_12 = arith.constant 0 : index
      %c0_13 = arith.constant 0 : index
      %19 = vector.load %arg5[%c0_12, %c0_13] : memref<64x32xf32, #tpu.memory_space<vmem>>, vector<64x32xf32>
      %cst_14 = arith.constant dense<0.000000e+00> : vector<128x32xf32>
      %20 = tpu.matmul %18, %19, %cst_14 {dimension_numbers = #tpu.dot_dimension_numbers<[1], [0], [0], [1], [0, 0, 1, 1], [], []>} : vector<128x64xf32>, vector<64x32xf32>, vector<128x32xf32> -> vector<128x32xf32>
      %c0_15 = arith.constant 0 : index
      %c0_16 = arith.constant 0 : index
      %21 = vector.load %arg6[%c0_15, %c0_16] : memref<1x32xf32, #tpu.memory_space<vmem>>, vector<1x32xf32>
      %22 = vector.broadcast %21 : vector<1x32xf32> to vector<128x32xf32>
      %23 = arith.addf %20, %22 : vector<128x32xf32>
      %cst_17 = arith.constant 0.000000e+00 : f32
      %24 = vector.broadcast %cst_17 : f32 to vector<128x32xf32>
      %25 = arith.cmpf oge, %23, %24 : vector<128x32xf32>
      %cst_18 = arith.constant 2.000000e-01 : f32
      %26 = vector.broadcast %cst_18 : f32 to vector<128x32xf32>
      %27 = arith.mulf %26, %23 : vector<128x32xf32>
      %28 = arith.select %25, %23, %27 : vector<128x32xi1>, vector<128x32xf32>
      %29 = arith.mulf %28, %28 : vector<128x32xf32>
      %cst_19 = arith.constant dense<0.000000e+00> : vector<128xf32>
      %30 = vector.multi_reduction <add>, %29, %cst_19 [1] : vector<128x32xf32> to vector<128xf32>
      %31 = vector.shape_cast %30 : vector<128xf32> to vector<128x1xf32>
      %cst_20 = arith.constant 1.000000e-24 : f32
      %32 = vector.broadcast %cst_20 : f32 to vector<128x1xf32>
      %33 = arith.maximumf %31, %32 : vector<128x1xf32>
      %34 = math.rsqrt %33 : vector<128x1xf32>
      %35 = vector.broadcast %34 : vector<128x1xf32> to vector<128x32xf32>
      %36 = arith.mulf %28, %35 : vector<128x32xf32>
      %c0_21 = arith.constant 0 : index
      %c0_22 = arith.constant 0 : index
      %37 = vector.load %arg7[%c0_21, %c0_22] : memref<128x32xf32, #tpu.memory_space<vmem>>, vector<128x32xf32>
      tpu.vector_store %arg7[%c0_21, %c0_22], %36 {strides = array<i32>} : memref<128x32xf32, #tpu.memory_space<vmem>>, vector<128x32xf32>,
    } else {
    }
    return
  }
  func.func @transform_0(%arg0: i32, %arg1: i32) -> (i32, i32) {
    %c0_i32 = arith.constant 0 : i32
    return %arg1, %arg0 : i32, i32
  }
  func.func @transform_1(%arg0: i32, %arg1: i32) -> (i32, i32) {
    %c0_i32 = arith.constant 0 : i32
    %c0_i32_0 = arith.constant 0 : i32
    %c0_i32_1 = arith.constant 0 : i32
    return %c0_i32, %c0_i32_0 : i32, i32
  }
  func.func @transform_2(%arg0: i32, %arg1: i32) -> (i32, i32) {
    %c0_i32 = arith.constant 0 : i32
    %c0_i32_0 = arith.constant 0 : i32
    return %arg0, %c0_i32 : i32, i32
  }
  func.func @transform_3(%arg0: i32, %arg1: i32) -> (i32, i32) {
    %c0_i32 = arith.constant 0 : i32
    %c0_i32_0 = arith.constant 0 : i32
    %c0_i32_1 = arith.constant 0 : i32
    return %c0_i32, %c0_i32_0 : i32, i32
  }
  func.func @transform_4(%arg0: i32, %arg1: i32) -> (i32, i32) {
    %c0_i32 = arith.constant 0 : i32
    %c0_i32_0 = arith.constant 0 : i32
    %c0_i32_1 = arith.constant 0 : i32
    return %c0_i32, %c0_i32_0 : i32, i32
  }
  func.func @transform_5(%arg0: i32, %arg1: i32) -> (i32, i32) {
    %c0_i32 = arith.constant 0 : i32
    %c0_i32_0 = arith.constant 0 : i32
    return %arg0, %c0_i32 : i32, i32
  }
}

</mosaic_0001>

<llo_original>
// kernel: ngcf_forward.5
$region0: #{ngcf_forward.5}
  #allocation0 [shape = 'u32[]', space=smem, size = 0x4, offset = 0x4, fixed_abs, tag = 'smem constant byte address 0x4 - core index']
  #allocation1 [shape = 'u32[144,128]{1,0:T(1,128)}', space=vmem, size = 0x12000, scoped, tag = 'internal scratch']
  #allocation2 [shape = 'f32[128,32]{1,0:T(8,128)}', space=vmem, size = 0x10000, scoped, tag = 'scratch operand']
  %s0 = inlined_call_operand.vmem [shape: bf16[256,384], index: 0, kind: input, shape index: {}]
  %s1 = inlined_call_operand.vmem [shape: bf16[256,32], index: 1, kind: input, shape index: {}]
  %s2 = inlined_call_operand.vmem [shape: f32[384,32], index: 2, kind: input, shape index: {}]
  %s3 = inlined_call_operand.vmem [shape: f32[64,32], index: 3, kind: input, shape index: {}]
  %s4 = inlined_call_operand.vmem [shape: f32[1,32], index: 4, kind: input, shape index: {}]
  %s5 = inlined_call_operand.vmem [shape: f32[384,32], index: 5, kind: output, shape index: {0}]
  %s6 = inlined_call_operand.vmem [shape: f32[384,32], index: 6, kind: output, shape index: {1}]
  %7 = xla_tuple %s5, %s6
  %s8 = sld [smem:[#allocation0]]
  $region110: #{ngcf_forward.5} parent=0
    _
  %s10 = ssub.s32 1, %s8
  %s11 = scalar_select 0, %s10, %s8
  $region1: #{ngcf_forward.5} parent=0
    #allocation3 [shape = 'u8[65536]{0}', space=vmem, size = 0x10000, scoped, tag = 'input window, operand 0']
    loop: start=0, step=1, limit=8
    $region2: #{ngcf_forward.5} parent=1 // loop_pre_header
      _
    $region3: #{ngcf_forward.5} parent=1 // loop_header
      %s13 = sphi 0, %s17
      %p14 = scmp.ge.s32.totalorder %s13, 8
      %s20 = sphi 0, %s32
      %s21 = sphi 0, %s28
      %s22 = sphi 0, %s20
      %s23 = sphi 0, %s21
      %s24 = sphi 0, %s22
      %s25 = sphi 0, %s23
      %s37 = sphi 0, %s39
      %s40 = sphi 0, %s37
      %s41 = sphi 0, %s40
      %s57 = sphi 0, %s41
      %s61 = sphi 0, %s61
      %s63 = sphi 0, %s61
      %s64 = sphi 0, %s63
      %s78 = sphi 0, %s64
      %s84 = sphi 0, %s86
      %s87 = sphi 0, %s84
      %s88 = sphi 0, %s87
      %s104 = sphi 0, %s88
      %s108 = sphi 0, %s108
      %s110 = sphi 0, %s108
      %s111 = sphi 0, %s110
      %s125 = sphi 0, %s111
      %s129 = sphi 0, %s129
      %s131 = sphi 0, %s129
      %s132 = sphi 0, %s131
      %s146 = sphi 0, %s132
      %s152 = sphi 0, %s154
      %s155 = sphi 0, %s152
      %s156 = sphi 0, %s155
      %s172 = sphi 0, %s156
      %s178 = sphi 0, %s180
      %s181 = sphi 0, %s178
      %s182 = sphi 0, %s181
      %s198 = sphi 0, %s182
    $region4: #{ngcf_forward.5} parent=1 // loop_header_branch
      %16 = sbr.rel (%p14) target = $region8
    $region5: #{ngcf_forward.5} parent=1 // loop_body
      %s18 = ssub.s32 %s13, 1
      %s19 = ssub.s32 %s13, 2
      %s26 = sadd.s32 1, %s21
      %p27 = scmp.ge.s32.totalorder %s26, 2
      %s28 = scalar_select %p27, 0, %s26
      %s29 = sadd.s32 1, %s20
      %s30 = scalar_select %p27, %s29, %s20
      %p31 = scmp.ge.s32.totalorder %s30, 3
      %s32 = scalar_select %p31, 0, %s30
      %s33 = ssub.s32 %s21, %s28
      %s34 = ssub.s32 %s20, %s32
      %s35 = sor.u32 %s33, %s34
      %p36 = scmp.eq.s32.totalorder %s35, 0
      %s38 = sadd.s32 %s37, 1
      %s39 = scalar_select %p36, %s37, %s38
      %p42 = pneg %p36
      %p43 = scmp.eq.s32.totalorder %s13, 5
      %p44 = por %p42, %p43
      %p45 = scmp.ne.s32.totalorder %s37, %s40
      %p46 = scmp.eq.s32.totalorder %s13, 0
      %p47 = por %p45, %p46
      %p48 = scmp.ne.s32.totalorder %s37, %s40
      %p49 = scmp.eq.s32.totalorder %s18, 5
      %p50 = por %p48, %p49
      %p51 = scmp.ne.s32.totalorder %s40, %s41
      %p52 = scmp.eq.s32.totalorder %s18, 0
      %p53 = por %p51, %p52
      %p54 = scmp.ne.s32.totalorder %s40, %s41
      %p55 = scmp.eq.s32.totalorder %s19, 5
      %p56 = por %p54, %p55
      %p58 = scmp.ne.s32.totalorder %s41, %s57
      %p59 = scmp.eq.s32.totalorder %s19, 0
      %p60 = por %p58, %p59
      %s62 = sadd.s32 %s61, 1
      %p65 = scmp.eq.s32.totalorder %s13, 5
      %p66 = scmp.ne.s32.totalorder %s61, %s63
      %p67 = scmp.eq.s32.totalorder %s13, 0
      %p68 = por %p66, %p67
      %p69 = scmp.ne.s32.totalorder %s61, %s63
      %p70 = scmp.eq.s32.totalorder %s18, 5
      %p71 = por %p69, %p70
      %p72 = scmp.ne.s32.totalorder %s63, %s64
      %p73 = scmp.eq.s32.totalorder %s18, 0
      %p74 = por %p72, %p73
      %p75 = scmp.ne.s32.totalorder %s63, %s64
      %p76 = scmp.eq.s32.totalorder %s19, 5
      %p77 = por %p75, %p76
      %p79 = scmp.ne.s32.totalorder %s64, %s78
      %p80 = scmp.eq.s32.totalorder %s19, 0
      %p81 = por %p79, %p80
      %s82 = ssub.s32 %s20, %s32
      %p83 = scmp.eq.s32.totalorder %s82, 0
      %s85 = sadd.s32 %s84, 1
      %s86 = scalar_select %p83, %s84, %s85
      %p89 = pneg %p83
      %p90 = scmp.eq.s32.totalorder %s13, 5
      %p91 = por %p89, %p90
      %p92 = scmp.ne.s32.totalorder %s84, %s87
      %p93 = scmp.eq.s32.totalorder %s13, 0
      %p94 = por %p92, %p93
      %p95 = scmp.ne.s32.totalorder %s84, %s87
      %p96 = scmp.eq.s32.totalorder %s18, 5
      %p97 = por %p95, %p96
      %p98 = scmp.ne.s32.totalorder %s87, %s88
      %p99 = scmp.eq.s32.totalorder %s18, 0
      %p100 = por %p98, %p99
      %p101 = scmp.ne.s32.totalorder %s87, %s88
      %p102 = scmp.eq.s32.totalorder %s19, 5
      %p103 = por %p101, %p102
      %p105 = scmp.ne.s32.totalorder %s88, %s104
      %p106 = scmp.eq.s32.totalorder %s19, 0
      %p107 = por %p105, %p106
      %s109 = sadd.s32 %s108, 1
      %p112 = scmp.eq.s32.totalorder %s13, 5
      %p113 = scmp.ne.s32.totalorder %s108, %s110
      %p114 = scmp.eq.s32.totalorder %s13, 0
      %p115 = por %p113, %p114
      %p116 = scmp.ne.s32.totalorder %s108, %s110
      %p117 = scmp.eq.s32.totalorder %s18, 5
      %p118 = por %p116, %p117
      %p119 = scmp.ne.s32.totalorder %s110, %s111
      %p120 = scmp.eq.s32.totalorder %s18, 0
      %p121 = por %p119, %p120
      %p122 = scmp.ne.s32.totalorder %s110, %s111
      %p123 = scmp.eq.s32.totalorder %s19, 5
      %p124 = por %p122, %p123
      %p126 = scmp.ne.s32.totalorder %s111, %s125
      %p127 = scmp.eq.s32.totalorder %s19, 0
      %p128 = por %p126, %p127
      %s130 = sadd.s32 %s129, 1
      %p133 = scmp.eq.s32.totalorder %s13, 5
      %p134 = scmp.ne.s32.totalorder %s129, %s131
      %p135 = scmp.eq.s32.totalorder %s13, 0
      %p136 = por %p134, %p135
      %p137 = scmp.ne.s32.totalorder %s129, %s131
      %p138 = scmp.eq.s32.totalorder %s18, 5
      %p139 = por %p137, %p138
      %p140 = scmp.ne.s32.totalorder %s131, %s132
      %p141 = scmp.eq.s32.totalorder %s18, 0
      %p142 = por %p140, %p141
      %p143 = scmp.ne.s32.totalorder %s131, %s132
      %p144 = scmp.eq.s32.totalorder %s19, 5
      %p145 = por %p143, %p144
      %p147 = scmp.ne.s32.totalorder %s132, %s146
      %p148 = scmp.eq.s32.totalorder %s19, 0
      %p149 = por %p147, %p148
      %s150 = ssub.s32 %s20, %s32
      %p151 = scmp.eq.s32.totalorder %s150, 0
      %s153 = sadd.s32 %s152, 1
      %s154 = scalar_select %p151, %s152, %s153
      %p157 = pneg %p151
      %p158 = scmp.eq.s32.totalorder %s13, 5
      %p159 = por %p157, %p158
      %p160 = scmp.ne.s32.totalorder %s152, %s155
      %p161 = scmp.eq.s32.totalorder %s13, 0
      %p162 = por %p160, %p161
      %p163 = scmp.ne.s32.totalorder %s152, %s155
      %p164 = scmp.eq.s32.totalorder %s18, 5
      %p165 = por %p163, %p164
      %p166 = scmp.ne.s32.totalorder %s155, %s156
      %p167 = scmp.eq.s32.totalorder %s18, 0
      %p168 = por %p166, %p167
      %p169 = scmp.ne.s32.totalorder %s155, %s156
      %p170 = scmp.eq.s32.totalorder %s19, 5
      %p171 = por %p169, %p170
      %p173 = scmp.ne.s32.totalorder %s156, %s172
      %p174 = scmp.eq.s32.totalorder %s19, 0
      %p175 = por %p173, %p174
      %s176 = ssub.s32 %s20, %s32
      %p177 = scmp.eq.s32.totalorder %s176, 0
      %s179 = sadd.s32 %s178, 1
      %s180 = scalar_select %p177, %s178, %s179
      %p183 = pneg %p177
      %p184 = scmp.eq.s32.totalorder %s13, 5
      %p185 = por %p183, %p184
      %p186 = scmp.ne.s32.totalorder %s178, %s181
      %p187 = scmp.eq.s32.totalorder %s13, 0
      %p188 = por %p186, %p187
      %p189 = scmp.ne.s32.totalorder %s178, %s181
      %p190 = scmp.eq.s32.totalorder %s18, 5
      %p191 = por %p189, %p190
      %p192 = scmp.ne.s32.totalorder %s181, %s182
      %p193 = scmp.eq.s32.totalorder %s18, 0
      %p194 = por %p192, %p193
      %p195 = scmp.ne.s32.totalorder %s181, %s182
      %p196 = scmp.eq.s32.totalorder %s19, 5
      %p197 = por %p195, %p196
      %p199 = scmp.ne.s32.totalorder %s182, %s198
      %p200 = scmp.eq.s32.totalorder %s19, 0
      %p201 = por %p199, %p200
      %p202 = scmp.le.s32.totalorder 1, %s13
      %p203 = scmp.lt.s32.totalorder %s13, 7
      %p204 = pnand %p202, %p203
      %p205 = pneg %p204
      // Predicated region
      $region9: #{ngcf_forward.5} parent=5 // pred_check
        _
      $region10: #{ngcf_forward.5} parent=5 // pred_check_branch
        %207 = sbr.rel (%p204) target = $region12
      $region11: #{ngcf_forward.5} parent=5 // pred_region
        %s208 = ssub.s32 %s13, 1
        // Predicated region
        $region13: #{ngcf_forward.5} parent=11 // pred_check
          %p209 = pneg %p74
        $region14: #{ngcf_forward.5} parent=11 // pred_check_branch
          %211 = sbr.rel (%p209) target = $region16
        $region15: #{ngcf_forward.5} parent=11 // pred_region
          _
        $region16: #{ngcf_forward.5} parent=11 // pred_fallthru
          _
        // Predicated region
        $region17: #{ngcf_forward.5} parent=11 // pred_check
          %p212 = pneg %p121
        $region18: #{ngcf_forward.5} parent=11 // pred_check_branch
          %214 = sbr.rel (%p212) target = $region20
        $region19: #{ngcf_forward.5} parent=11 // pred_region
          _
        $region20: #{ngcf_forward.5} parent=11 // pred_fallthru
          _
        // Predicated region
        $region21: #{ngcf_forward.5} parent=11 // pred_check
          %p215 = pneg %p142
        $region22: #{ngcf_forward.5} parent=11 // pred_check_branch
          %217 = sbr.rel (%p215) target = $region24
        $region23: #{ngcf_forward.5} parent=11 // pred_region
          _
        $region24: #{ngcf_forward.5} parent=11 // pred_fallthru
          _
      $region12: #{ngcf_forward.5} parent=5 // pred_fallthru
        _
      %p218 = scmp.lt.s32.totalorder %s13, 6
      // Predicated region
      $region25: #{ngcf_forward.5} parent=5 // pred_check
        %p219 = pneg %p218
      $region26: #{ngcf_forward.5} parent=5 // pred_check_branch
        %221 = sbr.rel (%p219) target = $region28
      $region27: #{ngcf_forward.5} parent=5 // pred_region
        // Predicated region
        $region29: #{ngcf_forward.5} parent=27 // pred_check
          %p222 = pneg %p47
        $region30: #{ngcf_forward.5} parent=27 // pred_check_branch
          %224 = sbr.rel (%p222) target = $region32
        $region31: #{ngcf_forward.5} parent=27 // pred_region
          %s225 = sand.u32 %s37, 1
          %s226 = sand.u32 %s37, 1
          %s227 = smul.addr %s226, 64
          %s228 = scalar_lea.vmem [#allocation3], %s227
          %s229 = smul.u32 16, %s21
          %s230 = smul.addr %s229, 3
          %s231 = sadd.s32 %s20, %s230
          %s232 = smul.addr %s231, 4
          %s233 = scalar_lea.vmem %s0, %s232
          // Predicated region
          $region33: #{ngcf_forward.5} parent=31 // pred_check
            _
          $region34: #{ngcf_forward.5} parent=31 // pred_check_branch
            %235 = sbr.rel (0) target = $region36
          $region35: #{ngcf_forward.5} parent=31 // pred_region
            // Predicated region
            $region37: #{ngcf_forward.5} parent=35 // pred_check
              _
            $region38: #{ngcf_forward.5} parent=35 // pred_check_branch
              %237 = sbr.rel target = $region40
            $region39: #{ngcf_forward.5} parent=35 // pred_region
              // Predicated region
              $region52: #{ngcf_forward.5} parent=39 // pred_check
                _
              $region53: #{ngcf_forward.5} parent=39 // pred_check_branch
                %282 = sbr.rel (0) target = $region55
              $region54: #{ngcf_forward.5} parent=39 // pred_region
                loop: start=0, step=1, limit=1
                $region56: #{ngcf_forward.5} parent=54 // loop_pre_header
                  _
                $region57: #{ngcf_forward.5} parent=54 // loop_header
                  %s284 = sphi 0, %s288
                  %p285 = scmp.ge.s32.totalorder %s284, 1
                  %s289 = sphi %s233, %s233
                  %s290 = sphi %s228, %s228
                $region58: #{ngcf_forward.5} parent=54 // loop_header_branch
                  %287 = sbr.rel (%p285) target = $region62
                $region59: #{ngcf_forward.5} parent=54 // loop_body
                  _
                $region60: #{ngcf_forward.5} parent=54 // loop_footer
                  %s288 = sadd.s32 1, %s284
                $region61: #{ngcf_forward.5} parent=54 // loop_footer_branch
                  %283 = sbr.rel target = $region57
                $region62: #{ngcf_forward.5} parent=54 // loop_exit
                  _
                loop: start=0, step=1, limit=1
                $region63: #{ngcf_forward.5} parent=54 // loop_pre_header
                  _
                $region64: #{ngcf_forward.5} parent=54 // loop_header
                  %s293 = sphi 0, %s297
                  %p294 = scmp.ge.s32.totalorder %s293, 1
                  %s298 = sphi %s233, %s233
                  %s299 = sphi %s228, %s228
                $region65: #{ngcf_forward.5} parent=54 // loop_header_branch
                  %296 = sbr.rel (%p294) target = $region69
                $region66: #{ngcf_forward.5} parent=54 // loop_body
                  %v300 = vld [vmem:[%s298] sm:$0xf]
                  %301 = vst [vmem:[%s299] sm:$0xf] %v300
                  %v302 = vld [vmem:[%s298 + $0xc] sm:$0xf]
                  %303 = vst [vmem:[%s299 + $0x4] sm:$0xf] %v302
                  %v304 = vld [vmem:[%s298 + $0x18] sm:$0xf]
                  %305 = vst [vmem:[%s299 + $0x8] sm:$0xf] %v304
                  %v306 = vld [vmem:[%s298 + $0x24] sm:$0xf]
                  %307 = vst [vmem:[%s299 + $0xc] sm:$0xf] %v306
                  %v308 = vld [vmem:[%s298 + $0x30] sm:$0xf]
                  %309 = vst [vmem:[%s299 + $0x10] sm:$0xf] %v308
                  %v310 = vld [vmem:[%s298 + $0x3c] sm:$0xf]
                  %311 = vst [vmem:[%s299 + $0x14] sm:$0xf] %v310
                  %v312 = vld [vmem:[%s298 + $0x48] sm:$0xf]
                  %313 = vst [vmem:[%s299 + $0x18] sm:$0xf] %v312
                  %v314 = vld [vmem:[%s298 + $0x54] sm:$0xf]
                  %315 = vst [vmem:[%s299 + $0x1c] sm:$0xf] %v314
                  %v316 = vld [vmem:[%s298 + $0x60] sm:$0xf]
                  %317 = vst [vmem:[%s299 + $0x20] sm:$0xf] %v316
                  %v318 = vld [vmem:[%s298 + $0x6c] sm:$0xf]
                  %319 = vst [vmem:[%s299 + $0x24] sm:$0xf] %v318
                  %v320 = vld [vmem:[%s298 + $0x78] sm:$0xf]
                  %321 = vst [vmem:[%s299 + $0x28] sm:$0xf] %v320
                  %v322 = vld [vmem:[%s298 + $0x84] sm:$0xf]
                  %323 = vst [vmem:[%s299 + $0x2c] sm:$0xf] %v322
                  %v324 = vld [vmem:[%s298 + $0x90] sm:$0xf]
                  %325 = vst [vmem:[%s299 + $0x30] sm:$0xf] %v324
                  %v326 = vld [vmem:[%s298 + $0x9c] sm:$0xf]
                  %327 = vst [vmem:[%s299 + $0x34] sm:$0xf] %v326
                  %v328 = vld [vmem:[%s298 + $0xa8] sm:$0xf]
                  %329 = vst [vmem:[%s299 + $0x38] sm:$0xf] %v328
                  %v330 = vld [vmem:[%s298 + $0xb4] sm:$0xf]
                  %331 = vst [vmem:[%s299 + $0x3c] sm:$0xf] %v330
                $region67: #{ngcf_forward.5} parent=54 // loop_footer
                  %s297 = sadd.s32 1, %s293
                $region68: #{ngcf_forward.5} parent=54 // loop_footer_branch
                  %292 = sbr.rel target = $region64
                $region69: #{ngcf_forward.5} parent=54 // loop_exit
                  _
              $region55: #{ngcf_forward.5} parent=39 // pred_fallthru
                _
            $region40: #{ngcf_forward.5} parent=35 // pred_fallthru
              _
            // Predicated region
            $region41: #{ngcf_forward.5} parent=35 // pred_check
              _
            $region42: #{ngcf_forward.5} parent=35 // pred_check_branch
              %239 = sbr.rel (0) target = $region44
            $region43: #{ngcf_forward.5} parent=35 // pred_region
              loop: start=0, step=1, limit=1
              $region45: #{ngcf_forward.5} parent=43 // loop_pre_header
                _
              $region46: #{ngcf_forward.5} parent=43 // loop_header
                %s242 = sphi 0, %s246
                %p243 = scmp.ge.s32.totalorder %s242, 1
                %s247 = sphi %s233, %s233
                %s248 = sphi %s228, %s228
              $region47: #{ngcf_forward.5} parent=43 // loop_header_branch
                %245 = sbr.rel (%p243) target = $region51
              $region48: #{ngcf_forward.5} parent=43 // loop_body
                %v249 = vld [vmem:[%s247] sm:$0xf]
                %250 = vst [vmem:[%s248] sm:$0xf] %v249
                %v251 = vld [vmem:[%s247 + $0xc] sm:$0xf]
                %252 = vst [vmem:[%s248 + $0x4] sm:$0xf] %v251
                %v253 = vld [vmem:[%s247 + $0x18] sm:$0xf]
                %254 = vst [vmem:[%s248 + $0x8] sm:$0xf] %v253
                %v255 = vld [vmem:[%s247 + $0x24] sm:$0xf]
                %256 = vst [vmem:[%s248 + $0xc] sm:$0xf] %v255
                %v257 = vld [vmem:[%s247 + $0x30] sm:$0xf]
                %258 = vst [vmem:[%s248 + $0x10] sm:$0xf] %v257
                %v259 = vld [vmem:[%s247 + $0x3c] sm:$0xf]
                %260 = vst [vmem:[%s248 + $0x14] sm:$0xf] %v259
                %v261 = vld [vmem:[%s247 + $0x48] sm:$0xf]
                %262 = vst [vmem:[%s248 + $0x18] sm:$0xf] %v261
                %v263 = vld [vmem:[%s247 + $0x54] sm:$0xf]
                %264 = vst [vmem:[%s248 + $0x1c] sm:$0xf] %v263
                %v265 = vld [vmem:[%s247 + $0x60] sm:$0xf]
                %266 = vst [vmem:[%s248 + $0x20] sm:$0xf] %v265
                %v267 = vld [vmem:[%s247 + $0x6c] sm:$0xf]
                %268 = vst [vmem:[%s248 + $0x24] sm:$0xf] %v267
                %v269 = vld [vmem:[%s247 + $0x78] sm:$0xf]
                %270 = vst [vmem:[%s248 + $0x28] sm:$0xf] %v269
                %v271 = vld [vmem:[%s247 + $0x84] sm:$0xf]
                %272 = vst [vmem:[%s248 + $0x2c] sm:$0xf] %v271
                %v273 = vld [vmem:[%s247 + $0x90] sm:$0xf]
                %274 = vst [vmem:[%s248 + $0x30] sm:$0xf] %v273
                %v275 = vld [vmem:[%s247 + $0x9c] sm:$0xf]
                %276 = vst [vmem:[%s248 + $0x34] sm:$0xf] %v275
                %v277 = vld [vmem:[%s247 + $0xa8] sm:$0xf]
                %278 = vst [vmem:[%s248 + $0x38] sm:$0xf] %v277
                %v279 = vld [vmem:[%s247 + $0xb4] sm:$0xf]
                %280 = vst [vmem:[%s248 + $0x3c] sm:$0xf] %v279
              $region49: #{ngcf_forward.5} parent=43 // loop_footer
                %s246 = sadd.s32 1, %s242
              $region50: #{ngcf_forward.5} parent=43 // loop_footer_branch
                %241 = sbr.rel target = $region46
              $region51: #{ngcf_forward.5} parent=43 // loop_exit
                _
            $region44: #{ngcf_forward.5} parent=35 // pred_fallthru
              _
          $region36: #{ngcf_forward.5} parent=31 // pred_fallthru
            _
          %332 = vnop
        $region32: #{ngcf_forward.5} parent=27 // pred_fallthru
          _
        // Predicated region
        $region70: #{ngcf_forward.5} parent=27 // pred_check
          %p333 = pneg %p94
        $region71: #{ngcf_forward.5} parent=27 // pred_check_branch
          %335 = sbr.rel (%p333) target = $region73
        $region72: #{ngcf_forward.5} parent=27 // pred_region
          %s336 = smul.u32 16, %s20
          %p337 = scmp.lt.s32.totalorder %s336, 47
          %s338 = scalar_select %p337, %s336, 47
          %s339 = smul.addr %s338, 8
          %s340 = scalar_lea.vmem %s2, %s339
          %s341 = smul.u32 16, %s20
        $region73: #{ngcf_forward.5} parent=27 // pred_fallthru
          _
      $region28: #{ngcf_forward.5} parent=5 // pred_fallthru
        _
      %p342 = scmp.le.s32.totalorder 1, %s13
      %p343 = scmp.lt.s32.totalorder %s13, 7
      %p344 = pnand %p342, %p343
      %p345 = pneg %p344
      // Predicated region
      $region74: #{ngcf_forward.5} parent=5 // pred_check
        _
      $region75: #{ngcf_forward.5} parent=5 // pred_check_branch
        %347 = sbr.rel (%p344) target = $region77
      $region76: #{ngcf_forward.5} parent=5 // pred_region
        %s348 = ssub.s32 %s13, 1
        %s349 = sand.u32 %s40, 1
        %s350 = sand.u32 %s40, 1
        %s351 = smul.addr %s350, 64
        %s352 = scalar_lea.vmem [#allocation3], %s351
        // Predicated region
        $region78: #{ngcf_forward.5} parent=76 // pred_check
          %p353 = pneg %p53
        $region79: #{ngcf_forward.5} parent=76 // pred_check_branch
          %355 = sbr.rel (%p353) target = $region81
        $region80: #{ngcf_forward.5} parent=76 // pred_region
          _
        $region81: #{ngcf_forward.5} parent=76 // pred_fallthru
          _
        %s356 = sand.u32 %s40, 1
        %s357 = sand.u32 %s40, 1
        %s358 = smul.addr %s357, 64
        %s359 = scalar_lea.vmem [#allocation3], %s358
        %p360 = pneg %p53
        %p361 = pneg %p50
        %p362 = pneg %p74
        %p363 = pneg %p71
        %s364 = smul.u32 16, %s22
        %p365 = scmp.lt.s32.totalorder %s364, 47
        %s366 = scalar_select %p365, %s364, 47
        %s367 = smul.addr %s366, 8
        %s368 = scalar_lea.vmem %s2, %s367
        %p369 = pneg %p100
        %p370 = pneg %p97
        %p371 = pneg %p121
        %p372 = pneg %p118
        %p373 = pneg %p142
        %p374 = pneg %p139
        %p375 = pneg %p168
        %p376 = pneg %p165
        %s377 = smul.u32 16, %s22
        %p378 = scmp.lt.s32.totalorder %s377, 47
        %s379 = scalar_select %p378, %s377, 47
        %s380 = smul.addr %s379, 8
        %s381 = scalar_lea.vmem %s5, %s380
        %p382 = pneg %p194
        %p383 = pneg %p191
        %s384 = smul.u32 16, %s22
        %p385 = scmp.lt.s32.totalorder %s384, 47
        %s386 = scalar_select %p385, %s384, 47
        %s387 = smul.addr %s386, 8
        %s388 = scalar_lea.vmem %s6, %s387
        %s389 = smul.u32 16, %s23
        %s390 = smul.u32 16, %s22
        %p391 = scmp.lt.s32.totalorder %s390, 47
        %s392 = scalar_select %p391, %s390, 47
        %s393 = smul.addr %s392, 8
        %s394 = scalar_lea.vmem %s2, %s393
        %s395 = smul.u32 16, %s22
        %s396 = smul.u32 16, %s22
        %p397 = scmp.lt.s32.totalorder %s396, 47
        %s398 = scalar_select %p397, %s396, 47
        %s399 = smul.addr %s398, 8
        %s400 = scalar_lea.vmem %s5, %s399
        %s401 = smul.u32 16, %s22
        %s402 = smul.u32 16, %s22
        %p403 = scmp.lt.s32.totalorder %s402, 47
        %s404 = scalar_select %p403, %s402, 47
        %s405 = smul.addr %s404, 8
        %s406 = scalar_lea.vmem %s6, %s405
        %s407 = smul.u32 16, %s22
        %p409 = scmp.eq.s32.totalorder %s23, 0
        // Predicated region
        $region82: #{ngcf_forward.5} parent=76 // pred_check
          %p410 = pneg %p409
        $region83: #{ngcf_forward.5} parent=76 // pred_check_branch
          %412 = sbr.rel (%p410) target = $region85
        $region84: #{ngcf_forward.5} parent=76 // pred_region
          %vm413 = vcmask 261120
          %414 = vst.msk [vmem:[#allocation2] sm:$0xff] %vm413, 0.0
          %415 = vst.msk [vmem:[#allocation2 + $0x8] sm:$0xff] %vm413, 0.0
          %416 = vst.msk [vmem:[#allocation2 + $0x10] sm:$0xff] %vm413, 0.0
          %417 = vst.msk [vmem:[#allocation2 + $0x18] sm:$0xff] %vm413, 0.0
          %418 = vst.msk [vmem:[#allocation2 + $0x20] sm:$0xff] %vm413, 0.0
          %419 = vst.msk [vmem:[#allocation2 + $0x28] sm:$0xff] %vm413, 0.0
          %420 = vst.msk [vmem:[#allocation2 + $0x30] sm:$0xff] %vm413, 0.0
          %421 = vst.msk [vmem:[#allocation2 + $0x38] sm:$0xff] %vm413, 0.0
          %422 = vst.msk [vmem:[#allocation2 + $0x40] sm:$0xff] %vm413, 0.0
          %423 = vst.msk [vmem:[#allocation2 + $0x48] sm:$0xff] %vm413, 0.0
          %424 = vst.msk [vmem:[#allocation2 + $0x50] sm:$0xff] %vm413, 0.0
          %425 = vst.msk [vmem:[#allocation2 + $0x58] sm:$0xff] %vm413, 0.0
          %426 = vst.msk [vmem:[#allocation2 + $0x60] sm:$0xff] %vm413, 0.0
          %427 = vst.msk [vmem:[#allocation2 + $0x68] sm:$0xff] %vm413, 0.0
          %428 = vst.msk [vmem:[#allocation2 + $0x70] sm:$0xff] %vm413, 0.0
          %429 = vst.msk [vmem:[#allocation2 + $0x78] sm:$0xff] %vm413, 0.0
        $region85: #{ngcf_forward.5} parent=76 // pred_fallthru
          _
        %s430 = smul.u32 %s23, 128
        %s431 = sshra.s32 %s430, 3
        %s432 = sand.u32 %s430, 7
        %s433 = smul.addr %s431, 4
        %s434 = scalar_lea.vmem %s1, %s433
        %v435 = vld [vmem:[%s434] sm:$0xf]
        %v436 = vld [vmem:[%s434 + $0x4] sm:$0xf]
        %v437 = vld [vmem:[%s434 + $0x8] sm:$0xf]
        %v438 = vld [vmem:[%s434 + $0xc] sm:$0xf]
        %v439 = vld [vmem:[%s434 + $0x10] sm:$0xf]
        %v440 = vld [vmem:[%s434 + $0x14] sm:$0xf]
        %v441 = vld [vmem:[%s434 + $0x18] sm:$0xf]
        %v442 = vld [vmem:[%s434 + $0x1c] sm:$0xf]
        %v443 = vld [vmem:[%s434 + $0x20] sm:$0xf]
        %v444 = vld [vmem:[%s434 + $0x24] sm:$0xf]
        %v445 = vld [vmem:[%s434 + $0x28] sm:$0xf]
        %v446 = vld [vmem:[%s434 + $0x2c] sm:$0xf]
        %v447 = vld [vmem:[%s434 + $0x30] sm:$0xf]
        %v448 = vld [vmem:[%s434 + $0x34] sm:$0xf]
        %v449 = vld [vmem:[%s434 + $0x38] sm:$0xf]
        %v450 = vld [vmem:[%s434 + $0x3c] sm:$0xf]
        %v451 = vld [vmem:[%s352] sm:$0xf]
        %v452 = vld [vmem:[%s352 + $0x4] sm:$0xf]
        %v453 = vld [vmem:[%s352 + $0x8] sm:$0xf]
        %v454 = vld [vmem:[%s352 + $0xc] sm:$0xf]
        %v455 = vld [vmem:[%s352 + $0x10] sm:$0xf]
        %v456 = vld [vmem:[%s352 + $0x14] sm:$0xf]
        %v457 = vld [vmem:[%s352 + $0x18] sm:$0xf]
        %v458 = vld [vmem:[%s352 + $0x1c] sm:$0xf]
        %v459 = vld [vmem:[%s352 + $0x20] sm:$0xf]
        %v460 = vld [vmem:[%s352 + $0x24] sm:$0xf]
        %v461 = vld [vmem:[%s352 + $0x28] sm:$0xf]
        %v462 = vld [vmem:[%s352 + $0x2c] sm:$0xf]
        %v463 = vld [vmem:[%s352 + $0x30] sm:$0xf]
        %v464 = vld [vmem:[%s352 + $0x34] sm:$0xf]
        %v465 = vld [vmem:[%s352 + $0x38] sm:$0xf]
        %v466 = vld [vmem:[%s352 + $0x3c] sm:$0xf]
        %v483 = vunpack.c.l.b16 %v451
        %v484 = vunpack.c.l.b16 %v452
        %v485 = vunpack.c.l.b16 %v453
        %v486 = vunpack.c.l.b16 %v454
        %v487 = vunpack.c.l.b16 %v455
        %v488 = vunpack.c.l.b16 %v456
        %v489 = vunpack.c.l.b16 %v457
        %v490 = vunpack.c.l.b16 %v458
        %v491 = vunpack.c.l.b16 %v459
        %v492 = vunpack.c.l.b16 %v460
        %v493 = vunpack.c.l.b16 %v461
        %v494 = vunpack.c.l.b16 %v462
        %v495 = vunpack.c.l.b16 %v463
        %v496 = vunpack.c.l.b16 %v464
        %v497 = vunpack.c.l.b16 %v465
        %v498 = vunpack.c.l.b16 %v466
        %v499 = vpack.c.b16 %v484, %v483
        %v500 = vpack.c.b16 %v486, %v485
        %v501 = vpack.c.b16 %v488, %v487
        %v502 = vpack.c.b16 %v490, %v489
        %v503 = vpack.c.b16 %v492, %v491
        %v504 = vpack.c.b16 %v494, %v493
        %v505 = vpack.c.b16 %v496, %v495
        %v506 = vpack.c.b16 %v498, %v497
        %515 = vxpose.xlu0.c.b16.start [1/8] %v499, 128
        %516 = vxpose.xlu0.c.b16.cont [2/8] %v500, 128
        %517 = vxpose.xlu0.c.b16.cont [3/8] %v501, 128
        %518 = vxpose.xlu0.c.b16.cont [4/8] %v502, 128
        %519 = vxpose.xlu0.c.b16.cont [5/8] %v503, 128
        %520 = vxpose.xlu0.c.b16.cont [6/8] %v504, 128
        %521 = vxpose.xlu0.c.b16.cont [7/8] %v505, 128
        %522 = vxpose.xlu0.c.b16.end [8/8] %v506, 128
        %v523 = vpop.trf.xlu0
        %v524 = vpop.trf.xlu0
        %v525 = vpop.trf.xlu0
        %v526 = vpop.trf.xlu0
        %v527 = vpop.trf.xlu0
        %v528 = vpop.trf.xlu0
        %v529 = vpop.trf.xlu0
        %v530 = vpop.trf.xlu0
        %v547 = vunpack.c.l.b16 %v435
        %v548 = vunpack.c.l.b16 %v436
        %v549 = vunpack.c.l.b16 %v437
        %v550 = vunpack.c.l.b16 %v438
        %v551 = vunpack.c.l.b16 %v439
        %v552 = vunpack.c.l.b16 %v440
        %v553 = vunpack.c.l.b16 %v441
        %v554 = vunpack.c.l.b16 %v442
        %v555 = vunpack.c.l.b16 %v443
        %v556 = vunpack.c.l.b16 %v444
        %v557 = vunpack.c.l.b16 %v445
        %v558 = vunpack.c.l.b16 %v446
        %v559 = vunpack.c.l.b16 %v447
        %v560 = vunpack.c.l.b16 %v448
        %v561 = vunpack.c.l.b16 %v449
        %v562 = vunpack.c.l.b16 %v450
        %v563 = vpack.c.b16 %v548, %v547
        %v564 = vpack.c.b16 %v550, %v549
        %v565 = vpack.c.b16 %v552, %v551
        %v566 = vpack.c.b16 %v554, %v553
        %v567 = vpack.c.b16 %v556, %v555
        %v568 = vpack.c.b16 %v558, %v557
        %v569 = vpack.c.b16 %v560, %v559
        %v570 = vpack.c.b16 %v562, %v561
        %579 = vmatprep.subr.bf16.mxu0 0
        %580 = vmatpush1.bf16.msra.mxu0 %v563
        %581 = vmatprep.subr.bf16.mxu0 0
        %582 = vmatpush1.bf16.msra.mxu0 %v564
        %583 = vmatprep.subr.bf16.mxu0 0
        %584 = vmatpush1.bf16.msra.mxu0 %v565
        %585 = vmatprep.subr.bf16.mxu0 0
        %586 = vmatpush1.bf16.msra.mxu0 %v566
        %587 = vmatprep.subr.bf16.mxu0 0
        %588 = vmatpush1.bf16.msra.mxu0 %v567
        %589 = vmatprep.subr.bf16.mxu0 0
        %590 = vmatpush1.bf16.msra.mxu0 %v568
        %591 = vmatprep.subr.bf16.mxu0 0
        %592 = vmatpush1.bf16.msra.mxu0 %v569
        %593 = vmatprep.subr.bf16.mxu0 0
        %594 = vmatpush1.bf16.msra.mxu0 %v570
        %595 = vmatprep.subr.bf16.mxu0 0
        %596 = vmatpush1.bf16.msra.mxu0 0
        %597 = vmatprep.subr.bf16.mxu0 0
        %598 = vmatpush1.bf16.msra.mxu0 0
        %599 = vmatprep.subr.bf16.mxu0 0
        %600 = vmatpush1.bf16.msra.mxu0 0
        %601 = vmatprep.subr.bf16.mxu0 0
        %602 = vmatpush1.bf16.msra.mxu0 0
        %603 = vmatprep.subr.bf16.mxu0 0
        %604 = vmatpush1.bf16.msra.mxu0 0
        %605 = vmatprep.subr.bf16.mxu0 0
        %606 = vmatpush1.bf16.msra.mxu0 0
        %607 = vmatprep.subr.bf16.mxu0 0
        %608 = vmatpush1.bf16.msra.mxu0 0
        %609 = vmatprep.subr.bf16.mxu0 0
        %610 = vmatpush1.bf16.msra.mxu0 0
        %611 = vmatprep.mubr.bf16.mxu0 0
        %612 = vmatmul.mubr.bf16.gmra.mrb[0].mxu0 %v523
        %v613 = vpop.f32.mrb[0].mxu0
        %v614 = vadd.f32 0.0, %v613
        %v615 = vpop.f32.mrb[0].mxu0
        %v616 = vpop.f32.mrb[0].mxu0
        %v617 = vadd.f32 0.0, %v616
        %v618 = vpop.f32.mrb[0].mxu0
        %619 = vmatprep.mubr.bf16.mxu0 0
        %620 = vmatmul.mubr.bf16.gmra.mrb[0].mxu0 %v524
        %v621 = vpop.f32.mrb[0].mxu0
        %v622 = vadd.f32 0.0, %v621
        %v623 = vpop.f32.mrb[0].mxu0
        %v624 = vpop.f32.mrb[0].mxu0
        %v625 = vadd.f32 0.0, %v624
        %v626 = vpop.f32.mrb[0].mxu0
        %627 = vmatprep.mubr.bf16.mxu0 0
        %628 = vmatmul.mubr.bf16.gmra.mrb[0].mxu0 %v525
        %v629 = vpop.f32.mrb[0].mxu0
        %v630 = vadd.f32 0.0, %v629
        %v631 = vpop.f32.mrb[0].mxu0
        %v632 = vpop.f32.mrb[0].mxu0
        %v633 = vadd.f32 0.0, %v632
        %v634 = vpop.f32.mrb[0].mxu0
        %635 = vmatprep.mubr.bf16.mxu0 0
        %636 = vmatmul.mubr.bf16.gmra.mrb[0].mxu0 %v526
        %v637 = vpop.f32.mrb[0].mxu0
        %v638 = vadd.f32 0.0, %v637
        %v639 = vpop.f32.mrb[0].mxu0
        %v640 = vpop.f32.mrb[0].mxu0
        %v641 = vadd.f32 0.0, %v640
        %v642 = vpop.f32.mrb[0].mxu0
        %643 = vmatprep.mubr.bf16.mxu0 0
        %644 = vmatmul.mubr.bf16.gmra.mrb[0].mxu0 %v527
        %v645 = vpop.f32.mrb[0].mxu0
        %v646 = vadd.f32 0.0, %v645
        %v647 = vpop.f32.mrb[0].mxu0
        %v648 = vpop.f32.mrb[0].mxu0
        %v649 = vadd.f32 0.0, %v648
        %v650 = vpop.f32.mrb[0].mxu0
        %651 = vmatprep.mubr.bf16.mxu0 0
        %652 = vmatmul.mubr.bf16.gmra.mrb[0].mxu0 %v528
        %v653 = vpop.f32.mrb[0].mxu0
        %v654 = vadd.f32 0.0, %v653
        %v655 = vpop.f32.mrb[0].mxu0
        %v656 = vpop.f32.mrb[0].mxu0
        %v657 = vadd.f32 0.0, %v656
        %v658 = vpop.f32.mrb[0].mxu0
        %659 = vmatprep.mubr.bf16.mxu0 0
        %660 = vmatmul.mubr.bf16.gmra.mrb[0].mxu0 %v529
        %v661 = vpop.f32.mrb[0].mxu0
        %v662 = vadd.f32 0.0, %v661
        %v663 = vpop.f32.mrb[0].mxu0
        %v664 = vpop.f32.mrb[0].mxu0
        %v665 = vadd.f32 0.0, %v664
        %v666 = vpop.f32.mrb[0].mxu0
        %667 = vmatprep.mubr.bf16.mxu0 0
        %668 = vmatmul.mubr.bf16.gmra.mrb[0].mxu0 %v530
        %v669 = vpop.f32.mrb[0].mxu0
        %v670 = vadd.f32 0.0, %v669
        %v671 = vpop.f32.mrb[0].mxu0
        %v672 = vpop.f32.mrb[0].mxu0
        %v673 = vadd.f32 0.0, %v672
        %v674 = vpop.f32.mrb[0].mxu0
        %675 = vdwg.mxu0
        %v676 = vld [vmem:[#allocation2] sm:$0xff]
        %v677 = vld [vmem:[#allocation2 + $0x8] sm:$0xff]
        %v678 = vld [vmem:[#allocation2 + $0x10] sm:$0xff]
        %v679 = vld [vmem:[#allocation2 + $0x18] sm:$0xff]
        %v680 = vld [vmem:[#allocation2 + $0x20] sm:$0xff]
        %v681 = vld [vmem:[#allocation2 + $0x28] sm:$0xff]
        %v682 = vld [vmem:[#allocation2 + $0x30] sm:$0xff]
        %v683 = vld [vmem:[#allocation2 + $0x38] sm:$0xff]
        %v684 = vld [vmem:[#allocation2 + $0x40] sm:$0xff]
        %v685 = vld [vmem:[#allocation2 + $0x48] sm:$0xff]
        %v686 = vld [vmem:[#allocation2 + $0x50] sm:$0xff]
        %v687 = vld [vmem:[#allocation2 + $0x58] sm:$0xff]
        %v688 = vld [vmem:[#allocation2 + $0x60] sm:$0xff]
        %v689 = vld [vmem:[#allocation2 + $0x68] sm:$0xff]
        %v690 = vld [vmem:[#allocation2 + $0x70] sm:$0xff]
        %v691 = vld [vmem:[#allocation2 + $0x78] sm:$0xff]
        %v692 = vadd.f32 %v676, %v614
        %v693 = vadd.f32 %v677, %v617
        %v694 = vadd.f32 %v678, %v622
        %v695 = vadd.f32 %v679, %v625
        %v696 = vadd.f32 %v680, %v630
        %v697 = vadd.f32 %v681, %v633
        %v698 = vadd.f32 %v682, %v638
        %v699 = vadd.f32 %v683, %v641
        %v700 = vadd.f32 %v684, %v646
        %v701 = vadd.f32 %v685, %v649
        %v702 = vadd.f32 %v686, %v654
        %v703 = vadd.f32 %v687, %v657
        %v704 = vadd.f32 %v688, %v662
        %v705 = vadd.f32 %v689, %v665
        %v706 = vadd.f32 %v690, %v670
        %v707 = vadd.f32 %v691, %v673
        %vm708 = vcmask 261120
        %709 = vst.msk [vmem:[#allocation2] sm:$0xff] %vm708, %v692
        %710 = vst.msk [vmem:[#allocation2 + $0x8] sm:$0xff] %vm708, %v693
        %711 = vst.msk [vmem:[#allocation2 + $0x10] sm:$0xff] %vm708, %v694
        %712 = vst.msk [vmem:[#allocation2 + $0x18] sm:$0xff] %vm708, %v695
        %713 = vst.msk [vmem:[#allocation2 + $0x20] sm:$0xff] %vm708, %v696
        %714 = vst.msk [vmem:[#allocation2 + $0x28] sm:$0xff] %vm708, %v697
        %715 = vst.msk [vmem:[#allocation2 + $0x30] sm:$0xff] %vm708, %v698
        %716 = vst.msk [vmem:[#allocation2 + $0x38] sm:$0xff] %vm708, %v699
        %717 = vst.msk [vmem:[#allocation2 + $0x40] sm:$0xff] %vm708, %v700
        %718 = vst.msk [vmem:[#allocation2 + $0x48] sm:$0xff] %vm708, %v701
        %719 = vst.msk [vmem:[#allocation2 + $0x50] sm:$0xff] %vm708, %v702
        %720 = vst.msk [vmem:[#allocation2 + $0x58] sm:$0xff] %vm708, %v703
        %721 = vst.msk [vmem:[#allocation2 + $0x60] sm:$0xff] %vm708, %v704
        %722 = vst.msk [vmem:[#allocation2 + $0x68] sm:$0xff] %vm708, %v705
        %723 = vst.msk [vmem:[#allocation2 + $0x70] sm:$0xff] %vm708, %v706
        %724 = vst.msk [vmem:[#allocation2 + $0x78] sm:$0xff] %vm708, %v707
        %p725 = scmp.eq.s32.totalorder %s23, 1
        // Predicated region
        $region86: #{ngcf_forward.5} parent=76 // pred_check
          %p726 = pneg %p725
        $region87: #{ngcf_forward.5} parent=76 // pred_check_branch
          %728 = sbr.rel (%p726) target = $region89
        $region88: #{ngcf_forward.5} parent=76 // pred_region
          %v729 = vld [vmem:[#allocation2] sm:$0xff]
          %v730 = vld [vmem:[#allocation2 + $0x8] sm:$0xff]
          %v731 = vld [vmem:[#allocation2 + $0x10] sm:$0xff]
          %v732 = vld [vmem:[#allocation2 + $0x18] sm:$0xff]
          %v733 = vld [vmem:[#allocation2 + $0x20] sm:$0xff]
          %v734 = vld [vmem:[#allocation2 + $0x28] sm:$0xff]
          %v735 = vld [vmem:[#allocation2 + $0x30] sm:$0xff]
          %v736 = vld [vmem:[#allocation2 + $0x38] sm:$0xff]
          %v737 = vld [vmem:[#allocation2 + $0x40] sm:$0xff]
          %v738 = vld [vmem:[#allocation2 + $0x48] sm:$0xff]
          %v739 = vld [vmem:[#allocation2 + $0x50] sm:$0xff]
          %v740 = vld [vmem:[#allocation2 + $0x58] sm:$0xff]
          %v741 = vld [vmem:[#allocation2 + $0x60] sm:$0xff]
          %v742 = vld [vmem:[#allocation2 + $0x68] sm:$0xff]
          %v743 = vld [vmem:[#allocation2 + $0x70] sm:$0xff]
          %v744 = vld [vmem:[#allocation2 + $0x78] sm:$0xff]
          %v745 = vld [vmem:[%s394] sm:$0xff]
          %v746 = vld [vmem:[%s394 + $0x8] sm:$0xff]
          %v747 = vld [vmem:[%s394 + $0x10] sm:$0xff]
          %v748 = vld [vmem:[%s394 + $0x18] sm:$0xff]
          %v749 = vld [vmem:[%s394 + $0x20] sm:$0xff]
          %v750 = vld [vmem:[%s394 + $0x28] sm:$0xff]
          %v751 = vld [vmem:[%s394 + $0x30] sm:$0xff]
          %v752 = vld [vmem:[%s394 + $0x38] sm:$0xff]
          %v753 = vld [vmem:[%s394 + $0x40] sm:$0xff]
          %v754 = vld [vmem:[%s394 + $0x48] sm:$0xff]
          %v755 = vld [vmem:[%s394 + $0x50] sm:$0xff]
          %v756 = vld [vmem:[%s394 + $0x58] sm:$0xff]
          %v757 = vld [vmem:[%s394 + $0x60] sm:$0xff]
          %v758 = vld [vmem:[%s394 + $0x68] sm:$0xff]
          %v759 = vld [vmem:[%s394 + $0x70] sm:$0xff]
          %v760 = vld [vmem:[%s394 + $0x78] sm:$0xff]
          %v761 = vmul.f32 %v745, %v729
          %v762 = vmul.f32 %v746, %v730
          %v763 = vmul.f32 %v747, %v731
          %v764 = vmul.f32 %v748, %v732
          %v765 = vmul.f32 %v749, %v733
          %v766 = vmul.f32 %v750, %v734
          %v767 = vmul.f32 %v751, %v735
          %v768 = vmul.f32 %v752, %v736
          %v769 = vmul.f32 %v753, %v737
          %v770 = vmul.f32 %v754, %v738
          %v771 = vmul.f32 %v755, %v739
          %v772 = vmul.f32 %v756, %v740
          %v773 = vmul.f32 %v757, %v741
          %v774 = vmul.f32 %v758, %v742
          %v775 = vmul.f32 %v759, %v743
          %v776 = vmul.f32 %v760, %v744
          %793 = vrot.lane.b32.xlu0 %v761, 32
          %v794 = vpop.permute.xlu0 %793
          %795 = vrot.lane.b32.xlu0 %v762, 32
          %v796 = vpop.permute.xlu0 %795
          %797 = vrot.lane.b32.xlu0 %v763, 32
          %v798 = vpop.permute.xlu0 %797
          %799 = vrot.lane.b32.xlu0 %v764, 32
          %v800 = vpop.permute.xlu0 %799
          %801 = vrot.lane.b32.xlu0 %v765, 32
          %v802 = vpop.permute.xlu0 %801
          %803 = vrot.lane.b32.xlu0 %v766, 32
          %v804 = vpop.permute.xlu0 %803
          %805 = vrot.lane.b32.xlu0 %v767, 32
          %v806 = vpop.permute.xlu0 %805
          %807 = vrot.lane.b32.xlu0 %v768, 32
          %v808 = vpop.permute.xlu0 %807
          %809 = vrot.lane.b32.xlu0 %v769, 32
          %v810 = vpop.permute.xlu0 %809
          %811 = vrot.lane.b32.xlu0 %v770, 32
          %v812 = vpop.permute.xlu0 %811
          %813 = vrot.lane.b32.xlu0 %v771, 32
          %v814 = vpop.permute.xlu0 %813
          %815 = vrot.lane.b32.xlu0 %v772, 32
          %v816 = vpop.permute.xlu0 %815
          %817 = vrot.lane.b32.xlu0 %v773, 32
          %v818 = vpop.permute.xlu0 %817
          %819 = vrot.lane.b32.xlu0 %v774, 32
          %v820 = vpop.permute.xlu0 %819
          %821 = vrot.lane.b32.xlu0 %v775, 32
          %v822 = vpop.permute.xlu0 %821
          %823 = vrot.lane.b32.xlu0 %v776, 32
          %v824 = vpop.permute.xlu0 %823
          %v841 = vsel %vm708, %v729, %v794
          %v842 = vsel %vm708, %v730, %v796
          %v843 = vsel %vm708, %v731, %v798
          %v844 = vsel %vm708, %v732, %v800
          %v845 = vsel %vm708, %v733, %v802
          %v846 = vsel %vm708, %v734, %v804
          %v847 = vsel %vm708, %v735, %v806
          %v848 = vsel %vm708, %v736, %v808
          %v849 = vsel %vm708, %v737, %v810
          %v850 = vsel %vm708, %v738, %v812
          %v851 = vsel %vm708, %v739, %v814
          %v852 = vsel %vm708, %v740, %v816
          %v853 = vsel %vm708, %v741, %v818
          %v854 = vsel %vm708, %v742, %v820
          %v855 = vsel %vm708, %v743, %v822
          %v856 = vsel %vm708, %v744, %v824
          %v857 = vld [vmem:[%s3] sm:$0xff]
          %v858 = vld [vmem:[%s3 + $0x8] sm:$0xff]
          %v859 = vld [vmem:[%s3 + $0x10] sm:$0xff]
          %v860 = vld [vmem:[%s3 + $0x18] sm:$0xff]
          %v861 = vld [vmem:[%s3 + $0x20] sm:$0xff]
          %v862 = vld [vmem:[%s3 + $0x28] sm:$0xff]
          %v863 = vld [vmem:[%s3 + $0x30] sm:$0xff]
          %v864 = vld [vmem:[%s3 + $0x38] sm:$0xff]
          %v865 = vld [vmem:[%s4] sm:$0x1]
          %v867 = vlaneseq
          %v868 = vshrl.u32 %v867, 7
          %v869 = vsub.s32 0, %v868
          %v870 = vrot.slane %v865, %v869
          %vm872 = vcmask 523264
          %v874 = vsel %vm872, %v841, 0
          %v877 = vsel %vm872, %v842, 0
          %v880 = vsel %vm872, %v843, 0
          %v883 = vsel %vm872, %v844, 0
          %v886 = vsel %vm872, %v845, 0
          %v889 = vsel %vm872, %v846, 0
          %v892 = vsel %vm872, %v847, 0
          %v895 = vsel %vm872, %v848, 0
          %v898 = vsel %vm872, %v849, 0
          %v901 = vsel %vm872, %v850, 0
          %v904 = vsel %vm872, %v851, 0
          %v907 = vsel %vm872, %v852, 0
          %v910 = vsel %vm872, %v853, 0
          %v913 = vsel %vm872, %v854, 0
          %v916 = vsel %vm872, %v855, 0
          %v919 = vsel %vm872, %v856, 0
          %921 = vmatprep.subr.mxu0 0.0
          %922 = vmatpush1.msra.mxu0 %v857
          %923 = vmatprep.subr.mxu0 0.0
          %924 = vmatpush1.msra.mxu0 %v858
          %925 = vmatprep.subr.mxu0 0.0
          %926 = vmatpush1.msra.mxu0 %v859
          %927 = vmatprep.subr.mxu0 0.0
          %928 = vmatpush1.msra.mxu0 %v860
          %929 = vmatprep.subr.mxu0 0.0
          %930 = vmatpush1.msra.mxu0 %v861
          %931 = vmatprep.subr.mxu0 0.0
          %932 = vmatpush1.msra.mxu0 %v862
          %933 = vmatprep.subr.mxu0 0.0
          %934 = vmatpush1.msra.mxu0 %v863
          %935 = vmatprep.subr.mxu0 0.0
          %936 = vmatpush1.msra.mxu0 %v864
          %937 = vmatprep.subr.mxu0 0.0
          %938 = vmatpush1.msra.mxu0 0.0
          %939 = vmatprep.subr.mxu0 0.0
          %940 = vmatpush1.msra.mxu0 0.0
          %941 = vmatprep.subr.mxu0 0.0
          %942 = vmatpush1.msra.mxu0 0.0
          %943 = vmatprep.subr.mxu0 0.0
          %944 = vmatpush1.msra.mxu0 0.0
          %945 = vmatprep.subr.mxu0 0.0
          %946 = vmatpush1.msra.mxu0 0.0
          %947 = vmatprep.subr.mxu0 0.0
          %948 = vmatpush1.msra.mxu0 0.0
          %949 = vmatprep.subr.mxu0 0.0
          %950 = vmatpush1.msra.mxu0 0.0
          %951 = vmatprep.subr.mxu0 0.0
          %952 = vmatpush1.msra.mxu0 0.0
          %953 = vmatprep.subr.mxu0 0.0
          %954 = vmatpush1.msra.mxu0 0.0
          %955 = vmatprep.subr.mxu0 0.0
          %956 = vmatpush1.msra.mxu0 0.0
          %957 = vmatprep.subr.mxu0 0.0
          %958 = vmatpush1.msra.mxu0 0.0
          %959 = vmatprep.subr.mxu0 0.0
          %960 = vmatpush1.msra.mxu0 0.0
          %961 = vmatprep.subr.mxu0 0.0
          %962 = vmatpush1.msra.mxu0 0.0
          %963 = vmatprep.subr.mxu0 0.0
          %964 = vmatpush1.msra.mxu0 0.0
          %965 = vmatprep.subr.mxu0 0.0
          %966 = vmatpush1.msra.mxu0 0.0
          %967 = vmatprep.subr.mxu0 0.0
          %968 = vmatpush1.msra.mxu0 0.0
          %969 = vmatprep.subr.mxu0 0.0
          %970 = vmatpush1.msra.mxu0 0.0
          %971 = vmatprep.subr.mxu0 0.0
          %972 = vmatpush1.msra.mxu0 0.0
          %973 = vmatprep.subr.mxu0 0.0
          %974 = vmatpush1.msra.mxu0 0.0
          %975 = vmatprep.subr.mxu0 0.0
          %976 = vmatpush1.msra.mxu0 0.0
          %977 = vmatprep.subr.mxu0 0.0
          %978 = vmatpush1.msra.mxu0 0.0
          %979 = vmatprep.subr.mxu0 0.0
          %980 = vmatpush1.msra.mxu0 0.0
          %981 = vmatprep.subr.mxu0 0.0
          %982 = vmatpush1.msra.mxu0 0.0
          %983 = vmatprep.subr.mxu0 0.0
          %984 = vmatpush1.msra.mxu0 0.0
          %985 = vmatprep.mubr.f32.mxu0 0.0
          %986 = vmatmul.mubr.f32.gmra.mrb[0].mxu0 %v874
          %v987 = vpop.f32.mrb[0].mxu0
          %v988 = vadd.f32 %v870, %v987
          %v989 = vpop.f32.mrb[0].mxu0
          %990 = vmatprep.mubr.f32.mxu0 0.0
          %991 = vmatmul.mubr.f32.gmra.mrb[0].mxu0 %v877
          %v992 = vpop.f32.mrb[0].mxu0
          %v993 = vadd.f32 %v870, %v992
          %v994 = vpop.f32.mrb[0].mxu0
          %995 = vmatprep.mubr.f32.mxu0 0.0
          %996 = vmatmul.mubr.f32.gmra.mrb[0].mxu0 %v880
          %v997 = vpop.f32.mrb[0].mxu0
          %v998 = vadd.f32 %v870, %v997
          %v999 = vpop.f32.mrb[0].mxu0
          %1000 = vmatprep.mubr.f32.mxu0 0.0
          %1001 = vmatmul.mubr.f32.gmra.mrb[0].mxu0 %v883
          %v1002 = vpop.f32.mrb[0].mxu0
          %v1003 = vadd.f32 %v870, %v1002
          %v1004 = vpop.f32.mrb[0].mxu0
          %1005 = vmatprep.mubr.f32.mxu0 0.0
          %1006 = vmatmul.mubr.f32.gmra.mrb[0].mxu0 %v886
          %v1007 = vpop.f32.mrb[0].mxu0
          %v1008 = vadd.f32 %v870, %v1007
          %v1009 = vpop.f32.mrb[0].mxu0
          %1010 = vmatprep.mubr.f32.mxu0 0.0
          %1011 = vmatmul.mubr.f32.gmra.mrb[0].mxu0 %v889
          %v1012 = vpop.f32.mrb[0].mxu0
          %v1013 = vadd.f32 %v870, %v1012
          %v1014 = vpop.f32.mrb[0].mxu0
          %1015 = vmatprep.mubr.f32.mxu0 0.0
          %1016 = vmatmul.mubr.f32.gmra.mrb[0].mxu0 %v892
          %v1017 = vpop.f32.mrb[0].mxu0
          %v1018 = vadd.f32 %v870, %v1017
          %v1019 = vpop.f32.mrb[0].mxu0
          %1020 = vmatprep.mubr.f32.mxu0 0.0
          %1021 = vmatmul.mubr.f32.gmra.mrb[0].mxu0 %v895
          %v1022 = vpop.f32.mrb[0].mxu0
          %v1023 = vadd.f32 %v870, %v1022
          %v1024 = vpop.f32.mrb[0].mxu0
          %1025 = vmatprep.mubr.f32.mxu0 0.0
          %1026 = vmatmul.mubr.f32.gmra.mrb[0].mxu0 %v898
          %v1027 = vpop.f32.mrb[0].mxu0
          %v1028 = vadd.f32 %v870, %v1027
          %v1029 = vpop.f32.mrb[0].mxu0
          %1030 = vmatprep.mubr.f32.mxu0 0.0
          %1031 = vmatmul.mubr.f32.gmra.mrb[0].mxu0 %v901
          %v1032 = vpop.f32.mrb[0].mxu0
          %v1033 = vadd.f32 %v870, %v1032
          %v1034 = vpop.f32.mrb[0].mxu0
          %1035 = vmatprep.mubr.f32.mxu0 0.0
          %1036 = vmatmul.mubr.f32.gmra.mrb[0].mxu0 %v904
          %v1037 = vpop.f32.mrb[0].mxu0
          %v1038 = vadd.f32 %v870, %v1037
          %v1039 = vpop.f32.mrb[0].mxu0
          %1040 = vmatprep.mubr.f32.mxu0 0.0
          %1041 = vmatmul.mubr.f32.gmra.mrb[0].mxu0 %v907
          %v1042 = vpop.f32.mrb[0].mxu0
          %v1043 = vadd.f32 %v870, %v1042
          %v1044 = vpop.f32.mrb[0].mxu0
          %1045 = vmatprep.mubr.f32.mxu0 0.0
          %1046 = vmatmul.mubr.f32.gmra.mrb[0].mxu0 %v910
          %v1047 = vpop.f32.mrb[0].mxu0
          %v1048 = vadd.f32 %v870, %v1047
          %v1049 = vpop.f32.mrb[0].mxu0
          %1050 = vmatprep.mubr.f32.mxu0 0.0
          %1051 = vmatmul.mubr.f32.gmra.mrb[0].mxu0 %v913
          %v1052 = vpop.f32.mrb[0].mxu0
          %v1053 = vadd.f32 %v870, %v1052
          %v1054 = vpop.f32.mrb[0].mxu0
          %1055 = vmatprep.mubr.f32.mxu0 0.0
          %1056 = vmatmul.mubr.f32.gmra.mrb[0].mxu0 %v916
          %v1057 = vpop.f32.mrb[0].mxu0
          %v1058 = vadd.f32 %v870, %v1057
          %v1059 = vpop.f32.mrb[0].mxu0
          %1060 = vmatprep.mubr.f32.mxu0 0.0
          %1061 = vmatmul.mubr.f32.gmra.mrb[0].mxu0 %v919
          %v1062 = vpop.f32.mrb[0].mxu0
          %v1063 = vadd.f32 %v870, %v1062
          %v1064 = vpop.f32.mrb[0].mxu0
          %1065 = vdwg.mxu0
          %vm1066 = vcmp.ge.f32.partialorder %v988, 0.0
          %vm1067 = vcmp.ge.f32.partialorder %v993, 0.0
          %vm1068 = vcmp.ge.f32.partialorder %v998, 0.0
          %vm1069 = vcmp.ge.f32.partialorder %v1003, 0.0
          %vm1070 = vcmp.ge.f32.partialorder %v1008, 0.0
          %vm1071 = vcmp.ge.f32.partialorder %v1013, 0.0
          %vm1072 = vcmp.ge.f32.partialorder %v1018, 0.0
          %vm1073 = vcmp.ge.f32.partialorder %v1023, 0.0
          %vm1074 = vcmp.ge.f32.partialorder %v1028, 0.0
          %vm1075 = vcmp.ge.f32.partialorder %v1033, 0.0
          %vm1076 = vcmp.ge.f32.partialorder %v1038, 0.0
          %vm1077 = vcmp.ge.f32.partialorder %v1043, 0.0
          %vm1078 = vcmp.ge.f32.partialorder %v1048, 0.0
          %vm1079 = vcmp.ge.f32.partialorder %v1053, 0.0
          %vm1080 = vcmp.ge.f32.partialorder %v1058, 0.0
          %vm1081 = vcmp.ge.f32.partialorder %v1063, 0.0
          %v1082 = vmul.f32 %v988, 0.2
          %v1083 = vmul.f32 %v993, 0.2
          %v1084 = vmul.f32 %v998, 0.2
          %v1085 = vmul.f32 %v1003, 0.2
          %v1086 = vmul.f32 %v1008, 0.2
          %v1087 = vmul.f32 %v1013, 0.2
          %v1088 = vmul.f32 %v1018, 0.2
          %v1089 = vmul.f32 %v1023, 0.2
          %v1090 = vmul.f32 %v1028, 0.2
          %v1091 = vmul.f32 %v1033, 0.2
          %v1092 = vmul.f32 %v1038, 0.2
          %v1093 = vmul.f32 %v1043, 0.2
          %v1094 = vmul.f32 %v1048, 0.2
          %v1095 = vmul.f32 %v1053, 0.2
          %v1096 = vmul.f32 %v1058, 0.2
          %v1097 = vmul.f32 %v1063, 0.2
          %v1098 = vsel %vm1066, %v988, %v1082
          %v1099 = vsel %vm1067, %v993, %v1083
          %v1100 = vsel %vm1068, %v998, %v1084
          %v1101 = vsel %vm1069, %v1003, %v1085
          %v1102 = vsel %vm1070, %v1008, %v1086
          %v1103 = vsel %vm1071, %v1013, %v1087
          %v1104 = vsel %vm1072, %v1018, %v1088
          %v1105 = vsel %vm1073, %v1023, %v1089
          %v1106 = vsel %vm1074, %v1028, %v1090
          %v1107 = vsel %vm1075, %v1033, %v1091
          %v1108 = vsel %vm1076, %v1038, %v1092
          %v1109 = vsel %vm1077, %v1043, %v1093
          %v1110 = vsel %vm1078, %v1048, %v1094
          %v1111 = vsel %vm1079, %v1053, %v1095
          %v1112 = vsel %vm1080, %v1058, %v1096
          %v1113 = vsel %vm1081, %v1063, %v1097
          %v1114 = vmul.f32 %v1098, %v1098
          %v1115 = vmul.f32 %v1099, %v1099
          %v1116 = vmul.f32 %v1100, %v1100
          %v1117 = vmul.f32 %v1101, %v1101
          %v1118 = vmul.f32 %v1102, %v1102
          %v1119 = vmul.f32 %v1103, %v1103
          %v1120 = vmul.f32 %v1104, %v1104
          %v1121 = vmul.f32 %v1105, %v1105
          %v1122 = vmul.f32 %v1106, %v1106
          %v1123 = vmul.f32 %v1107, %v1107
          %v1124 = vmul.f32 %v1108, %v1108
          %v1125 = vmul.f32 %v1109, %v1109
          %v1126 = vmul.f32 %v1110, %v1110
          %v1127 = vmul.f32 %v1111, %v1111
          %v1128 = vmul.f32 %v1112, %v1112
          %v1129 = vmul.f32 %v1113, %v1113
          %v1130 = vsel %vm708, %v1114, 0.0
          %1131 = vadd.xlane.f32.xlu0 %v1130
          %v1132 = vpop.xlane.xlu0 %1131
          %v1133 = vsel %vm708, %v1115, 0.0
          %1134 = vadd.xlane.f32.xlu0 %v1133
          %v1135 = vpop.xlane.xlu0 %1134
          %v1136 = vsel %vm708, %v1116, 0.0
          %1137 = vadd.xlane.f32.xlu0 %v1136
          %v1138 = vpop.xlane.xlu0 %1137
          %v1139 = vsel %vm708, %v1117, 0.0
          %1140 = vadd.xlane.f32.xlu0 %v1139
          %v1141 = vpop.xlane.xlu0 %1140
          %v1142 = vsel %vm708, %v1118, 0.0
          %1143 = vadd.xlane.f32.xlu0 %v1142
          %v1144 = vpop.xlane.xlu0 %1143
          %v1145 = vsel %vm708, %v1119, 0.0
          %1146 = vadd.xlane.f32.xlu0 %v1145
          %v1147 = vpop.xlane.xlu0 %1146
          %v1148 = vsel %vm708, %v1120, 0.0
          %1149 = vadd.xlane.f32.xlu0 %v1148
          %v1150 = vpop.xlane.xlu0 %1149
          %v1151 = vsel %vm708, %v1121, 0.0
          %1152 = vadd.xlane.f32.xlu0 %v1151
          %v1153 = vpop.xlane.xlu0 %1152
          %v1154 = vsel %vm708, %v1122, 0.0
          %1155 = vadd.xlane.f32.xlu0 %v1154
          %v1156 = vpop.xlane.xlu0 %1155
          %v1157 = vsel %vm708, %v1123, 0.0
          %1158 = vadd.xlane.f32.xlu0 %v1157
          %v1159 = vpop.xlane.xlu0 %1158
          %v1160 = vsel %vm708, %v1124, 0.0
          %1161 = vadd.xlane.f32.xlu0 %v1160
          %v1162 = vpop.xlane.xlu0 %1161
          %v1163 = vsel %vm708, %v1125, 0.0
          %1164 = vadd.xlane.f32.xlu0 %v1163
          %v1165 = vpop.xlane.xlu0 %1164
          %v1166 = vsel %vm708, %v1126, 0.0
          %1167 = vadd.xlane.f32.xlu0 %v1166
          %v1168 = vpop.xlane.xlu0 %1167
          %v1169 = vsel %vm708, %v1127, 0.0
          %1170 = vadd.xlane.f32.xlu0 %v1169
          %v1171 = vpop.xlane.xlu0 %1170
          %v1172 = vsel %vm708, %v1128, 0.0
          %1173 = vadd.xlane.f32.xlu0 %v1172
          %v1174 = vpop.xlane.xlu0 %1173
          %v1175 = vsel %vm708, %v1129, 0.0
          %1176 = vadd.xlane.f32.xlu0 %v1175
          %v1177 = vpop.xlane.xlu0 %1176
          %v1178 = vmax.f32 %v1132, 1e-24
          %v1179 = vmax.f32 %v1135, 1e-24
          %v1180 = vmax.f32 %v1138, 1e-24
          %v1181 = vmax.f32 %v1141, 1e-24
          %v1182 = vmax.f32 %v1144, 1e-24
          %v1183 = vmax.f32 %v1147, 1e-24
          %v1184 = vmax.f32 %v1150, 1e-24
          %v1185 = vmax.f32 %v1153, 1e-24
          %v1186 = vmax.f32 %v1156, 1e-24
          %v1187 = vmax.f32 %v1159, 1e-24
          %v1188 = vmax.f32 %v1162, 1e-24
          %v1189 = vmax.f32 %v1165, 1e-24
          %v1190 = vmax.f32 %v1168, 1e-24
          %v1191 = vmax.f32 %v1171, 1e-24
          %v1192 = vmax.f32 %v1174, 1e-24
          %v1193 = vmax.f32 %v1177, 1e-24
          %v1194 = vrsqrt.pop %v1178
          %v1195 = vrsqrt.pop %v1179
          %v1196 = vrsqrt.pop %v1180
          %v1197 = vrsqrt.pop %v1181
          %v1198 = vrsqrt.pop %v1182
          %v1199 = vrsqrt.pop %v1183
          %v1200 = vrsqrt.pop %v1184
          %v1201 = vrsqrt.pop %v1185
          %v1202 = vrsqrt.pop %v1186
          %v1203 = vrsqrt.pop %v1187
          %v1204 = vrsqrt.pop %v1188
          %v1205 = vrsqrt.pop %v1189
          %v1206 = vrsqrt.pop %v1190
          %v1207 = vrsqrt.pop %v1191
          %v1208 = vrsqrt.pop %v1192
          %v1209 = vrsqrt.pop %v1193
          %v1210 = vmul.f32 %v1098, %v1194
          %v1211 = vmul.f32 %v1099, %v1195
          %v1212 = vmul.f32 %v1100, %v1196
          %v1213 = vmul.f32 %v1101, %v1197
          %v1214 = vmul.f32 %v1102, %v1198
          %v1215 = vmul.f32 %v1103, %v1199
          %v1216 = vmul.f32 %v1104, %v1200
          %v1217 = vmul.f32 %v1105, %v1201
          %v1218 = vmul.f32 %v1106, %v1202
          %v1219 = vmul.f32 %v1107, %v1203
          %v1220 = vmul.f32 %v1108, %v1204
          %v1221 = vmul.f32 %v1109, %v1205
          %v1222 = vmul.f32 %v1110, %v1206
          %v1223 = vmul.f32 %v1111, %v1207
          %v1224 = vmul.f32 %v1112, %v1208
          %v1225 = vmul.f32 %v1113, %v1209
          %1226 = vst.msk [vmem:[%s400] sm:$0xff] %vm708, %v1098
          %1227 = vst.msk [vmem:[%s400 + $0x8] sm:$0xff] %vm708, %v1099
          %1228 = vst.msk [vmem:[%s400 + $0x10] sm:$0xff] %vm708, %v1100
          %1229 = vst.msk [vmem:[%s400 + $0x18] sm:$0xff] %vm708, %v1101
          %1230 = vst.msk [vmem:[%s400 + $0x20] sm:$0xff] %vm708, %v1102
          %1231 = vst.msk [vmem:[%s400 + $0x28] sm:$0xff] %vm708, %v1103
          %1232 = vst.msk [vmem:[%s400 + $0x30] sm:$0xff] %vm708, %v1104
          %1233 = vst.msk [vmem:[%s400 + $0x38] sm:$0xff] %vm708, %v1105
          %1234 = vst.msk [vmem:[%s400 + $0x40] sm:$0xff] %vm708, %v1106
          %1235 = vst.msk [vmem:[%s400 + $0x48] sm:$0xff] %vm708, %v1107
          %1236 = vst.msk [vmem:[%s400 + $0x50] sm:$0xff] %vm708, %v1108
          %1237 = vst.msk [vmem:[%s400 + $0x58] sm:$0xff] %vm708, %v1109
          %1238 = vst.msk [vmem:[%s400 + $0x60] sm:$0xff] %vm708, %v1110
          %1239 = vst.msk [vmem:[%s400 + $0x68] sm:$0xff] %vm708, %v1111
          %1240 = vst.msk [vmem:[%s400 + $0x70] sm:$0xff] %vm708, %v1112
          %1241 = vst.msk [vmem:[%s400 + $0x78] sm:$0xff] %vm708, %v1113
          %1242 = vst.msk [vmem:[%s406] sm:$0xff] %vm708, %v1210
          %1243 = vst.msk [vmem:[%s406 + $0x8] sm:$0xff] %vm708, %v1211
          %1244 = vst.msk [vmem:[%s406 + $0x10] sm:$0xff] %vm708, %v1212
          %1245 = vst.msk [vmem:[%s406 + $0x18] sm:$0xff] %vm708, %v1213
          %1246 = vst.msk [vmem:[%s406 + $0x20] sm:$0xff] %vm708, %v1214
          %1247 = vst.msk [vmem:[%s406 + $0x28] sm:$0xff] %vm708, %v1215
          %1248 = vst.msk [vmem:[%s406 + $0x30] sm:$0xff] %vm708, %v1216
          %1249 = vst.msk [vmem:[%s406 + $0x38] sm:$0xff] %vm708, %v1217
          %1250 = vst.msk [vmem:[%s406 + $0x40] sm:$0xff] %vm708, %v1218
          %1251 = vst.msk [vmem:[%s406 + $0x48] sm:$0xff] %vm708, %v1219
          %1252 = vst.msk [vmem:[%s406 + $0x50] sm:$0xff] %vm708, %v1220
          %1253 = vst.msk [vmem:[%s406 + $0x58] sm:$0xff] %vm708, %v1221
          %1254 = vst.msk [vmem:[%s406 + $0x60] sm:$0xff] %vm708, %v1222
          %1255 = vst.msk [vmem:[%s406 + $0x68] sm:$0xff] %vm708, %v1223
          %1256 = vst.msk [vmem:[%s406 + $0x70] sm:$0xff] %vm708, %v1224
          %1257 = vst.msk [vmem:[%s406 + $0x78] sm:$0xff] %vm708, %v1225
        $region89: #{ngcf_forward.5} parent=76 // pred_fallthru
          _
        %s1258 = smul.u32 16, %s22
        %p1259 = scmp.lt.s32.totalorder %s1258, 47
        %s1260 = scalar_select %p1259, %s1258, 47
        %s1261 = smul.addr %s1260, 8
        %s1262 = scalar_lea.vmem %s5, %s1261
        %s1263 = smul.u32 16, %s22
        %p1264 = scmp.lt.s32.totalorder %s1263, 47
        %s1265 = scalar_select %p1264, %s1263, 47
        %s1266 = smul.addr %s1265, 8
        %s1267 = scalar_lea.vmem %s6, %s1266
        // Predicated region
        $region90: #{ngcf_forward.5} parent=76 // pred_check
          %p1268 = pneg %p165
        $region91: #{ngcf_forward.5} parent=76 // pred_check_branch
          %1270 = sbr.rel (%p1268) target = $region93
        $region92: #{ngcf_forward.5} parent=76 // pred_region
          %s1271 = smul.u32 16, %s22
        $region93: #{ngcf_forward.5} parent=76 // pred_fallthru
          _
        // Predicated region
        $region94: #{ngcf_forward.5} parent=76 // pred_check
          %p1272 = pneg %p191
        $region95: #{ngcf_forward.5} parent=76 // pred_check_branch
          %1274 = sbr.rel (%p1272) target = $region97
        $region96: #{ngcf_forward.5} parent=76 // pred_region
          %s1275 = smul.u32 16, %s22
        $region97: #{ngcf_forward.5} parent=76 // pred_fallthru
          _
      $region77: #{ngcf_forward.5} parent=5 // pred_fallthru
        _
      %p1276 = scmp.le.s32.totalorder 2, %s13
      // Predicated region
      $region98: #{ngcf_forward.5} parent=5 // pred_check
        %p1277 = pneg %p1276
      $region99: #{ngcf_forward.5} parent=5 // pred_check_branch
        %1279 = sbr.rel (%p1277) target = $region101
      $region100: #{ngcf_forward.5} parent=5 // pred_region
        %s1280 = ssub.s32 %s13, 2
        // Predicated region
        $region102: #{ngcf_forward.5} parent=100 // pred_check
          %p1281 = pneg %p171
        $region103: #{ngcf_forward.5} parent=100 // pred_check_branch
          %1283 = sbr.rel (%p1281) target = $region105
        $region104: #{ngcf_forward.5} parent=100 // pred_region
          %s1284 = smul.u32 16, %s24
          %p1285 = scmp.lt.s32.totalorder %s1284, 47
          %s1286 = scalar_select %p1285, %s1284, 47
          %s1287 = smul.addr %s1286, 8
          %s1288 = scalar_lea.vmem %s5, %s1287
        $region105: #{ngcf_forward.5} parent=100 // pred_fallthru
          _
        // Predicated region
        $region106: #{ngcf_forward.5} parent=100 // pred_check
          %p1289 = pneg %p197
        $region107: #{ngcf_forward.5} parent=100 // pred_check_branch
          %1291 = sbr.rel (%p1289) target = $region109
        $region108: #{ngcf_forward.5} parent=100 // pred_region
          %s1292 = smul.u32 16, %s24
          %p1293 = scmp.lt.s32.totalorder %s1292, 47
          %s1294 = scalar_select %p1293, %s1292, 47
          %s1295 = smul.addr %s1294, 8
          %s1296 = scalar_lea.vmem %s6, %s1295
        $region109: #{ngcf_forward.5} parent=100 // pred_fallthru
          _
      $region101: #{ngcf_forward.5} parent=5 // pred_fallthru
        _
    $region6: #{ngcf_forward.5} parent=1 // loop_footer
      %s17 = sadd.s32 1, %s13
    $region7: #{ngcf_forward.5} parent=1 // loop_footer_branch
      %12 = sbr.rel target = $region3
    $region8: #{ngcf_forward.5} parent=1 // loop_exit
      _

// kernel: ngcf_forward.6
$region0: #{ngcf_forward.6}
  #allocation0 [shape = 'u32[]', space=smem, size = 0x4, offset = 0x4, fixed_abs, tag = 'smem constant byte address 0x4 - core index']
  #allocation1 [shape = 'u32[144,128]{1,0:T(1,128)}', space=vmem, size = 0x12000, scoped, tag = 'internal scratch']
  #allocation2 [shape = 'f32[128,32]{1,0:T(8,128)}', space=vmem, size = 0x10000, scoped, tag = 'scratch operand']
  %s0 = inlined_call_operand.vmem [shape: bf16[256,384], index: 0, kind: input, shape index: {}]
  %s1 = inlined_call_operand.vmem [shape: bf16[384,32], index: 1, kind: input, shape index: {}]
  %s2 = inlined_call_operand.vmem [shape: f32[256,32], index: 2, kind: input, shape index: {}]
  %s3 = inlined_call_operand.vmem [shape: f32[64,32], index: 3, kind: input, shape index: {}]
  %s4 = inlined_call_operand.vmem [shape: f32[1,32], index: 4, kind: input, shape index: {}]
  %s5 = inlined_call_operand.vmem [shape: f32[256,32], index: 5, kind: output, shape index: {}]
  %s6 = sld [smem:[#allocation0]]
  $region102: #{ngcf_forward.6} parent=0
    _
  %s8 = ssub.s32 1, %s6
  %s9 = scalar_select 0, %s8, %s6
  $region1: #{ngcf_forward.6} parent=0
    #allocation3 [shape = 'u8[65536]{0}', space=vmem, size = 0x10000, scoped, tag = 'input window, operand 0']
    loop: start=0, step=1, limit=8
    $region2: #{ngcf_forward.6} parent=1 // loop_pre_header
      _
    $region3: #{ngcf_forward.6} parent=1 // loop_header
      %s11 = sphi 0, %s15
      %p12 = scmp.ge.s32.totalorder %s11, 8
      %s18 = sphi 0, %s30
      %s19 = sphi 0, %s26
      %s20 = sphi 0, %s18
      %s21 = sphi 0, %s19
      %s22 = sphi 0, %s20
      %s23 = sphi 0, %s21
      %s35 = sphi 0, %s37
      %s38 = sphi 0, %s35
      %s39 = sphi 0, %s38
      %s55 = sphi 0, %s39
      %s59 = sphi 0, %s59
      %s61 = sphi 0, %s59
      %s62 = sphi 0, %s61
      %s76 = sphi 0, %s62
      %s82 = sphi 0, %s84
      %s85 = sphi 0, %s82
      %s86 = sphi 0, %s85
      %s102 = sphi 0, %s86
      %s106 = sphi 0, %s106
      %s108 = sphi 0, %s106
      %s109 = sphi 0, %s108
      %s123 = sphi 0, %s109
      %s127 = sphi 0, %s127
      %s129 = sphi 0, %s127
      %s130 = sphi 0, %s129
      %s144 = sphi 0, %s130
      %s150 = sphi 0, %s152
      %s153 = sphi 0, %s150
      %s154 = sphi 0, %s153
      %s170 = sphi 0, %s154
    $region4: #{ngcf_forward.6} parent=1 // loop_header_branch
      %14 = sbr.rel (%p12) target = $region8
    $region5: #{ngcf_forward.6} parent=1 // loop_body
      %s16 = ssub.s32 %s11, 1
      %s17 = ssub.s32 %s11, 2
      %s24 = sadd.s32 1, %s19
      %p25 = scmp.ge.s32.totalorder %s24, 3
      %s26 = scalar_select %p25, 0, %s24
      %s27 = sadd.s32 1, %s18
      %s28 = scalar_select %p25, %s27, %s18
      %p29 = scmp.ge.s32.totalorder %s28, 2
      %s30 = scalar_select %p29, 0, %s28
      %s31 = ssub.s32 %s18, %s30
      %s32 = ssub.s32 %s19, %s26
      %s33 = sor.u32 %s31, %s32
      %p34 = scmp.eq.s32.totalorder %s33, 0
      %s36 = sadd.s32 %s35, 1
      %s37 = scalar_select %p34, %s35, %s36
      %p40 = pneg %p34
      %p41 = scmp.eq.s32.totalorder %s11, 5
      %p42 = por %p40, %p41
      %p43 = scmp.ne.s32.totalorder %s35, %s38
      %p44 = scmp.eq.s32.totalorder %s11, 0
      %p45 = por %p43, %p44
      %p46 = scmp.ne.s32.totalorder %s35, %s38
      %p47 = scmp.eq.s32.totalorder %s16, 5
      %p48 = por %p46, %p47
      %p49 = scmp.ne.s32.totalorder %s38, %s39
      %p50 = scmp.eq.s32.totalorder %s16, 0
      %p51 = por %p49, %p50
      %p52 = scmp.ne.s32.totalorder %s38, %s39
      %p53 = scmp.eq.s32.totalorder %s17, 5
      %p54 = por %p52, %p53
      %p56 = scmp.ne.s32.totalorder %s39, %s55
      %p57 = scmp.eq.s32.totalorder %s17, 0
      %p58 = por %p56, %p57
      %s60 = sadd.s32 %s59, 1
      %p63 = scmp.eq.s32.totalorder %s11, 5
      %p64 = scmp.ne.s32.totalorder %s59, %s61
      %p65 = scmp.eq.s32.totalorder %s11, 0
      %p66 = por %p64, %p65
      %p67 = scmp.ne.s32.totalorder %s59, %s61
      %p68 = scmp.eq.s32.totalorder %s16, 5
      %p69 = por %p67, %p68
      %p70 = scmp.ne.s32.totalorder %s61, %s62
      %p71 = scmp.eq.s32.totalorder %s16, 0
      %p72 = por %p70, %p71
      %p73 = scmp.ne.s32.totalorder %s61, %s62
      %p74 = scmp.eq.s32.totalorder %s17, 5
      %p75 = por %p73, %p74
      %p77 = scmp.ne.s32.totalorder %s62, %s76
      %p78 = scmp.eq.s32.totalorder %s17, 0
      %p79 = por %p77, %p78
      %s80 = ssub.s32 %s18, %s30
      %p81 = scmp.eq.s32.totalorder %s80, 0
      %s83 = sadd.s32 %s82, 1
      %s84 = scalar_select %p81, %s82, %s83
      %p87 = pneg %p81
      %p88 = scmp.eq.s32.totalorder %s11, 5
      %p89 = por %p87, %p88
      %p90 = scmp.ne.s32.totalorder %s82, %s85
      %p91 = scmp.eq.s32.totalorder %s11, 0
      %p92 = por %p90, %p91
      %p93 = scmp.ne.s32.totalorder %s82, %s85
      %p94 = scmp.eq.s32.totalorder %s16, 5
      %p95 = por %p93, %p94
      %p96 = scmp.ne.s32.totalorder %s85, %s86
      %p97 = scmp.eq.s32.totalorder %s16, 0
      %p98 = por %p96, %p97
      %p99 = scmp.ne.s32.totalorder %s85, %s86
      %p100 = scmp.eq.s32.totalorder %s17, 5
      %p101 = por %p99, %p100
      %p103 = scmp.ne.s32.totalorder %s86, %s102
      %p104 = scmp.eq.s32.totalorder %s17, 0
      %p105 = por %p103, %p104
      %s107 = sadd.s32 %s106, 1
      %p110 = scmp.eq.s32.totalorder %s11, 5
      %p111 = scmp.ne.s32.totalorder %s106, %s108
      %p112 = scmp.eq.s32.totalorder %s11, 0
      %p113 = por %p111, %p112
      %p114 = scmp.ne.s32.totalorder %s106, %s108
      %p115 = scmp.eq.s32.totalorder %s16, 5
      %p116 = por %p114, %p115
      %p117 = scmp.ne.s32.totalorder %s108, %s109
      %p118 = scmp.eq.s32.totalorder %s16, 0
      %p119 = por %p117, %p118
      %p120 = scmp.ne.s32.totalorder %s108, %s109
      %p121 = scmp.eq.s32.totalorder %s17, 5
      %p122 = por %p120, %p121
      %p124 = scmp.ne.s32.totalorder %s109, %s123
      %p125 = scmp.eq.s32.totalorder %s17, 0
      %p126 = por %p124, %p125
      %s128 = sadd.s32 %s127, 1
      %p131 = scmp.eq.s32.totalorder %s11, 5
      %p132 = scmp.ne.s32.totalorder %s127, %s129
      %p133 = scmp.eq.s32.totalorder %s11, 0
      %p134 = por %p132, %p133
      %p135 = scmp.ne.s32.totalorder %s127, %s129
      %p136 = scmp.eq.s32.totalorder %s16, 5
      %p137 = por %p135, %p136
      %p138 = scmp.ne.s32.totalorder %s129, %s130
      %p139 = scmp.eq.s32.totalorder %s16, 0
      %p140 = por %p138, %p139
      %p141 = scmp.ne.s32.totalorder %s129, %s130
      %p142 = scmp.eq.s32.totalorder %s17, 5
      %p143 = por %p141, %p142
      %p145 = scmp.ne.s32.totalorder %s130, %s144
      %p146 = scmp.eq.s32.totalorder %s17, 0
      %p147 = por %p145, %p146
      %s148 = ssub.s32 %s18, %s30
      %p149 = scmp.eq.s32.totalorder %s148, 0
      %s151 = sadd.s32 %s150, 1
      %s152 = scalar_select %p149, %s150, %s151
      %p155 = pneg %p149
      %p156 = scmp.eq.s32.totalorder %s11, 5
      %p157 = por %p155, %p156
      %p158 = scmp.ne.s32.totalorder %s150, %s153
      %p159 = scmp.eq.s32.totalorder %s11, 0
      %p160 = por %p158, %p159
      %p161 = scmp.ne.s32.totalorder %s150, %s153
      %p162 = scmp.eq.s32.totalorder %s16, 5
      %p163 = por %p161, %p162
      %p164 = scmp.ne.s32.totalorder %s153, %s154
      %p165 = scmp.eq.s32.totalorder %s16, 0
      %p166 = por %p164, %p165
      %p167 = scmp.ne.s32.totalorder %s153, %s154
      %p168 = scmp.eq.s32.totalorder %s17, 5
      %p169 = por %p167, %p168
      %p171 = scmp.ne.s32.totalorder %s154, %s170
      %p172 = scmp.eq.s32.totalorder %s17, 0
      %p173 = por %p171, %p172
      %p174 = scmp.le.s32.totalorder 1, %s11
      %p175 = scmp.lt.s32.totalorder %s11, 7
      %p176 = pnand %p174, %p175
      %p177 = pneg %p176
      // Predicated region
      $region9: #{ngcf_forward.6} parent=5 // pred_check
        _
      $region10: #{ngcf_forward.6} parent=5 // pred_check_branch
        %179 = sbr.rel (%p176) target = $region12
      $region11: #{ngcf_forward.6} parent=5 // pred_region
        %s180 = ssub.s32 %s11, 1
        // Predicated region
        $region13: #{ngcf_forward.6} parent=11 // pred_check
          %p181 = pneg %p72
        $region14: #{ngcf_forward.6} parent=11 // pred_check_branch
          %183 = sbr.rel (%p181) target = $region16
        $region15: #{ngcf_forward.6} parent=11 // pred_region
          _
        $region16: #{ngcf_forward.6} parent=11 // pred_fallthru
          _
        // Predicated region
        $region17: #{ngcf_forward.6} parent=11 // pred_check
          %p184 = pneg %p119
        $region18: #{ngcf_forward.6} parent=11 // pred_check_branch
          %186 = sbr.rel (%p184) target = $region20
        $region19: #{ngcf_forward.6} parent=11 // pred_region
          _
        $region20: #{ngcf_forward.6} parent=11 // pred_fallthru
          _
        // Predicated region
        $region21: #{ngcf_forward.6} parent=11 // pred_check
          %p187 = pneg %p140
        $region22: #{ngcf_forward.6} parent=11 // pred_check_branch
          %189 = sbr.rel (%p187) target = $region24
        $region23: #{ngcf_forward.6} parent=11 // pred_region
          _
        $region24: #{ngcf_forward.6} parent=11 // pred_fallthru
          _
      $region12: #{ngcf_forward.6} parent=5 // pred_fallthru
        _
      %p190 = scmp.lt.s32.totalorder %s11, 6
      // Predicated region
      $region25: #{ngcf_forward.6} parent=5 // pred_check
        %p191 = pneg %p190
      $region26: #{ngcf_forward.6} parent=5 // pred_check_branch
        %193 = sbr.rel (%p191) target = $region28
      $region27: #{ngcf_forward.6} parent=5 // pred_region
        // Predicated region
        $region29: #{ngcf_forward.6} parent=27 // pred_check
          %p194 = pneg %p45
        $region30: #{ngcf_forward.6} parent=27 // pred_check_branch
          %196 = sbr.rel (%p194) target = $region32
        $region31: #{ngcf_forward.6} parent=27 // pred_region
          %s197 = sand.u32 %s35, 1
          %s198 = sand.u32 %s35, 1
          %s199 = smul.addr %s198, 64
          %s200 = scalar_lea.vmem [#allocation3], %s199
          %s201 = smul.u32 16, %s18
          %s202 = smul.addr %s201, 3
          %s203 = sadd.s32 %s19, %s202
          %s204 = smul.addr %s203, 4
          %s205 = scalar_lea.vmem %s0, %s204
          // Predicated region
          $region33: #{ngcf_forward.6} parent=31 // pred_check
            _
          $region34: #{ngcf_forward.6} parent=31 // pred_check_branch
            %207 = sbr.rel (0) target = $region36
          $region35: #{ngcf_forward.6} parent=31 // pred_region
            // Predicated region
            $region37: #{ngcf_forward.6} parent=35 // pred_check
              _
            $region38: #{ngcf_forward.6} parent=35 // pred_check_branch
              %209 = sbr.rel target = $region40
            $region39: #{ngcf_forward.6} parent=35 // pred_region
              // Predicated region
              $region52: #{ngcf_forward.6} parent=39 // pred_check
                _
              $region53: #{ngcf_forward.6} parent=39 // pred_check_branch
                %254 = sbr.rel (0) target = $region55
              $region54: #{ngcf_forward.6} parent=39 // pred_region
                loop: start=0, step=1, limit=1
                $region56: #{ngcf_forward.6} parent=54 // loop_pre_header
                  _
                $region57: #{ngcf_forward.6} parent=54 // loop_header
                  %s256 = sphi 0, %s260
                  %p257 = scmp.ge.s32.totalorder %s256, 1
                  %s261 = sphi %s205, %s205
                  %s262 = sphi %s200, %s200
                $region58: #{ngcf_forward.6} parent=54 // loop_header_branch
                  %259 = sbr.rel (%p257) target = $region62
                $region59: #{ngcf_forward.6} parent=54 // loop_body
                  _
                $region60: #{ngcf_forward.6} parent=54 // loop_footer
                  %s260 = sadd.s32 1, %s256
                $region61: #{ngcf_forward.6} parent=54 // loop_footer_branch
                  %255 = sbr.rel target = $region57
                $region62: #{ngcf_forward.6} parent=54 // loop_exit
                  _
                loop: start=0, step=1, limit=1
                $region63: #{ngcf_forward.6} parent=54 // loop_pre_header
                  _
                $region64: #{ngcf_forward.6} parent=54 // loop_header
                  %s265 = sphi 0, %s269
                  %p266 = scmp.ge.s32.totalorder %s265, 1
                  %s270 = sphi %s205, %s205
                  %s271 = sphi %s200, %s200
                $region65: #{ngcf_forward.6} parent=54 // loop_header_branch
                  %268 = sbr.rel (%p266) target = $region69
                $region66: #{ngcf_forward.6} parent=54 // loop_body
                  %v272 = vld [vmem:[%s270] sm:$0xf]
                  %273 = vst [vmem:[%s271] sm:$0xf] %v272
                  %v274 = vld [vmem:[%s270 + $0xc] sm:$0xf]
                  %275 = vst [vmem:[%s271 + $0x4] sm:$0xf] %v274
                  %v276 = vld [vmem:[%s270 + $0x18] sm:$0xf]
                  %277 = vst [vmem:[%s271 + $0x8] sm:$0xf] %v276
                  %v278 = vld [vmem:[%s270 + $0x24] sm:$0xf]
                  %279 = vst [vmem:[%s271 + $0xc] sm:$0xf] %v278
                  %v280 = vld [vmem:[%s270 + $0x30] sm:$0xf]
                  %281 = vst [vmem:[%s271 + $0x10] sm:$0xf] %v280
                  %v282 = vld [vmem:[%s270 + $0x3c] sm:$0xf]
                  %283 = vst [vmem:[%s271 + $0x14] sm:$0xf] %v282
                  %v284 = vld [vmem:[%s270 + $0x48] sm:$0xf]
                  %285 = vst [vmem:[%s271 + $0x18] sm:$0xf] %v284
                  %v286 = vld [vmem:[%s270 + $0x54] sm:$0xf]
                  %287 = vst [vmem:[%s271 + $0x1c] sm:$0xf] %v286
                  %v288 = vld [vmem:[%s270 + $0x60] sm:$0xf]
                  %289 = vst [vmem:[%s271 + $0x20] sm:$0xf] %v288
                  %v290 = vld [vmem:[%s270 + $0x6c] sm:$0xf]
                  %291 = vst [vmem:[%s271 + $0x24] sm:$0xf] %v290
                  %v292 = vld [vmem:[%s270 + $0x78] sm:$0xf]
                  %293 = vst [vmem:[%s271 + $0x28] sm:$0xf] %v292
                  %v294 = vld [vmem:[%s270 + $0x84] sm:$0xf]
                  %295 = vst [vmem:[%s271 + $0x2c] sm:$0xf] %v294
                  %v296 = vld [vmem:[%s270 + $0x90] sm:$0xf]
                  %297 = vst [vmem:[%s271 + $0x30] sm:$0xf] %v296
                  %v298 = vld [vmem:[%s270 + $0x9c] sm:$0xf]
                  %299 = vst [vmem:[%s271 + $0x34] sm:$0xf] %v298
                  %v300 = vld [vmem:[%s270 + $0xa8] sm:$0xf]
                  %301 = vst [vmem:[%s271 + $0x38] sm:$0xf] %v300
                  %v302 = vld [vmem:[%s270 + $0xb4] sm:$0xf]
                  %303 = vst [vmem:[%s271 + $0x3c] sm:$0xf] %v302
                $region67: #{ngcf_forward.6} parent=54 // loop_footer
                  %s269 = sadd.s32 1, %s265
                $region68: #{ngcf_forward.6} parent=54 // loop_footer_branch
                  %264 = sbr.rel target = $region64
                $region69: #{ngcf_forward.6} parent=54 // loop_exit
                  _
              $region55: #{ngcf_forward.6} parent=39 // pred_fallthru
                _
            $region40: #{ngcf_forward.6} parent=35 // pred_fallthru
              _
            // Predicated region
            $region41: #{ngcf_forward.6} parent=35 // pred_check
              _
            $region42: #{ngcf_forward.6} parent=35 // pred_check_branch
              %211 = sbr.rel (0) target = $region44
            $region43: #{ngcf_forward.6} parent=35 // pred_region
              loop: start=0, step=1, limit=1
              $region45: #{ngcf_forward.6} parent=43 // loop_pre_header
                _
              $region46: #{ngcf_forward.6} parent=43 // loop_header
                %s214 = sphi 0, %s218
                %p215 = scmp.ge.s32.totalorder %s214, 1
                %s219 = sphi %s205, %s205
                %s220 = sphi %s200, %s200
              $region47: #{ngcf_forward.6} parent=43 // loop_header_branch
                %217 = sbr.rel (%p215) target = $region51
              $region48: #{ngcf_forward.6} parent=43 // loop_body
                %v221 = vld [vmem:[%s219] sm:$0xf]
                %222 = vst [vmem:[%s220] sm:$0xf] %v221
                %v223 = vld [vmem:[%s219 + $0xc] sm:$0xf]
                %224 = vst [vmem:[%s220 + $0x4] sm:$0xf] %v223
                %v225 = vld [vmem:[%s219 + $0x18] sm:$0xf]
                %226 = vst [vmem:[%s220 + $0x8] sm:$0xf] %v225
                %v227 = vld [vmem:[%s219 + $0x24] sm:$0xf]
                %228 = vst [vmem:[%s220 + $0xc] sm:$0xf] %v227
                %v229 = vld [vmem:[%s219 + $0x30] sm:$0xf]
                %230 = vst [vmem:[%s220 + $0x10] sm:$0xf] %v229
                %v231 = vld [vmem:[%s219 + $0x3c] sm:$0xf]
                %232 = vst [vmem:[%s220 + $0x14] sm:$0xf] %v231
                %v233 = vld [vmem:[%s219 + $0x48] sm:$0xf]
                %234 = vst [vmem:[%s220 + $0x18] sm:$0xf] %v233
                %v235 = vld [vmem:[%s219 + $0x54] sm:$0xf]
                %236 = vst [vmem:[%s220 + $0x1c] sm:$0xf] %v235
                %v237 = vld [vmem:[%s219 + $0x60] sm:$0xf]
                %238 = vst [vmem:[%s220 + $0x20] sm:$0xf] %v237
                %v239 = vld [vmem:[%s219 + $0x6c] sm:$0xf]
                %240 = vst [vmem:[%s220 + $0x24] sm:$0xf] %v239
                %v241 = vld [vmem:[%s219 + $0x78] sm:$0xf]
                %242 = vst [vmem:[%s220 + $0x28] sm:$0xf] %v241
                %v243 = vld [vmem:[%s219 + $0x84] sm:$0xf]
                %244 = vst [vmem:[%s220 + $0x2c] sm:$0xf] %v243
                %v245 = vld [vmem:[%s219 + $0x90] sm:$0xf]
                %246 = vst [vmem:[%s220 + $0x30] sm:$0xf] %v245
                %v247 = vld [vmem:[%s219 + $0x9c] sm:$0xf]
                %248 = vst [vmem:[%s220 + $0x34] sm:$0xf] %v247
                %v249 = vld [vmem:[%s219 + $0xa8] sm:$0xf]
                %250 = vst [vmem:[%s220 + $0x38] sm:$0xf] %v249
                %v251 = vld [vmem:[%s219 + $0xb4] sm:$0xf]
                %252 = vst [vmem:[%s220 + $0x3c] sm:$0xf] %v251
              $region49: #{ngcf_forward.6} parent=43 // loop_footer
                %s218 = sadd.s32 1, %s214
              $region50: #{ngcf_forward.6} parent=43 // loop_footer_branch
                %213 = sbr.rel target = $region46
              $region51: #{ngcf_forward.6} parent=43 // loop_exit
                _
            $region44: #{ngcf_forward.6} parent=35 // pred_fallthru
              _
          $region36: #{ngcf_forward.6} parent=31 // pred_fallthru
            _
          %304 = vnop
        $region32: #{ngcf_forward.6} parent=27 // pred_fallthru
          _
        // Predicated region
        $region70: #{ngcf_forward.6} parent=27 // pred_check
          %p305 = pneg %p92
        $region71: #{ngcf_forward.6} parent=27 // pred_check_branch
          %307 = sbr.rel (%p305) target = $region73
        $region72: #{ngcf_forward.6} parent=27 // pred_region
          %s308 = smul.u32 16, %s18
          %p309 = scmp.lt.s32.totalorder %s308, 31
          %s310 = scalar_select %p309, %s308, 31
          %s311 = smul.addr %s310, 8
          %s312 = scalar_lea.vmem %s2, %s311
          %s313 = smul.u32 16, %s18
        $region73: #{ngcf_forward.6} parent=27 // pred_fallthru
          _
      $region28: #{ngcf_forward.6} parent=5 // pred_fallthru
        _
      %p314 = scmp.le.s32.totalorder 1, %s11
      %p315 = scmp.lt.s32.totalorder %s11, 7
      %p316 = pnand %p314, %p315
      %p317 = pneg %p316
      // Predicated region
      $region74: #{ngcf_forward.6} parent=5 // pred_check
        _
      $region75: #{ngcf_forward.6} parent=5 // pred_check_branch
        %319 = sbr.rel (%p316) target = $region77
      $region76: #{ngcf_forward.6} parent=5 // pred_region
        %s320 = ssub.s32 %s11, 1
        %s321 = sand.u32 %s38, 1
        %s322 = sand.u32 %s38, 1
        %s323 = smul.addr %s322, 64
        %s324 = scalar_lea.vmem [#allocation3], %s323
        // Predicated region
        $region78: #{ngcf_forward.6} parent=76 // pred_check
          %p325 = pneg %p51
        $region79: #{ngcf_forward.6} parent=76 // pred_check_branch
          %327 = sbr.rel (%p325) target = $region81
        $region80: #{ngcf_forward.6} parent=76 // pred_region
          _
        $region81: #{ngcf_forward.6} parent=76 // pred_fallthru
          _
        %s328 = sand.u32 %s38, 1
        %s329 = sand.u32 %s38, 1
        %s330 = smul.addr %s329, 64
        %s331 = scalar_lea.vmem [#allocation3], %s330
        %p332 = pneg %p51
        %p333 = pneg %p48
        %p334 = pneg %p72
        %p335 = pneg %p69
        %s336 = smul.u32 16, %s20
        %p337 = scmp.lt.s32.totalorder %s336, 31
        %s338 = scalar_select %p337, %s336, 31
        %s339 = smul.addr %s338, 8
        %s340 = scalar_lea.vmem %s2, %s339
        %p341 = pneg %p98
        %p342 = pneg %p95
        %p343 = pneg %p119
        %p344 = pneg %p116
        %p345 = pneg %p140
        %p346 = pneg %p137
        %p347 = pneg %p166
        %p348 = pneg %p163
        %s349 = smul.u32 16, %s20
        %p350 = scmp.lt.s32.totalorder %s349, 31
        %s351 = scalar_select %p350, %s349, 31
        %s352 = smul.addr %s351, 8
        %s353 = scalar_lea.vmem %s5, %s352
        %s354 = smul.u32 16, %s20
        %s355 = smul.u32 16, %s20
        %p356 = scmp.lt.s32.totalorder %s355, 31
        %s357 = scalar_select %p356, %s355, 31
        %s358 = smul.addr %s357, 8
        %s359 = scalar_lea.vmem %s2, %s358
        %s360 = smul.u32 16, %s20
        %s361 = smul.u32 16, %s20
        %p362 = scmp.lt.s32.totalorder %s361, 31
        %s363 = scalar_select %p362, %s361, 31
        %s364 = smul.addr %s363, 8
        %s365 = scalar_lea.vmem %s5, %s364
        %s366 = smul.u32 16, %s20
        %p368 = scmp.eq.s32.totalorder %s21, 0
        // Predicated region
        $region82: #{ngcf_forward.6} parent=76 // pred_check
          %p369 = pneg %p368
        $region83: #{ngcf_forward.6} parent=76 // pred_check_branch
          %371 = sbr.rel (%p369) target = $region85
        $region84: #{ngcf_forward.6} parent=76 // pred_region
          %vm372 = vcmask 261120
          %373 = vst.msk [vmem:[#allocation2] sm:$0xff] %vm372, 0.0
          %374 = vst.msk [vmem:[#allocation2 + $0x8] sm:$0xff] %vm372, 0.0
          %375 = vst.msk [vmem:[#allocation2 + $0x10] sm:$0xff] %vm372, 0.0
          %376 = vst.msk [vmem:[#allocation2 + $0x18] sm:$0xff] %vm372, 0.0
          %377 = vst.msk [vmem:[#allocation2 + $0x20] sm:$0xff] %vm372, 0.0
          %378 = vst.msk [vmem:[#allocation2 + $0x28] sm:$0xff] %vm372, 0.0
          %379 = vst.msk [vmem:[#allocation2 + $0x30] sm:$0xff] %vm372, 0.0
          %380 = vst.msk [vmem:[#allocation2 + $0x38] sm:$0xff] %vm372, 0.0
          %381 = vst.msk [vmem:[#allocation2 + $0x40] sm:$0xff] %vm372, 0.0
          %382 = vst.msk [vmem:[#allocation2 + $0x48] sm:$0xff] %vm372, 0.0
          %383 = vst.msk [vmem:[#allocation2 + $0x50] sm:$0xff] %vm372, 0.0
          %384 = vst.msk [vmem:[#allocation2 + $0x58] sm:$0xff] %vm372, 0.0
          %385 = vst.msk [vmem:[#allocation2 + $0x60] sm:$0xff] %vm372, 0.0
          %386 = vst.msk [vmem:[#allocation2 + $0x68] sm:$0xff] %vm372, 0.0
          %387 = vst.msk [vmem:[#allocation2 + $0x70] sm:$0xff] %vm372, 0.0
          %388 = vst.msk [vmem:[#allocation2 + $0x78] sm:$0xff] %vm372, 0.0
        $region85: #{ngcf_forward.6} parent=76 // pred_fallthru
          _
        %s389 = smul.u32 %s21, 128
        %s390 = sshra.s32 %s389, 3
        %s391 = sand.u32 %s389, 7
        %s392 = smul.addr %s390, 4
        %s393 = scalar_lea.vmem %s1, %s392
        %v394 = vld [vmem:[%s393] sm:$0xf]
        %v395 = vld [vmem:[%s393 + $0x4] sm:$0xf]
        %v396 = vld [vmem:[%s393 + $0x8] sm:$0xf]
        %v397 = vld [vmem:[%s393 + $0xc] sm:$0xf]
        %v398 = vld [vmem:[%s393 + $0x10] sm:$0xf]
        %v399 = vld [vmem:[%s393 + $0x14] sm:$0xf]
        %v400 = vld [vmem:[%s393 + $0x18] sm:$0xf]
        %v401 = vld [vmem:[%s393 + $0x1c] sm:$0xf]
        %v402 = vld [vmem:[%s393 + $0x20] sm:$0xf]
        %v403 = vld [vmem:[%s393 + $0x24] sm:$0xf]
        %v404 = vld [vmem:[%s393 + $0x28] sm:$0xf]
        %v405 = vld [vmem:[%s393 + $0x2c] sm:$0xf]
        %v406 = vld [vmem:[%s393 + $0x30] sm:$0xf]
        %v407 = vld [vmem:[%s393 + $0x34] sm:$0xf]
        %v408 = vld [vmem:[%s393 + $0x38] sm:$0xf]
        %v409 = vld [vmem:[%s393 + $0x3c] sm:$0xf]
        %v410 = vld [vmem:[%s324] sm:$0xf]
        %v411 = vld [vmem:[%s324 + $0x4] sm:$0xf]
        %v412 = vld [vmem:[%s324 + $0x8] sm:$0xf]
        %v413 = vld [vmem:[%s324 + $0xc] sm:$0xf]
        %v414 = vld [vmem:[%s324 + $0x10] sm:$0xf]
        %v415 = vld [vmem:[%s324 + $0x14] sm:$0xf]
        %v416 = vld [vmem:[%s324 + $0x18] sm:$0xf]
        %v417 = vld [vmem:[%s324 + $0x1c] sm:$0xf]
        %v418 = vld [vmem:[%s324 + $0x20] sm:$0xf]
        %v419 = vld [vmem:[%s324 + $0x24] sm:$0xf]
        %v420 = vld [vmem:[%s324 + $0x28] sm:$0xf]
        %v421 = vld [vmem:[%s324 + $0x2c] sm:$0xf]
        %v422 = vld [vmem:[%s324 + $0x30] sm:$0xf]
        %v423 = vld [vmem:[%s324 + $0x34] sm:$0xf]
        %v424 = vld [vmem:[%s324 + $0x38] sm:$0xf]
        %v425 = vld [vmem:[%s324 + $0x3c] sm:$0xf]
        %v442 = vunpack.c.l.b16 %v410
        %v443 = vunpack.c.l.b16 %v411
        %v444 = vunpack.c.l.b16 %v412
        %v445 = vunpack.c.l.b16 %v413
        %v446 = vunpack.c.l.b16 %v414
        %v447 = vunpack.c.l.b16 %v415
        %v448 = vunpack.c.l.b16 %v416
        %v449 = vunpack.c.l.b16 %v417
        %v450 = vunpack.c.l.b16 %v418
        %v451 = vunpack.c.l.b16 %v419
        %v452 = vunpack.c.l.b16 %v420
        %v453 = vunpack.c.l.b16 %v421
        %v454 = vunpack.c.l.b16 %v422
        %v455 = vunpack.c.l.b16 %v423
        %v456 = vunpack.c.l.b16 %v424
        %v457 = vunpack.c.l.b16 %v425
        %v458 = vpack.c.b16 %v443, %v442
        %v459 = vpack.c.b16 %v445, %v444
        %v460 = vpack.c.b16 %v447, %v446
        %v461 = vpack.c.b16 %v449, %v448
        %v462 = vpack.c.b16 %v451, %v450
        %v463 = vpack.c.b16 %v453, %v452
        %v464 = vpack.c.b16 %v455, %v454
        %v465 = vpack.c.b16 %v457, %v456
        %v490 = vunpack.c.l.b16 %v394
        %v491 = vunpack.c.l.b16 %v395
        %v492 = vunpack.c.l.b16 %v396
        %v493 = vunpack.c.l.b16 %v397
        %v494 = vunpack.c.l.b16 %v398
        %v495 = vunpack.c.l.b16 %v399
        %v496 = vunpack.c.l.b16 %v400
        %v497 = vunpack.c.l.b16 %v401
        %v498 = vunpack.c.l.b16 %v402
        %v499 = vunpack.c.l.b16 %v403
        %v500 = vunpack.c.l.b16 %v404
        %v501 = vunpack.c.l.b16 %v405
        %v502 = vunpack.c.l.b16 %v406
        %v503 = vunpack.c.l.b16 %v407
        %v504 = vunpack.c.l.b16 %v408
        %v505 = vunpack.c.l.b16 %v409
        %v506 = vpack.c.b16 %v491, %v490
        %v507 = vpack.c.b16 %v493, %v492
        %v508 = vpack.c.b16 %v495, %v494
        %v509 = vpack.c.b16 %v497, %v496
        %v510 = vpack.c.b16 %v499, %v498
        %v511 = vpack.c.b16 %v501, %v500
        %v512 = vpack.c.b16 %v503, %v502
        %v513 = vpack.c.b16 %v505, %v504
        %522 = vmatprep.subr.bf16.mxu0 0
        %523 = vmatpush1.bf16.msra.mxu0 %v506
        %524 = vmatprep.subr.bf16.mxu0 0
        %525 = vmatpush1.bf16.msra.mxu0 %v507
        %526 = vmatprep.subr.bf16.mxu0 0
        %527 = vmatpush1.bf16.msra.mxu0 %v508
        %528 = vmatprep.subr.bf16.mxu0 0
        %529 = vmatpush1.bf16.msra.mxu0 %v509
        %530 = vmatprep.subr.bf16.mxu0 0
        %531 = vmatpush1.bf16.msra.mxu0 %v510
        %532 = vmatprep.subr.bf16.mxu0 0
        %533 = vmatpush1.bf16.msra.mxu0 %v511
        %534 = vmatprep.subr.bf16.mxu0 0
        %535 = vmatpush1.bf16.msra.mxu0 %v512
        %536 = vmatprep.subr.bf16.mxu0 0
        %537 = vmatpush1.bf16.msra.mxu0 %v513
        %538 = vmatprep.subr.bf16.mxu0 0
        %539 = vmatpush1.bf16.msra.mxu0 0
        %540 = vmatprep.subr.bf16.mxu0 0
        %541 = vmatpush1.bf16.msra.mxu0 0
        %542 = vmatprep.subr.bf16.mxu0 0
        %543 = vmatpush1.bf16.msra.mxu0 0
        %544 = vmatprep.subr.bf16.mxu0 0
        %545 = vmatpush1.bf16.msra.mxu0 0
        %546 = vmatprep.subr.bf16.mxu0 0
        %547 = vmatpush1.bf16.msra.mxu0 0
        %548 = vmatprep.subr.bf16.mxu0 0
        %549 = vmatpush1.bf16.msra.mxu0 0
        %550 = vmatprep.subr.bf16.mxu0 0
        %551 = vmatpush1.bf16.msra.mxu0 0
        %552 = vmatprep.subr.bf16.mxu0 0
        %553 = vmatpush1.bf16.msra.mxu0 0
        %554 = vmatprep.mubr.bf16.mxu0 0
        %555 = vmatmul.mubr.bf16.gmra.mrb[0].mxu0 %v458
        %v556 = vpop.f32.mrb[0].mxu0
        %v557 = vadd.f32 0.0, %v556
        %v558 = vpop.f32.mrb[0].mxu0
        %v559 = vpop.f32.mrb[0].mxu0
        %v560 = vadd.f32 0.0, %v559
        %v561 = vpop.f32.mrb[0].mxu0
        %562 = vmatprep.mubr.bf16.mxu0 0
        %563 = vmatmul.mubr.bf16.gmra.mrb[0].mxu0 %v459
        %v564 = vpop.f32.mrb[0].mxu0
        %v565 = vadd.f32 0.0, %v564
        %v566 = vpop.f32.mrb[0].mxu0
        %v567 = vpop.f32.mrb[0].mxu0
        %v568 = vadd.f32 0.0, %v567
        %v569 = vpop.f32.mrb[0].mxu0
        %570 = vmatprep.mubr.bf16.mxu0 0
        %571 = vmatmul.mubr.bf16.gmra.mrb[0].mxu0 %v460
        %v572 = vpop.f32.mrb[0].mxu0
        %v573 = vadd.f32 0.0, %v572
        %v574 = vpop.f32.mrb[0].mxu0
        %v575 = vpop.f32.mrb[0].mxu0
        %v576 = vadd.f32 0.0, %v575
        %v577 = vpop.f32.mrb[0].mxu0
        %578 = vmatprep.mubr.bf16.mxu0 0
        %579 = vmatmul.mubr.bf16.gmra.mrb[0].mxu0 %v461
        %v580 = vpop.f32.mrb[0].mxu0
        %v581 = vadd.f32 0.0, %v580
        %v582 = vpop.f32.mrb[0].mxu0
        %v583 = vpop.f32.mrb[0].mxu0
        %v584 = vadd.f32 0.0, %v583
        %v585 = vpop.f32.mrb[0].mxu0
        %586 = vmatprep.mubr.bf16.mxu0 0
        %587 = vmatmul.mubr.bf16.gmra.mrb[0].mxu0 %v462
        %v588 = vpop.f32.mrb[0].mxu0
        %v589 = vadd.f32 0.0, %v588
        %v590 = vpop.f32.mrb[0].mxu0
        %v591 = vpop.f32.mrb[0].mxu0
        %v592 = vadd.f32 0.0, %v591
        %v593 = vpop.f32.mrb[0].mxu0
        %594 = vmatprep.mubr.bf16.mxu0 0
        %595 = vmatmul.mubr.bf16.gmra.mrb[0].mxu0 %v463
        %v596 = vpop.f32.mrb[0].mxu0
        %v597 = vadd.f32 0.0, %v596
        %v598 = vpop.f32.mrb[0].mxu0
        %v599 = vpop.f32.mrb[0].mxu0
        %v600 = vadd.f32 0.0, %v599
        %v601 = vpop.f32.mrb[0].mxu0
        %602 = vmatprep.mubr.bf16.mxu0 0
        %603 = vmatmul.mubr.bf16.gmra.mrb[0].mxu0 %v464
        %v604 = vpop.f32.mrb[0].mxu0
        %v605 = vadd.f32 0.0, %v604
        %v606 = vpop.f32.mrb[0].mxu0
        %v607 = vpop.f32.mrb[0].mxu0
        %v608 = vadd.f32 0.0, %v607
        %v609 = vpop.f32.mrb[0].mxu0
        %610 = vmatprep.mubr.bf16.mxu0 0
        %611 = vmatmul.mubr.bf16.gmra.mrb[0].mxu0 %v465
        %v612 = vpop.f32.mrb[0].mxu0
        %v613 = vadd.f32 0.0, %v612
        %v614 = vpop.f32.mrb[0].mxu0
        %v615 = vpop.f32.mrb[0].mxu0
        %v616 = vadd.f32 0.0, %v615
        %v617 = vpop.f32.mrb[0].mxu0
        %618 = vdwg.mxu0
        %v619 = vld [vmem:[#allocation2] sm:$0xff]
        %v620 = vld [vmem:[#allocation2 + $0x8] sm:$0xff]
        %v621 = vld [vmem:[#allocation2 + $0x10] sm:$0xff]
        %v622 = vld [vmem:[#allocation2 + $0x18] sm:$0xff]
        %v623 = vld [vmem:[#allocation2 + $0x20] sm:$0xff]
        %v624 = vld [vmem:[#allocation2 + $0x28] sm:$0xff]
        %v625 = vld [vmem:[#allocation2 + $0x30] sm:$0xff]
        %v626 = vld [vmem:[#allocation2 + $0x38] sm:$0xff]
        %v627 = vld [vmem:[#allocation2 + $0x40] sm:$0xff]
        %v628 = vld [vmem:[#allocation2 + $0x48] sm:$0xff]
        %v629 = vld [vmem:[#allocation2 + $0x50] sm:$0xff]
        %v630 = vld [vmem:[#allocation2 + $0x58] sm:$0xff]
        %v631 = vld [vmem:[#allocation2 + $0x60] sm:$0xff]
        %v632 = vld [vmem:[#allocation2 + $0x68] sm:$0xff]
        %v633 = vld [vmem:[#allocation2 + $0x70] sm:$0xff]
        %v634 = vld [vmem:[#allocation2 + $0x78] sm:$0xff]
        %v635 = vadd.f32 %v619, %v557
        %v636 = vadd.f32 %v620, %v560
        %v637 = vadd.f32 %v621, %v565
        %v638 = vadd.f32 %v622, %v568
        %v639 = vadd.f32 %v623, %v573
        %v640 = vadd.f32 %v624, %v576
        %v641 = vadd.f32 %v625, %v581
        %v642 = vadd.f32 %v626, %v584
        %v643 = vadd.f32 %v627, %v589
        %v644 = vadd.f32 %v628, %v592
        %v645 = vadd.f32 %v629, %v597
        %v646 = vadd.f32 %v630, %v600
        %v647 = vadd.f32 %v631, %v605
        %v648 = vadd.f32 %v632, %v608
        %v649 = vadd.f32 %v633, %v613
        %v650 = vadd.f32 %v634, %v616
        %vm651 = vcmask 261120
        %652 = vst.msk [vmem:[#allocation2] sm:$0xff] %vm651, %v635
        %653 = vst.msk [vmem:[#allocation2 + $0x8] sm:$0xff] %vm651, %v636
        %654 = vst.msk [vmem:[#allocation2 + $0x10] sm:$0xff] %vm651, %v637
        %655 = vst.msk [vmem:[#allocation2 + $0x18] sm:$0xff] %vm651, %v638
        %656 = vst.msk [vmem:[#allocation2 + $0x20] sm:$0xff] %vm651, %v639
        %657 = vst.msk [vmem:[#allocation2 + $0x28] sm:$0xff] %vm651, %v640
        %658 = vst.msk [vmem:[#allocation2 + $0x30] sm:$0xff] %vm651, %v641
        %659 = vst.msk [vmem:[#allocation2 + $0x38] sm:$0xff] %vm651, %v642
        %660 = vst.msk [vmem:[#allocation2 + $0x40] sm:$0xff] %vm651, %v643
        %661 = vst.msk [vmem:[#allocation2 + $0x48] sm:$0xff] %vm651, %v644
        %662 = vst.msk [vmem:[#allocation2 + $0x50] sm:$0xff] %vm651, %v645
        %663 = vst.msk [vmem:[#allocation2 + $0x58] sm:$0xff] %vm651, %v646
        %664 = vst.msk [vmem:[#allocation2 + $0x60] sm:$0xff] %vm651, %v647
        %665 = vst.msk [vmem:[#allocation2 + $0x68] sm:$0xff] %vm651, %v648
        %666 = vst.msk [vmem:[#allocation2 + $0x70] sm:$0xff] %vm651, %v649
        %667 = vst.msk [vmem:[#allocation2 + $0x78] sm:$0xff] %vm651, %v650
        %p668 = scmp.eq.s32.totalorder %s21, 2
        // Predicated region
        $region86: #{ngcf_forward.6} parent=76 // pred_check
          %p669 = pneg %p668
        $region87: #{ngcf_forward.6} parent=76 // pred_check_branch
          %671 = sbr.rel (%p669) target = $region89
        $region88: #{ngcf_forward.6} parent=76 // pred_region
          %v672 = vld [vmem:[#allocation2] sm:$0xff]
          %v673 = vld [vmem:[#allocation2 + $0x8] sm:$0xff]
          %v674 = vld [vmem:[#allocation2 + $0x10] sm:$0xff]
          %v675 = vld [vmem:[#allocation2 + $0x18] sm:$0xff]
          %v676 = vld [vmem:[#allocation2 + $0x20] sm:$0xff]
          %v677 = vld [vmem:[#allocation2 + $0x28] sm:$0xff]
          %v678 = vld [vmem:[#allocation2 + $0x30] sm:$0xff]
          %v679 = vld [vmem:[#allocation2 + $0x38] sm:$0xff]
          %v680 = vld [vmem:[#allocation2 + $0x40] sm:$0xff]
          %v681 = vld [vmem:[#allocation2 + $0x48] sm:$0xff]
          %v682 = vld [vmem:[#allocation2 + $0x50] sm:$0xff]
          %v683 = vld [vmem:[#allocation2 + $0x58] sm:$0xff]
          %v684 = vld [vmem:[#allocation2 + $0x60] sm:$0xff]
          %v685 = vld [vmem:[#allocation2 + $0x68] sm:$0xff]
          %v686 = vld [vmem:[#allocation2 + $0x70] sm:$0xff]
          %v687 = vld [vmem:[#allocation2 + $0x78] sm:$0xff]
          %v688 = vld [vmem:[%s359] sm:$0xff]
          %v689 = vld [vmem:[%s359 + $0x8] sm:$0xff]
          %v690 = vld [vmem:[%s359 + $0x10] sm:$0xff]
          %v691 = vld [vmem:[%s359 + $0x18] sm:$0xff]
          %v692 = vld [vmem:[%s359 + $0x20] sm:$0xff]
          %v693 = vld [vmem:[%s359 + $0x28] sm:$0xff]
          %v694 = vld [vmem:[%s359 + $0x30] sm:$0xff]
          %v695 = vld [vmem:[%s359 + $0x38] sm:$0xff]
          %v696 = vld [vmem:[%s359 + $0x40] sm:$0xff]
          %v697 = vld [vmem:[%s359 + $0x48] sm:$0xff]
          %v698 = vld [vmem:[%s359 + $0x50] sm:$0xff]
          %v699 = vld [vmem:[%s359 + $0x58] sm:$0xff]
          %v700 = vld [vmem:[%s359 + $0x60] sm:$0xff]
          %v701 = vld [vmem:[%s359 + $0x68] sm:$0xff]
          %v702 = vld [vmem:[%s359 + $0x70] sm:$0xff]
          %v703 = vld [vmem:[%s359 + $0x78] sm:$0xff]
          %v704 = vmul.f32 %v688, %v672
          %v705 = vmul.f32 %v689, %v673
          %v706 = vmul.f32 %v690, %v674
          %v707 = vmul.f32 %v691, %v675
          %v708 = vmul.f32 %v692, %v676
          %v709 = vmul.f32 %v693, %v677
          %v710 = vmul.f32 %v694, %v678
          %v711 = vmul.f32 %v695, %v679
          %v712 = vmul.f32 %v696, %v680
          %v713 = vmul.f32 %v697, %v681
          %v714 = vmul.f32 %v698, %v682
          %v715 = vmul.f32 %v699, %v683
          %v716 = vmul.f32 %v700, %v684
          %v717 = vmul.f32 %v701, %v685
          %v718 = vmul.f32 %v702, %v686
          %v719 = vmul.f32 %v703, %v687
          %736 = vrot.lane.b32.xlu0 %v704, 32
          %v737 = vpop.permute.xlu0 %736
          %738 = vrot.lane.b32.xlu0 %v705, 32
          %v739 = vpop.permute.xlu0 %738
          %740 = vrot.lane.b32.xlu0 %v706, 32
          %v741 = vpop.permute.xlu0 %740
          %742 = vrot.lane.b32.xlu0 %v707, 32
          %v743 = vpop.permute.xlu0 %742
          %744 = vrot.lane.b32.xlu0 %v708, 32
          %v745 = vpop.permute.xlu0 %744
          %746 = vrot.lane.b32.xlu0 %v709, 32
          %v747 = vpop.permute.xlu0 %746
          %748 = vrot.lane.b32.xlu0 %v710, 32
          %v749 = vpop.permute.xlu0 %748
          %750 = vrot.lane.b32.xlu0 %v711, 32
          %v751 = vpop.permute.xlu0 %750
          %752 = vrot.lane.b32.xlu0 %v712, 32
          %v753 = vpop.permute.xlu0 %752
          %754 = vrot.lane.b32.xlu0 %v713, 32
          %v755 = vpop.permute.xlu0 %754
          %756 = vrot.lane.b32.xlu0 %v714, 32
          %v757 = vpop.permute.xlu0 %756
          %758 = vrot.lane.b32.xlu0 %v715, 32
          %v759 = vpop.permute.xlu0 %758
          %760 = vrot.lane.b32.xlu0 %v716, 32
          %v761 = vpop.permute.xlu0 %760
          %762 = vrot.lane.b32.xlu0 %v717, 32
          %v763 = vpop.permute.xlu0 %762
          %764 = vrot.lane.b32.xlu0 %v718, 32
          %v765 = vpop.permute.xlu0 %764
          %766 = vrot.lane.b32.xlu0 %v719, 32
          %v767 = vpop.permute.xlu0 %766
          %v784 = vsel %vm651, %v672, %v737
          %v785 = vsel %vm651, %v673, %v739
          %v786 = vsel %vm651, %v674, %v741
          %v787 = vsel %vm651, %v675, %v743
          %v788 = vsel %vm651, %v676, %v745
          %v789 = vsel %vm651, %v677, %v747
          %v790 = vsel %vm651, %v678, %v749
          %v791 = vsel %vm651, %v679, %v751
          %v792 = vsel %vm651, %v680, %v753
          %v793 = vsel %vm651, %v681, %v755
          %v794 = vsel %vm651, %v682, %v757
          %v795 = vsel %vm651, %v683, %v759
          %v796 = vsel %vm651, %v684, %v761
          %v797 = vsel %vm651, %v685, %v763
          %v798 = vsel %vm651, %v686, %v765
          %v799 = vsel %vm651, %v687, %v767
          %v800 = vld [vmem:[%s3] sm:$0xff]
          %v801 = vld [vmem:[%s3 + $0x8] sm:$0xff]
          %v802 = vld [vmem:[%s3 + $0x10] sm:$0xff]
          %v803 = vld [vmem:[%s3 + $0x18] sm:$0xff]
          %v804 = vld [vmem:[%s3 + $0x20] sm:$0xff]
          %v805 = vld [vmem:[%s3 + $0x28] sm:$0xff]
          %v806 = vld [vmem:[%s3 + $0x30] sm:$0xff]
          %v807 = vld [vmem:[%s3 + $0x38] sm:$0xff]
          %v808 = vld [vmem:[%s4] sm:$0x1]
          %v810 = vlaneseq
          %v811 = vshrl.u32 %v810, 7
          %v812 = vsub.s32 0, %v811
          %v813 = vrot.slane %v808, %v812
          %vm815 = vcmask 523264
          %v817 = vsel %vm815, %v784, 0
          %v820 = vsel %vm815, %v785, 0
          %v823 = vsel %vm815, %v786, 0
          %v826 = vsel %vm815, %v787, 0
          %v829 = vsel %vm815, %v788, 0
          %v832 = vsel %vm815, %v789, 0
          %v835 = vsel %vm815, %v790, 0
          %v838 = vsel %vm815, %v791, 0
          %v841 = vsel %vm815, %v792, 0
          %v844 = vsel %vm815, %v793, 0
          %v847 = vsel %vm815, %v794, 0
          %v850 = vsel %vm815, %v795, 0
          %v853 = vsel %vm815, %v796, 0
          %v856 = vsel %vm815, %v797, 0
          %v859 = vsel %vm815, %v798, 0
          %v862 = vsel %vm815, %v799, 0
          %864 = vmatprep.subr.mxu0 0.0
          %865 = vmatpush1.msra.mxu0 %v800
          %866 = vmatprep.subr.mxu0 0.0
          %867 = vmatpush1.msra.mxu0 %v801
          %868 = vmatprep.subr.mxu0 0.0
          %869 = vmatpush1.msra.mxu0 %v802
          %870 = vmatprep.subr.mxu0 0.0
          %871 = vmatpush1.msra.mxu0 %v803
          %872 = vmatprep.subr.mxu0 0.0
          %873 = vmatpush1.msra.mxu0 %v804
          %874 = vmatprep.subr.mxu0 0.0
          %875 = vmatpush1.msra.mxu0 %v805
          %876 = vmatprep.subr.mxu0 0.0
          %877 = vmatpush1.msra.mxu0 %v806
          %878 = vmatprep.subr.mxu0 0.0
          %879 = vmatpush1.msra.mxu0 %v807
          %880 = vmatprep.subr.mxu0 0.0
          %881 = vmatpush1.msra.mxu0 0.0
          %882 = vmatprep.subr.mxu0 0.0
          %883 = vmatpush1.msra.mxu0 0.0
          %884 = vmatprep.subr.mxu0 0.0
          %885 = vmatpush1.msra.mxu0 0.0
          %886 = vmatprep.subr.mxu0 0.0
          %887 = vmatpush1.msra.mxu0 0.0
          %888 = vmatprep.subr.mxu0 0.0
          %889 = vmatpush1.msra.mxu0 0.0
          %890 = vmatprep.subr.mxu0 0.0
          %891 = vmatpush1.msra.mxu0 0.0
          %892 = vmatprep.subr.mxu0 0.0
          %893 = vmatpush1.msra.mxu0 0.0
          %894 = vmatprep.subr.mxu0 0.0
          %895 = vmatpush1.msra.mxu0 0.0
          %896 = vmatprep.subr.mxu0 0.0
          %897 = vmatpush1.msra.mxu0 0.0
          %898 = vmatprep.subr.mxu0 0.0
          %899 = vmatpush1.msra.mxu0 0.0
          %900 = vmatprep.subr.mxu0 0.0
          %901 = vmatpush1.msra.mxu0 0.0
          %902 = vmatprep.subr.mxu0 0.0
          %903 = vmatpush1.msra.mxu0 0.0
          %904 = vmatprep.subr.mxu0 0.0
          %905 = vmatpush1.msra.mxu0 0.0
          %906 = vmatprep.subr.mxu0 0.0
          %907 = vmatpush1.msra.mxu0 0.0
          %908 = vmatprep.subr.mxu0 0.0
          %909 = vmatpush1.msra.mxu0 0.0
          %910 = vmatprep.subr.mxu0 0.0
          %911 = vmatpush1.msra.mxu0 0.0
          %912 = vmatprep.subr.mxu0 0.0
          %913 = vmatpush1.msra.mxu0 0.0
          %914 = vmatprep.subr.mxu0 0.0
          %915 = vmatpush1.msra.mxu0 0.0
          %916 = vmatprep.subr.mxu0 0.0
          %917 = vmatpush1.msra.mxu0 0.0
          %918 = vmatprep.subr.mxu0 0.0
          %919 = vmatpush1.msra.mxu0 0.0
          %920 = vmatprep.subr.mxu0 0.0
          %921 = vmatpush1.msra.mxu0 0.0
          %922 = vmatprep.subr.mxu0 0.0
          %923 = vmatpush1.msra.mxu0 0.0
          %924 = vmatprep.subr.mxu0 0.0
          %925 = vmatpush1.msra.mxu0 0.0
          %926 = vmatprep.subr.mxu0 0.0
          %927 = vmatpush1.msra.mxu0 0.0
          %928 = vmatprep.mubr.f32.mxu0 0.0
          %929 = vmatmul.mubr.f32.gmra.mrb[0].mxu0 %v817
          %v930 = vpop.f32.mrb[0].mxu0
          %v931 = vadd.f32 %v813, %v930
          %v932 = vpop.f32.mrb[0].mxu0
          %933 = vmatprep.mubr.f32.mxu0 0.0
          %934 = vmatmul.mubr.f32.gmra.mrb[0].mxu0 %v820
          %v935 = vpop.f32.mrb[0].mxu0
          %v936 = vadd.f32 %v813, %v935
          %v937 = vpop.f32.mrb[0].mxu0
          %938 = vmatprep.mubr.f32.mxu0 0.0
          %939 = vmatmul.mubr.f32.gmra.mrb[0].mxu0 %v823
          %v940 = vpop.f32.mrb[0].mxu0
          %v941 = vadd.f32 %v813, %v940
          %v942 = vpop.f32.mrb[0].mxu0
          %943 = vmatprep.mubr.f32.mxu0 0.0
          %944 = vmatmul.mubr.f32.gmra.mrb[0].mxu0 %v826
          %v945 = vpop.f32.mrb[0].mxu0
          %v946 = vadd.f32 %v813, %v945
          %v947 = vpop.f32.mrb[0].mxu0
          %948 = vmatprep.mubr.f32.mxu0 0.0
          %949 = vmatmul.mubr.f32.gmra.mrb[0].mxu0 %v829
          %v950 = vpop.f32.mrb[0].mxu0
          %v951 = vadd.f32 %v813, %v950
          %v952 = vpop.f32.mrb[0].mxu0
          %953 = vmatprep.mubr.f32.mxu0 0.0
          %954 = vmatmul.mubr.f32.gmra.mrb[0].mxu0 %v832
          %v955 = vpop.f32.mrb[0].mxu0
          %v956 = vadd.f32 %v813, %v955
          %v957 = vpop.f32.mrb[0].mxu0
          %958 = vmatprep.mubr.f32.mxu0 0.0
          %959 = vmatmul.mubr.f32.gmra.mrb[0].mxu0 %v835
          %v960 = vpop.f32.mrb[0].mxu0
          %v961 = vadd.f32 %v813, %v960
          %v962 = vpop.f32.mrb[0].mxu0
          %963 = vmatprep.mubr.f32.mxu0 0.0
          %964 = vmatmul.mubr.f32.gmra.mrb[0].mxu0 %v838
          %v965 = vpop.f32.mrb[0].mxu0
          %v966 = vadd.f32 %v813, %v965
          %v967 = vpop.f32.mrb[0].mxu0
          %968 = vmatprep.mubr.f32.mxu0 0.0
          %969 = vmatmul.mubr.f32.gmra.mrb[0].mxu0 %v841
          %v970 = vpop.f32.mrb[0].mxu0
          %v971 = vadd.f32 %v813, %v970
          %v972 = vpop.f32.mrb[0].mxu0
          %973 = vmatprep.mubr.f32.mxu0 0.0
          %974 = vmatmul.mubr.f32.gmra.mrb[0].mxu0 %v844
          %v975 = vpop.f32.mrb[0].mxu0
          %v976 = vadd.f32 %v813, %v975
          %v977 = vpop.f32.mrb[0].mxu0
          %978 = vmatprep.mubr.f32.mxu0 0.0
          %979 = vmatmul.mubr.f32.gmra.mrb[0].mxu0 %v847
          %v980 = vpop.f32.mrb[0].mxu0
          %v981 = vadd.f32 %v813, %v980
          %v982 = vpop.f32.mrb[0].mxu0
          %983 = vmatprep.mubr.f32.mxu0 0.0
          %984 = vmatmul.mubr.f32.gmra.mrb[0].mxu0 %v850
          %v985 = vpop.f32.mrb[0].mxu0
          %v986 = vadd.f32 %v813, %v985
          %v987 = vpop.f32.mrb[0].mxu0
          %988 = vmatprep.mubr.f32.mxu0 0.0
          %989 = vmatmul.mubr.f32.gmra.mrb[0].mxu0 %v853
          %v990 = vpop.f32.mrb[0].mxu0
          %v991 = vadd.f32 %v813, %v990
          %v992 = vpop.f32.mrb[0].mxu0
          %993 = vmatprep.mubr.f32.mxu0 0.0
          %994 = vmatmul.mubr.f32.gmra.mrb[0].mxu0 %v856
          %v995 = vpop.f32.mrb[0].mxu0
          %v996 = vadd.f32 %v813, %v995
          %v997 = vpop.f32.mrb[0].mxu0
          %998 = vmatprep.mubr.f32.mxu0 0.0
          %999 = vmatmul.mubr.f32.gmra.mrb[0].mxu0 %v859
          %v1000 = vpop.f32.mrb[0].mxu0
          %v1001 = vadd.f32 %v813, %v1000
          %v1002 = vpop.f32.mrb[0].mxu0
          %1003 = vmatprep.mubr.f32.mxu0 0.0
          %1004 = vmatmul.mubr.f32.gmra.mrb[0].mxu0 %v862
          %v1005 = vpop.f32.mrb[0].mxu0
          %v1006 = vadd.f32 %v813, %v1005
          %v1007 = vpop.f32.mrb[0].mxu0
          %1008 = vdwg.mxu0
          %vm1009 = vcmp.ge.f32.partialorder %v931, 0.0
          %vm1010 = vcmp.ge.f32.partialorder %v936, 0.0
          %vm1011 = vcmp.ge.f32.partialorder %v941, 0.0
          %vm1012 = vcmp.ge.f32.partialorder %v946, 0.0
          %vm1013 = vcmp.ge.f32.partialorder %v951, 0.0
          %vm1014 = vcmp.ge.f32.partialorder %v956, 0.0
          %vm1015 = vcmp.ge.f32.partialorder %v961, 0.0
          %vm1016 = vcmp.ge.f32.partialorder %v966, 0.0
          %vm1017 = vcmp.ge.f32.partialorder %v971, 0.0
          %vm1018 = vcmp.ge.f32.partialorder %v976, 0.0
          %vm1019 = vcmp.ge.f32.partialorder %v981, 0.0
          %vm1020 = vcmp.ge.f32.partialorder %v986, 0.0
          %vm1021 = vcmp.ge.f32.partialorder %v991, 0.0
          %vm1022 = vcmp.ge.f32.partialorder %v996, 0.0
          %vm1023 = vcmp.ge.f32.partialorder %v1001, 0.0
          %vm1024 = vcmp.ge.f32.partialorder %v1006, 0.0
          %v1025 = vmul.f32 %v931, 0.2
          %v1026 = vmul.f32 %v936, 0.2
          %v1027 = vmul.f32 %v941, 0.2
          %v1028 = vmul.f32 %v946, 0.2
          %v1029 = vmul.f32 %v951, 0.2
          %v1030 = vmul.f32 %v956, 0.2
          %v1031 = vmul.f32 %v961, 0.2
          %v1032 = vmul.f32 %v966, 0.2
          %v1033 = vmul.f32 %v971, 0.2
          %v1034 = vmul.f32 %v976, 0.2
          %v1035 = vmul.f32 %v981, 0.2
          %v1036 = vmul.f32 %v986, 0.2
          %v1037 = vmul.f32 %v991, 0.2
          %v1038 = vmul.f32 %v996, 0.2
          %v1039 = vmul.f32 %v1001, 0.2
          %v1040 = vmul.f32 %v1006, 0.2
          %v1041 = vsel %vm1009, %v931, %v1025
          %v1042 = vsel %vm1010, %v936, %v1026
          %v1043 = vsel %vm1011, %v941, %v1027
          %v1044 = vsel %vm1012, %v946, %v1028
          %v1045 = vsel %vm1013, %v951, %v1029
          %v1046 = vsel %vm1014, %v956, %v1030
          %v1047 = vsel %vm1015, %v961, %v1031
          %v1048 = vsel %vm1016, %v966, %v1032
          %v1049 = vsel %vm1017, %v971, %v1033
          %v1050 = vsel %vm1018, %v976, %v1034
          %v1051 = vsel %vm1019, %v981, %v1035
          %v1052 = vsel %vm1020, %v986, %v1036
          %v1053 = vsel %vm1021, %v991, %v1037
          %v1054 = vsel %vm1022, %v996, %v1038
          %v1055 = vsel %vm1023, %v1001, %v1039
          %v1056 = vsel %vm1024, %v1006, %v1040
          %v1057 = vmul.f32 %v1041, %v1041
          %v1058 = vmul.f32 %v1042, %v1042
          %v1059 = vmul.f32 %v1043, %v1043
          %v1060 = vmul.f32 %v1044, %v1044
          %v1061 = vmul.f32 %v1045, %v1045
          %v1062 = vmul.f32 %v1046, %v1046
          %v1063 = vmul.f32 %v1047, %v1047
          %v1064 = vmul.f32 %v1048, %v1048
          %v1065 = vmul.f32 %v1049, %v1049
          %v1066 = vmul.f32 %v1050, %v1050
          %v1067 = vmul.f32 %v1051, %v1051
          %v1068 = vmul.f32 %v1052, %v1052
          %v1069 = vmul.f32 %v1053, %v1053
          %v1070 = vmul.f32 %v1054, %v1054
          %v1071 = vmul.f32 %v1055, %v1055
          %v1072 = vmul.f32 %v1056, %v1056
          %v1073 = vsel %vm651, %v1057, 0.0
          %1074 = vadd.xlane.f32.xlu0 %v1073
          %v1075 = vpop.xlane.xlu0 %1074
          %v1076 = vsel %vm651, %v1058, 0.0
          %1077 = vadd.xlane.f32.xlu0 %v1076
          %v1078 = vpop.xlane.xlu0 %1077
          %v1079 = vsel %vm651, %v1059, 0.0
          %1080 = vadd.xlane.f32.xlu0 %v1079
          %v1081 = vpop.xlane.xlu0 %1080
          %v1082 = vsel %vm651, %v1060, 0.0
          %1083 = vadd.xlane.f32.xlu0 %v1082
          %v1084 = vpop.xlane.xlu0 %1083
          %v1085 = vsel %vm651, %v1061, 0.0
          %1086 = vadd.xlane.f32.xlu0 %v1085
          %v1087 = vpop.xlane.xlu0 %1086
          %v1088 = vsel %vm651, %v1062, 0.0
          %1089 = vadd.xlane.f32.xlu0 %v1088
          %v1090 = vpop.xlane.xlu0 %1089
          %v1091 = vsel %vm651, %v1063, 0.0
          %1092 = vadd.xlane.f32.xlu0 %v1091
          %v1093 = vpop.xlane.xlu0 %1092
          %v1094 = vsel %vm651, %v1064, 0.0
          %1095 = vadd.xlane.f32.xlu0 %v1094
          %v1096 = vpop.xlane.xlu0 %1095
          %v1097 = vsel %vm651, %v1065, 0.0
          %1098 = vadd.xlane.f32.xlu0 %v1097
          %v1099 = vpop.xlane.xlu0 %1098
          %v1100 = vsel %vm651, %v1066, 0.0
          %1101 = vadd.xlane.f32.xlu0 %v1100
          %v1102 = vpop.xlane.xlu0 %1101
          %v1103 = vsel %vm651, %v1067, 0.0
          %1104 = vadd.xlane.f32.xlu0 %v1103
          %v1105 = vpop.xlane.xlu0 %1104
          %v1106 = vsel %vm651, %v1068, 0.0
          %1107 = vadd.xlane.f32.xlu0 %v1106
          %v1108 = vpop.xlane.xlu0 %1107
          %v1109 = vsel %vm651, %v1069, 0.0
          %1110 = vadd.xlane.f32.xlu0 %v1109
          %v1111 = vpop.xlane.xlu0 %1110
          %v1112 = vsel %vm651, %v1070, 0.0
          %1113 = vadd.xlane.f32.xlu0 %v1112
          %v1114 = vpop.xlane.xlu0 %1113
          %v1115 = vsel %vm651, %v1071, 0.0
          %1116 = vadd.xlane.f32.xlu0 %v1115
          %v1117 = vpop.xlane.xlu0 %1116
          %v1118 = vsel %vm651, %v1072, 0.0
          %1119 = vadd.xlane.f32.xlu0 %v1118
          %v1120 = vpop.xlane.xlu0 %1119
          %v1121 = vmax.f32 %v1075, 1e-24
          %v1122 = vmax.f32 %v1078, 1e-24
          %v1123 = vmax.f32 %v1081, 1e-24
          %v1124 = vmax.f32 %v1084, 1e-24
          %v1125 = vmax.f32 %v1087, 1e-24
          %v1126 = vmax.f32 %v1090, 1e-24
          %v1127 = vmax.f32 %v1093, 1e-24
          %v1128 = vmax.f32 %v1096, 1e-24
          %v1129 = vmax.f32 %v1099, 1e-24
          %v1130 = vmax.f32 %v1102, 1e-24
          %v1131 = vmax.f32 %v1105, 1e-24
          %v1132 = vmax.f32 %v1108, 1e-24
          %v1133 = vmax.f32 %v1111, 1e-24
          %v1134 = vmax.f32 %v1114, 1e-24
          %v1135 = vmax.f32 %v1117, 1e-24
          %v1136 = vmax.f32 %v1120, 1e-24
          %v1137 = vrsqrt.pop %v1121
          %v1138 = vrsqrt.pop %v1122
          %v1139 = vrsqrt.pop %v1123
          %v1140 = vrsqrt.pop %v1124
          %v1141 = vrsqrt.pop %v1125
          %v1142 = vrsqrt.pop %v1126
          %v1143 = vrsqrt.pop %v1127
          %v1144 = vrsqrt.pop %v1128
          %v1145 = vrsqrt.pop %v1129
          %v1146 = vrsqrt.pop %v1130
          %v1147 = vrsqrt.pop %v1131
          %v1148 = vrsqrt.pop %v1132
          %v1149 = vrsqrt.pop %v1133
          %v1150 = vrsqrt.pop %v1134
          %v1151 = vrsqrt.pop %v1135
          %v1152 = vrsqrt.pop %v1136
          %v1153 = vmul.f32 %v1041, %v1137
          %v1154 = vmul.f32 %v1042, %v1138
          %v1155 = vmul.f32 %v1043, %v1139
          %v1156 = vmul.f32 %v1044, %v1140
          %v1157 = vmul.f32 %v1045, %v1141
          %v1158 = vmul.f32 %v1046, %v1142
          %v1159 = vmul.f32 %v1047, %v1143
          %v1160 = vmul.f32 %v1048, %v1144
          %v1161 = vmul.f32 %v1049, %v1145
          %v1162 = vmul.f32 %v1050, %v1146
          %v1163 = vmul.f32 %v1051, %v1147
          %v1164 = vmul.f32 %v1052, %v1148
          %v1165 = vmul.f32 %v1053, %v1149
          %v1166 = vmul.f32 %v1054, %v1150
          %v1167 = vmul.f32 %v1055, %v1151
          %v1168 = vmul.f32 %v1056, %v1152
          %1169 = vst.msk [vmem:[%s365] sm:$0xff] %vm651, %v1153
          %1170 = vst.msk [vmem:[%s365 + $0x8] sm:$0xff] %vm651, %v1154
          %1171 = vst.msk [vmem:[%s365 + $0x10] sm:$0xff] %vm651, %v1155
          %1172 = vst.msk [vmem:[%s365 + $0x18] sm:$0xff] %vm651, %v1156
          %1173 = vst.msk [vmem:[%s365 + $0x20] sm:$0xff] %vm651, %v1157
          %1174 = vst.msk [vmem:[%s365 + $0x28] sm:$0xff] %vm651, %v1158
          %1175 = vst.msk [vmem:[%s365 + $0x30] sm:$0xff] %vm651, %v1159
          %1176 = vst.msk [vmem:[%s365 + $0x38] sm:$0xff] %vm651, %v1160
          %1177 = vst.msk [vmem:[%s365 + $0x40] sm:$0xff] %vm651, %v1161
          %1178 = vst.msk [vmem:[%s365 + $0x48] sm:$0xff] %vm651, %v1162
          %1179 = vst.msk [vmem:[%s365 + $0x50] sm:$0xff] %vm651, %v1163
          %1180 = vst.msk [vmem:[%s365 + $0x58] sm:$0xff] %vm651, %v1164
          %1181 = vst.msk [vmem:[%s365 + $0x60] sm:$0xff] %vm651, %v1165
          %1182 = vst.msk [vmem:[%s365 + $0x68] sm:$0xff] %vm651, %v1166
          %1183 = vst.msk [vmem:[%s365 + $0x70] sm:$0xff] %vm651, %v1167
          %1184 = vst.msk [vmem:[%s365 + $0x78] sm:$0xff] %vm651, %v1168
        $region89: #{ngcf_forward.6} parent=76 // pred_fallthru
          _
        %s1185 = smul.u32 16, %s20
        %p1186 = scmp.lt.s32.totalorder %s1185, 31
        %s1187 = scalar_select %p1186, %s1185, 31
        %s1188 = smul.addr %s1187, 8
        %s1189 = scalar_lea.vmem %s5, %s1188
        // Predicated region
        $region90: #{ngcf_forward.6} parent=76 // pred_check
          %p1190 = pneg %p163
        $region91: #{ngcf_forward.6} parent=76 // pred_check_branch
          %1192 = sbr.rel (%p1190) target = $region93
        $region92: #{ngcf_forward.6} parent=76 // pred_region
          %s1193 = smul.u32 16, %s20
        $region93: #{ngcf_forward.6} parent=76 // pred_fallthru
          _
      $region77: #{ngcf_forward.6} parent=5 // pred_fallthru
        _
      %p1194 = scmp.le.s32.totalorder 2, %s11
      // Predicated region
      $region94: #{ngcf_forward.6} parent=5 // pred_check
        %p1195 = pneg %p1194
      $region95: #{ngcf_forward.6} parent=5 // pred_check_branch
        %1197 = sbr.rel (%p1195) target = $region97
      $region96: #{ngcf_forward.6} parent=5 // pred_region
        %s1198 = ssub.s32 %s11, 2
        // Predicated region
        $region98: #{ngcf_forward.6} parent=96 // pred_check
          %p1199 = pneg %p169
        $region99: #{ngcf_forward.6} parent=96 // pred_check_branch
          %1201 = sbr.rel (%p1199) target = $region101
        $region100: #{ngcf_forward.6} parent=96 // pred_region
          %s1202 = smul.u32 16, %s22
          %p1203 = scmp.lt.s32.totalorder %s1202, 31
          %s1204 = scalar_select %p1203, %s1202, 31
          %s1205 = smul.addr %s1204, 8
          %s1206 = scalar_lea.vmem %s5, %s1205
        $region101: #{ngcf_forward.6} parent=96 // pred_fallthru
          _
      $region97: #{ngcf_forward.6} parent=5 // pred_fallthru
        _
    $region6: #{ngcf_forward.6} parent=1 // loop_footer
      %s15 = sadd.s32 1, %s11
    $region7: #{ngcf_forward.6} parent=1 // loop_footer_branch
      %10 = sbr.rel target = $region3
    $region8: #{ngcf_forward.6} parent=1 // loop_exit
      _

// kernel: ngcf_forward.4
$region0: #{ngcf_forward.4}
  #allocation0 [shape = 'u32[]', space=smem, size = 0x4, offset = 0x4, fixed_abs, tag = 'smem constant byte address 0x4 - core index']
  #allocation1 [shape = 'u32[144,128]{1,0:T(1,128)}', space=vmem, size = 0x12000, scoped, tag = 'internal scratch']
  #allocation2 [shape = 'f32[128,32]{1,0:T(8,128)}', space=vmem, size = 0x10000, scoped, tag = 'scratch operand']
  %s0 = inlined_call_operand.vmem [shape: bf16[256,384], index: 0, kind: input, shape index: {}]
  %s1 = inlined_call_operand.vmem [shape: bf16[384,32], index: 1, kind: input, shape index: {}]
  %s2 = inlined_call_operand.vmem [shape: f32[256,32], index: 2, kind: input, shape index: {}]
  %s3 = inlined_call_operand.vmem [shape: f32[64,32], index: 3, kind: input, shape index: {}]
  %s4 = inlined_call_operand.vmem [shape: f32[1,32], index: 4, kind: input, shape index: {}]
  %s5 = inlined_call_operand.vmem [shape: f32[256,32], index: 5, kind: output, shape index: {0}]
  %s6 = inlined_call_operand.vmem [shape: f32[256,32], index: 6, kind: output, shape index: {1}]
  %7 = xla_tuple %s5, %s6
  %s8 = sld [smem:[#allocation0]]
  $region110: #{ngcf_forward.4} parent=0
    _
  %s10 = ssub.s32 1, %s8
  %s11 = scalar_select 0, %s10, %s8
  $region1: #{ngcf_forward.4} parent=0
    #allocation3 [shape = 'u8[65536]{0}', space=vmem, size = 0x10000, scoped, tag = 'input window, operand 0']
    loop: start=0, step=1, limit=8
    $region2: #{ngcf_forward.4} parent=1 // loop_pre_header
      _
    $region3: #{ngcf_forward.4} parent=1 // loop_header
      %s13 = sphi 0, %s17
      %p14 = scmp.ge.s32.totalorder %s13, 8
      %s20 = sphi 0, %s32
      %s21 = sphi 0, %s28
      %s22 = sphi 0, %s20
      %s23 = sphi 0, %s21
      %s24 = sphi 0, %s22
      %s25 = sphi 0, %s23
      %s37 = sphi 0, %s39
      %s40 = sphi 0, %s37
      %s41 = sphi 0, %s40
      %s57 = sphi 0, %s41
      %s61 = sphi 0, %s61
      %s63 = sphi 0, %s61
      %s64 = sphi 0, %s63
      %s78 = sphi 0, %s64
      %s84 = sphi 0, %s86
      %s87 = sphi 0, %s84
      %s88 = sphi 0, %s87
      %s104 = sphi 0, %s88
      %s108 = sphi 0, %s108
      %s110 = sphi 0, %s108
      %s111 = sphi 0, %s110
      %s125 = sphi 0, %s111
      %s129 = sphi 0, %s129
      %s131 = sphi 0, %s129
      %s132 = sphi 0, %s131
      %s146 = sphi 0, %s132
      %s152 = sphi 0, %s154
      %s155 = sphi 0, %s152
      %s156 = sphi 0, %s155
      %s172 = sphi 0, %s156
      %s178 = sphi 0, %s180
      %s181 = sphi 0, %s178
      %s182 = sphi 0, %s181
      %s198 = sphi 0, %s182
    $region4: #{ngcf_forward.4} parent=1 // loop_header_branch
      %16 = sbr.rel (%p14) target = $region8
    $region5: #{ngcf_forward.4} parent=1 // loop_body
      %s18 = ssub.s32 %s13, 1
      %s19 = ssub.s32 %s13, 2
      %s26 = sadd.s32 1, %s21
      %p27 = scmp.ge.s32.totalorder %s26, 3
      %s28 = scalar_select %p27, 0, %s26
      %s29 = sadd.s32 1, %s20
      %s30 = scalar_select %p27, %s29, %s20
      %p31 = scmp.ge.s32.totalorder %s30, 2
      %s32 = scalar_select %p31, 0, %s30
      %s33 = ssub.s32 %s20, %s32
      %s34 = ssub.s32 %s21, %s28
      %s35 = sor.u32 %s33, %s34
      %p36 = scmp.eq.s32.totalorder %s35, 0
      %s38 = sadd.s32 %s37, 1
      %s39 = scalar_select %p36, %s37, %s38
      %p42 = pneg %p36
      %p43 = scmp.eq.s32.totalorder %s13, 5
      %p44 = por %p42, %p43
      %p45 = scmp.ne.s32.totalorder %s37, %s40
      %p46 = scmp.eq.s32.totalorder %s13, 0
      %p47 = por %p45, %p46
      %p48 = scmp.ne.s32.totalorder %s37, %s40
      %p49 = scmp.eq.s32.totalorder %s18, 5
      %p50 = por %p48, %p49
      %p51 = scmp.ne.s32.totalorder %s40, %s41
      %p52 = scmp.eq.s32.totalorder %s18, 0
      %p53 = por %p51, %p52
      %p54 = scmp.ne.s32.totalorder %s40, %s41
      %p55 = scmp.eq.s32.totalorder %s19, 5
      %p56 = por %p54, %p55
      %p58 = scmp.ne.s32.totalorder %s41, %s57
      %p59 = scmp.eq.s32.totalorder %s19, 0
      %p60 = por %p58, %p59
      %s62 = sadd.s32 %s61, 1
      %p65 = scmp.eq.s32.totalorder %s13, 5
      %p66 = scmp.ne.s32.totalorder %s61, %s63
      %p67 = scmp.eq.s32.totalorder %s13, 0
      %p68 = por %p66, %p67
      %p69 = scmp.ne.s32.totalorder %s61, %s63
      %p70 = scmp.eq.s32.totalorder %s18, 5
      %p71 = por %p69, %p70
      %p72 = scmp.ne.s32.totalorder %s63, %s64
      %p73 = scmp.eq.s32.totalorder %s18, 0
      %p74 = por %p72, %p73
      %p75 = scmp.ne.s32.totalorder %s63, %s64
      %p76 = scmp.eq.s32.totalorder %s19, 5
      %p77 = por %p75, %p76
      %p79 = scmp.ne.s32.totalorder %s64, %s78
      %p80 = scmp.eq.s32.totalorder %s19, 0
      %p81 = por %p79, %p80
      %s82 = ssub.s32 %s20, %s32
      %p83 = scmp.eq.s32.totalorder %s82, 0
      %s85 = sadd.s32 %s84, 1
      %s86 = scalar_select %p83, %s84, %s85
      %p89 = pneg %p83
      %p90 = scmp.eq.s32.totalorder %s13, 5
      %p91 = por %p89, %p90
      %p92 = scmp.ne.s32.totalorder %s84, %s87
      %p93 = scmp.eq.s32.totalorder %s13, 0
      %p94 = por %p92, %p93
      %p95 = scmp.ne.s32.totalorder %s84, %s87
      %p96 = scmp.eq.s32.totalorder %s18, 5
      %p97 = por %p95, %p96
      %p98 = scmp.ne.s32.totalorder %s87, %s88
      %p99 = scmp.eq.s32.totalorder %s18, 0
      %p100 = por %p98, %p99
      %p101 = scmp.ne.s32.totalorder %s87, %s88
      %p102 = scmp.eq.s32.totalorder %s19, 5
      %p103 = por %p101, %p102
      %p105 = scmp.ne.s32.totalorder %s88, %s104
      %p106 = scmp.eq.s32.totalorder %s19, 0
      %p107 = por %p105, %p106
      %s109 = sadd.s32 %s108, 1
      %p112 = scmp.eq.s32.totalorder %s13, 5
      %p113 = scmp.ne.s32.totalorder %s108, %s110
      %p114 = scmp.eq.s32.totalorder %s13, 0
      %p115 = por %p113, %p114
      %p116 = scmp.ne.s32.totalorder %s108, %s110
      %p117 = scmp.eq.s32.totalorder %s18, 5
      %p118 = por %p116, %p117
      %p119 = scmp.ne.s32.totalorder %s110, %s111
      %p120 = scmp.eq.s32.totalorder %s18, 0
      %p121 = por %p119, %p120
      %p122 = scmp.ne.s32.totalorder %s110, %s111
      %p123 = scmp.eq.s32.totalorder %s19, 5
      %p124 = por %p122, %p123
      %p126 = scmp.ne.s32.totalorder %s111, %s125
      %p127 = scmp.eq.s32.totalorder %s19, 0
      %p128 = por %p126, %p127
      %s130 = sadd.s32 %s129, 1
      %p133 = scmp.eq.s32.totalorder %s13, 5
      %p134 = scmp.ne.s32.totalorder %s129, %s131
      %p135 = scmp.eq.s32.totalorder %s13, 0
      %p136 = por %p134, %p135
      %p137 = scmp.ne.s32.totalorder %s129, %s131
      %p138 = scmp.eq.s32.totalorder %s18, 5
      %p139 = por %p137, %p138
      %p140 = scmp.ne.s32.totalorder %s131, %s132
      %p141 = scmp.eq.s32.totalorder %s18, 0
      %p142 = por %p140, %p141
      %p143 = scmp.ne.s32.totalorder %s131, %s132
      %p144 = scmp.eq.s32.totalorder %s19, 5
      %p145 = por %p143, %p144
      %p147 = scmp.ne.s32.totalorder %s132, %s146
      %p148 = scmp.eq.s32.totalorder %s19, 0
      %p149 = por %p147, %p148
      %s150 = ssub.s32 %s20, %s32
      %p151 = scmp.eq.s32.totalorder %s150, 0
      %s153 = sadd.s32 %s152, 1
      %s154 = scalar_select %p151, %s152, %s153
      %p157 = pneg %p151
      %p158 = scmp.eq.s32.totalorder %s13, 5
      %p159 = por %p157, %p158
      %p160 = scmp.ne.s32.totalorder %s152, %s155
      %p161 = scmp.eq.s32.totalorder %s13, 0
      %p162 = por %p160, %p161
      %p163 = scmp.ne.s32.totalorder %s152, %s155
      %p164 = scmp.eq.s32.totalorder %s18, 5
      %p165 = por %p163, %p164
      %p166 = scmp.ne.s32.totalorder %s155, %s156
      %p167 = scmp.eq.s32.totalorder %s18, 0
      %p168 = por %p166, %p167
      %p169 = scmp.ne.s32.totalorder %s155, %s156
      %p170 = scmp.eq.s32.totalorder %s19, 5
      %p171 = por %p169, %p170
      %p173 = scmp.ne.s32.totalorder %s156, %s172
      %p174 = scmp.eq.s32.totalorder %s19, 0
      %p175 = por %p173, %p174
      %s176 = ssub.s32 %s20, %s32
      %p177 = scmp.eq.s32.totalorder %s176, 0
      %s179 = sadd.s32 %s178, 1
      %s180 = scalar_select %p177, %s178, %s179
      %p183 = pneg %p177
      %p184 = scmp.eq.s32.totalorder %s13, 5
      %p185 = por %p183, %p184
      %p186 = scmp.ne.s32.totalorder %s178, %s181
      %p187 = scmp.eq.s32.totalorder %s13, 0
      %p188 = por %p186, %p187
      %p189 = scmp.ne.s32.totalorder %s178, %s181
      %p190 = scmp.eq.s32.totalorder %s18, 5
      %p191 = por %p189, %p190
      %p192 = scmp.ne.s32.totalorder %s181, %s182
      %p193 = scmp.eq.s32.totalorder %s18, 0
      %p194 = por %p192, %p193
      %p195 = scmp.ne.s32.totalorder %s181, %s182
      %p196 = scmp.eq.s32.totalorder %s19, 5
      %p197 = por %p195, %p196
      %p199 = scmp.ne.s32.totalorder %s182, %s198
      %p200 = scmp.eq.s32.totalorder %s19, 0
      %p201 = por %p199, %p200
      %p202 = scmp.le.s32.totalorder 1, %s13
      %p203 = scmp.lt.s32.totalorder %s13, 7
      %p204 = pnand %p202, %p203
      %p205 = pneg %p204
      // Predicated region
      $region9: #{ngcf_forward.4} parent=5 // pred_check
        _
      $region10: #{ngcf_forward.4} parent=5 // pred_check_branch
        %207 = sbr.rel (%p204) target = $region12
      $region11: #{ngcf_forward.4} parent=5 // pred_region
        %s208 = ssub.s32 %s13, 1
        // Predicated region
        $region13: #{ngcf_forward.4} parent=11 // pred_check
          %p209 = pneg %p74
        $region14: #{ngcf_forward.4} parent=11 // pred_check_branch
          %211 = sbr.rel (%p209) target = $region16
        $region15: #{ngcf_forward.4} parent=11 // pred_region
          _
        $region16: #{ngcf_forward.4} parent=11 // pred_fallthru
          _
        // Predicated region
        $region17: #{ngcf_forward.4} parent=11 // pred_check
          %p212 = pneg %p121
        $region18: #{ngcf_forward.4} parent=11 // pred_check_branch
          %214 = sbr.rel (%p212) target = $region20
        $region19: #{ngcf_forward.4} parent=11 // pred_region
          _
        $region20: #{ngcf_forward.4} parent=11 // pred_fallthru
          _
        // Predicated region
        $region21: #{ngcf_forward.4} parent=11 // pred_check
          %p215 = pneg %p142
        $region22: #{ngcf_forward.4} parent=11 // pred_check_branch
          %217 = sbr.rel (%p215) target = $region24
        $region23: #{ngcf_forward.4} parent=11 // pred_region
          _
        $region24: #{ngcf_forward.4} parent=11 // pred_fallthru
          _
      $region12: #{ngcf_forward.4} parent=5 // pred_fallthru
        _
      %p218 = scmp.lt.s32.totalorder %s13, 6
      // Predicated region
      $region25: #{ngcf_forward.4} parent=5 // pred_check
        %p219 = pneg %p218
      $region26: #{ngcf_forward.4} parent=5 // pred_check_branch
        %221 = sbr.rel (%p219) target = $region28
      $region27: #{ngcf_forward.4} parent=5 // pred_region
        // Predicated region
        $region29: #{ngcf_forward.4} parent=27 // pred_check
          %p222 = pneg %p47
        $region30: #{ngcf_forward.4} parent=27 // pred_check_branch
          %224 = sbr.rel (%p222) target = $region32
        $region31: #{ngcf_forward.4} parent=27 // pred_region
          %s225 = sand.u32 %s37, 1
          %s226 = sand.u32 %s37, 1
          %s227 = smul.addr %s226, 64
          %s228 = scalar_lea.vmem [#allocation3], %s227
          %s229 = smul.u32 16, %s20
          %s230 = smul.addr %s229, 3
          %s231 = sadd.s32 %s21, %s230
          %s232 = smul.addr %s231, 4
          %s233 = scalar_lea.vmem %s0, %s232
          // Predicated region
          $region33: #{ngcf_forward.4} parent=31 // pred_check
            _
          $region34: #{ngcf_forward.4} parent=31 // pred_check_branch
            %235 = sbr.rel (0) target = $region36
          $region35: #{ngcf_forward.4} parent=31 // pred_region
            // Predicated region
            $region37: #{ngcf_forward.4} parent=35 // pred_check
              _
            $region38: #{ngcf_forward.4} parent=35 // pred_check_branch
              %237 = sbr.rel target = $region40
            $region39: #{ngcf_forward.4} parent=35 // pred_region
              // Predicated region
              $region52: #{ngcf_forward.4} parent=39 // pred_check
                _
              $region53: #{ngcf_forward.4} parent=39 // pred_check_branch
                %282 = sbr.rel (0) target = $region55
              $region54: #{ngcf_forward.4} parent=39 // pred_region
                loop: start=0, step=1, limit=1
                $region56: #{ngcf_forward.4} parent=54 // loop_pre_header
                  _
                $region57: #{ngcf_forward.4} parent=54 // loop_header
                  %s284 = sphi 0, %s288
                  %p285 = scmp.ge.s32.totalorder %s284, 1
                  %s289 = sphi %s233, %s233
                  %s290 = sphi %s228, %s228
                $region58: #{ngcf_forward.4} parent=54 // loop_header_branch
                  %287 = sbr.rel (%p285) target = $region62
                $region59: #{ngcf_forward.4} parent=54 // loop_body
                  _
                $region60: #{ngcf_forward.4} parent=54 // loop_footer
                  %s288 = sadd.s32 1, %s284
                $region61: #{ngcf_forward.4} parent=54 // loop_footer_branch
                  %283 = sbr.rel target = $region57
                $region62: #{ngcf_forward.4} parent=54 // loop_exit
                  _
                loop: start=0, step=1, limit=1
                $region63: #{ngcf_forward.4} parent=54 // loop_pre_header
                  _
                $region64: #{ngcf_forward.4} parent=54 // loop_header
                  %s293 = sphi 0, %s297
                  %p294 = scmp.ge.s32.totalorder %s293, 1
                  %s298 = sphi %s233, %s233
                  %s299 = sphi %s228, %s228
                $region65: #{ngcf_forward.4} parent=54 // loop_header_branch
                  %296 = sbr.rel (%p294) target = $region69
                $region66: #{ngcf_forward.4} parent=54 // loop_body
                  %v300 = vld [vmem:[%s298] sm:$0xf]
                  %301 = vst [vmem:[%s299] sm:$0xf] %v300
                  %v302 = vld [vmem:[%s298 + $0xc] sm:$0xf]
                  %303 = vst [vmem:[%s299 + $0x4] sm:$0xf] %v302
                  %v304 = vld [vmem:[%s298 + $0x18] sm:$0xf]
                  %305 = vst [vmem:[%s299 + $0x8] sm:$0xf] %v304
                  %v306 = vld [vmem:[%s298 + $0x24] sm:$0xf]
                  %307 = vst [vmem:[%s299 + $0xc] sm:$0xf] %v306
                  %v308 = vld [vmem:[%s298 + $0x30] sm:$0xf]
                  %309 = vst [vmem:[%s299 + $0x10] sm:$0xf] %v308
                  %v310 = vld [vmem:[%s298 + $0x3c] sm:$0xf]
                  %311 = vst [vmem:[%s299 + $0x14] sm:$0xf] %v310
                  %v312 = vld [vmem:[%s298 + $0x48] sm:$0xf]
                  %313 = vst [vmem:[%s299 + $0x18] sm:$0xf] %v312
                  %v314 = vld [vmem:[%s298 + $0x54] sm:$0xf]
                  %315 = vst [vmem:[%s299 + $0x1c] sm:$0xf] %v314
                  %v316 = vld [vmem:[%s298 + $0x60] sm:$0xf]
                  %317 = vst [vmem:[%s299 + $0x20] sm:$0xf] %v316
                  %v318 = vld [vmem:[%s298 + $0x6c] sm:$0xf]
                  %319 = vst [vmem:[%s299 + $0x24] sm:$0xf] %v318
                  %v320 = vld [vmem:[%s298 + $0x78] sm:$0xf]
                  %321 = vst [vmem:[%s299 + $0x28] sm:$0xf] %v320
                  %v322 = vld [vmem:[%s298 + $0x84] sm:$0xf]
                  %323 = vst [vmem:[%s299 + $0x2c] sm:$0xf] %v322
                  %v324 = vld [vmem:[%s298 + $0x90] sm:$0xf]
                  %325 = vst [vmem:[%s299 + $0x30] sm:$0xf] %v324
                  %v326 = vld [vmem:[%s298 + $0x9c] sm:$0xf]
                  %327 = vst [vmem:[%s299 + $0x34] sm:$0xf] %v326
                  %v328 = vld [vmem:[%s298 + $0xa8] sm:$0xf]
                  %329 = vst [vmem:[%s299 + $0x38] sm:$0xf] %v328
                  %v330 = vld [vmem:[%s298 + $0xb4] sm:$0xf]
                  %331 = vst [vmem:[%s299 + $0x3c] sm:$0xf] %v330
                $region67: #{ngcf_forward.4} parent=54 // loop_footer
                  %s297 = sadd.s32 1, %s293
                $region68: #{ngcf_forward.4} parent=54 // loop_footer_branch
                  %292 = sbr.rel target = $region64
                $region69: #{ngcf_forward.4} parent=54 // loop_exit
                  _
              $region55: #{ngcf_forward.4} parent=39 // pred_fallthru
                _
            $region40: #{ngcf_forward.4} parent=35 // pred_fallthru
              _
            // Predicated region
            $region41: #{ngcf_forward.4} parent=35 // pred_check
              _
            $region42: #{ngcf_forward.4} parent=35 // pred_check_branch
              %239 = sbr.rel (0) target = $region44
            $region43: #{ngcf_forward.4} parent=35 // pred_region
              loop: start=0, step=1, limit=1
              $region45: #{ngcf_forward.4} parent=43 // loop_pre_header
                _
              $region46: #{ngcf_forward.4} parent=43 // loop_header
                %s242 = sphi 0, %s246
                %p243 = scmp.ge.s32.totalorder %s242, 1
                %s247 = sphi %s233, %s233
                %s248 = sphi %s228, %s228
              $region47: #{ngcf_forward.4} parent=43 // loop_header_branch
                %245 = sbr.rel (%p243) target = $region51
              $region48: #{ngcf_forward.4} parent=43 // loop_body
                %v249 = vld [vmem:[%s247] sm:$0xf]
                %250 = vst [vmem:[%s248] sm:$0xf] %v249
                %v251 = vld [vmem:[%s247 + $0xc] sm:$0xf]
                %252 = vst [vmem:[%s248 + $0x4] sm:$0xf] %v251
                %v253 = vld [vmem:[%s247 + $0x18] sm:$0xf]
                %254 = vst [vmem:[%s248 + $0x8] sm:$0xf] %v253
                %v255 = vld [vmem:[%s247 + $0x24] sm:$0xf]
                %256 = vst [vmem:[%s248 + $0xc] sm:$0xf] %v255
                %v257 = vld [vmem:[%s247 + $0x30] sm:$0xf]
                %258 = vst [vmem:[%s248 + $0x10] sm:$0xf] %v257
                %v259 = vld [vmem:[%s247 + $0x3c] sm:$0xf]
                %260 = vst [vmem:[%s248 + $0x14] sm:$0xf] %v259
                %v261 = vld [vmem:[%s247 + $0x48] sm:$0xf]
                %262 = vst [vmem:[%s248 + $0x18] sm:$0xf] %v261
                %v263 = vld [vmem:[%s247 + $0x54] sm:$0xf]
                %264 = vst [vmem:[%s248 + $0x1c] sm:$0xf] %v263
                %v265 = vld [vmem:[%s247 + $0x60] sm:$0xf]
                %266 = vst [vmem:[%s248 + $0x20] sm:$0xf] %v265
                %v267 = vld [vmem:[%s247 + $0x6c] sm:$0xf]
                %268 = vst [vmem:[%s248 + $0x24] sm:$0xf] %v267
                %v269 = vld [vmem:[%s247 + $0x78] sm:$0xf]
                %270 = vst [vmem:[%s248 + $0x28] sm:$0xf] %v269
                %v271 = vld [vmem:[%s247 + $0x84] sm:$0xf]
                %272 = vst [vmem:[%s248 + $0x2c] sm:$0xf] %v271
                %v273 = vld [vmem:[%s247 + $0x90] sm:$0xf]
                %274 = vst [vmem:[%s248 + $0x30] sm:$0xf] %v273
                %v275 = vld [vmem:[%s247 + $0x9c] sm:$0xf]
                %276 = vst [vmem:[%s248 + $0x34] sm:$0xf] %v275
                %v277 = vld [vmem:[%s247 + $0xa8] sm:$0xf]
                %278 = vst [vmem:[%s248 + $0x38] sm:$0xf] %v277
                %v279 = vld [vmem:[%s247 + $0xb4] sm:$0xf]
                %280 = vst [vmem:[%s248 + $0x3c] sm:$0xf] %v279
              $region49: #{ngcf_forward.4} parent=43 // loop_footer
                %s246 = sadd.s32 1, %s242
              $region50: #{ngcf_forward.4} parent=43 // loop_footer_branch
                %241 = sbr.rel target = $region46
              $region51: #{ngcf_forward.4} parent=43 // loop_exit
                _
            $region44: #{ngcf_forward.4} parent=35 // pred_fallthru
              _
          $region36: #{ngcf_forward.4} parent=31 // pred_fallthru
            _
          %332 = vnop
        $region32: #{ngcf_forward.4} parent=27 // pred_fallthru
          _
        // Predicated region
        $region70: #{ngcf_forward.4} parent=27 // pred_check
          %p333 = pneg %p94
        $region71: #{ngcf_forward.4} parent=27 // pred_check_branch
          %335 = sbr.rel (%p333) target = $region73
        $region72: #{ngcf_forward.4} parent=27 // pred_region
          %s336 = smul.u32 16, %s20
          %p337 = scmp.lt.s32.totalorder %s336, 31
          %s338 = scalar_select %p337, %s336, 31
          %s339 = smul.addr %s338, 8
          %s340 = scalar_lea.vmem %s2, %s339
          %s341 = smul.u32 16, %s20
        $region73: #{ngcf_forward.4} parent=27 // pred_fallthru
          _
      $region28: #{ngcf_forward.4} parent=5 // pred_fallthru
        _
      %p342 = scmp.le.s32.totalorder 1, %s13
      %p343 = scmp.lt.s32.totalorder %s13, 7
      %p344 = pnand %p342, %p343
      %p345 = pneg %p344
      // Predicated region
      $region74: #{ngcf_forward.4} parent=5 // pred_check
        _
      $region75: #{ngcf_forward.4} parent=5 // pred_check_branch
        %347 = sbr.rel (%p344) target = $region77
      $region76: #{ngcf_forward.4} parent=5 // pred_region
        %s348 = ssub.s32 %s13, 1
        %s349 = sand.u32 %s40, 1
        %s350 = sand.u32 %s40, 1
        %s351 = smul.addr %s350, 64
        %s352 = scalar_lea.vmem [#allocation3], %s351
        // Predicated region
        $region78: #{ngcf_forward.4} parent=76 // pred_check
          %p353 = pneg %p53
        $region79: #{ngcf_forward.4} parent=76 // pred_check_branch
          %355 = sbr.rel (%p353) target = $region81
        $region80: #{ngcf_forward.4} parent=76 // pred_region
          _
        $region81: #{ngcf_forward.4} parent=76 // pred_fallthru
          _
        %s356 = sand.u32 %s40, 1
        %s357 = sand.u32 %s40, 1
        %s358 = smul.addr %s357, 64
        %s359 = scalar_lea.vmem [#allocation3], %s358
        %p360 = pneg %p53
        %p361 = pneg %p50
        %p362 = pneg %p74
        %p363 = pneg %p71
        %s364 = smul.u32 16, %s22
        %p365 = scmp.lt.s32.totalorder %s364, 31
        %s366 = scalar_select %p365, %s364, 31
        %s367 = smul.addr %s366, 8
        %s368 = scalar_lea.vmem %s2, %s367
        %p369 = pneg %p100
        %p370 = pneg %p97
        %p371 = pneg %p121
        %p372 = pneg %p118
        %p373 = pneg %p142
        %p374 = pneg %p139
        %p375 = pneg %p168
        %p376 = pneg %p165
        %s377 = smul.u32 16, %s22
        %p378 = scmp.lt.s32.totalorder %s377, 31
        %s379 = scalar_select %p378, %s377, 31
        %s380 = smul.addr %s379, 8
        %s381 = scalar_lea.vmem %s5, %s380
        %p382 = pneg %p194
        %p383 = pneg %p191
        %s384 = smul.u32 16, %s22
        %p385 = scmp.lt.s32.totalorder %s384, 31
        %s386 = scalar_select %p385, %s384, 31
        %s387 = smul.addr %s386, 8
        %s388 = scalar_lea.vmem %s6, %s387
        %s389 = smul.u32 16, %s22
        %s390 = smul.u32 16, %s22
        %p391 = scmp.lt.s32.totalorder %s390, 31
        %s392 = scalar_select %p391, %s390, 31
        %s393 = smul.addr %s392, 8
        %s394 = scalar_lea.vmem %s2, %s393
        %s395 = smul.u32 16, %s22
        %s396 = smul.u32 16, %s22
        %p397 = scmp.lt.s32.totalorder %s396, 31
        %s398 = scalar_select %p397, %s396, 31
        %s399 = smul.addr %s398, 8
        %s400 = scalar_lea.vmem %s5, %s399
        %s401 = smul.u32 16, %s22
        %s402 = smul.u32 16, %s22
        %p403 = scmp.lt.s32.totalorder %s402, 31
        %s404 = scalar_select %p403, %s402, 31
        %s405 = smul.addr %s404, 8
        %s406 = scalar_lea.vmem %s6, %s405
        %s407 = smul.u32 16, %s22
        %p409 = scmp.eq.s32.totalorder %s23, 0
        // Predicated region
        $region82: #{ngcf_forward.4} parent=76 // pred_check
          %p410 = pneg %p409
        $region83: #{ngcf_forward.4} parent=76 // pred_check_branch
          %412 = sbr.rel (%p410) target = $region85
        $region84: #{ngcf_forward.4} parent=76 // pred_region
          %vm413 = vcmask 261120
          %414 = vst.msk [vmem:[#allocation2] sm:$0xff] %vm413, 0.0
          %415 = vst.msk [vmem:[#allocation2 + $0x8] sm:$0xff] %vm413, 0.0
          %416 = vst.msk [vmem:[#allocation2 + $0x10] sm:$0xff] %vm413, 0.0
          %417 = vst.msk [vmem:[#allocation2 + $0x18] sm:$0xff] %vm413, 0.0
          %418 = vst.msk [vmem:[#allocation2 + $0x20] sm:$0xff] %vm413, 0.0
          %419 = vst.msk [vmem:[#allocation2 + $0x28] sm:$0xff] %vm413, 0.0
          %420 = vst.msk [vmem:[#allocation2 + $0x30] sm:$0xff] %vm413, 0.0
          %421 = vst.msk [vmem:[#allocation2 + $0x38] sm:$0xff] %vm413, 0.0
          %422 = vst.msk [vmem:[#allocation2 + $0x40] sm:$0xff] %vm413, 0.0
          %423 = vst.msk [vmem:[#allocation2 + $0x48] sm:$0xff] %vm413, 0.0
          %424 = vst.msk [vmem:[#allocation2 + $0x50] sm:$0xff] %vm413, 0.0
          %425 = vst.msk [vmem:[#allocation2 + $0x58] sm:$0xff] %vm413, 0.0
          %426 = vst.msk [vmem:[#allocation2 + $0x60] sm:$0xff] %vm413, 0.0
          %427 = vst.msk [vmem:[#allocation2 + $0x68] sm:$0xff] %vm413, 0.0
          %428 = vst.msk [vmem:[#allocation2 + $0x70] sm:$0xff] %vm413, 0.0
          %429 = vst.msk [vmem:[#allocation2 + $0x78] sm:$0xff] %vm413, 0.0
        $region85: #{ngcf_forward.4} parent=76 // pred_fallthru
          _
        %s430 = smul.u32 %s23, 128
        %s431 = sshra.s32 %s430, 3
        %s432 = sand.u32 %s430, 7
        %s433 = smul.addr %s431, 4
        %s434 = scalar_lea.vmem %s1, %s433
        %v435 = vld [vmem:[%s434] sm:$0xf]
        %v436 = vld [vmem:[%s434 + $0x4] sm:$0xf]
        %v437 = vld [vmem:[%s434 + $0x8] sm:$0xf]
        %v438 = vld [vmem:[%s434 + $0xc] sm:$0xf]
        %v439 = vld [vmem:[%s434 + $0x10] sm:$0xf]
        %v440 = vld [vmem:[%s434 + $0x14] sm:$0xf]
        %v441 = vld [vmem:[%s434 + $0x18] sm:$0xf]
        %v442 = vld [vmem:[%s434 + $0x1c] sm:$0xf]
        %v443 = vld [vmem:[%s434 + $0x20] sm:$0xf]
        %v444 = vld [vmem:[%s434 + $0x24] sm:$0xf]
        %v445 = vld [vmem:[%s434 + $0x28] sm:$0xf]
        %v446 = vld [vmem:[%s434 + $0x2c] sm:$0xf]
        %v447 = vld [vmem:[%s434 + $0x30] sm:$0xf]
        %v448 = vld [vmem:[%s434 + $0x34] sm:$0xf]
        %v449 = vld [vmem:[%s434 + $0x38] sm:$0xf]
        %v450 = vld [vmem:[%s434 + $0x3c] sm:$0xf]
        %v451 = vld [vmem:[%s352] sm:$0xf]
        %v452 = vld [vmem:[%s352 + $0x4] sm:$0xf]
        %v453 = vld [vmem:[%s352 + $0x8] sm:$0xf]
        %v454 = vld [vmem:[%s352 + $0xc] sm:$0xf]
        %v455 = vld [vmem:[%s352 + $0x10] sm:$0xf]
        %v456 = vld [vmem:[%s352 + $0x14] sm:$0xf]
        %v457 = vld [vmem:[%s352 + $0x18] sm:$0xf]
        %v458 = vld [vmem:[%s352 + $0x1c] sm:$0xf]
        %v459 = vld [vmem:[%s352 + $0x20] sm:$0xf]
        %v460 = vld [vmem:[%s352 + $0x24] sm:$0xf]
        %v461 = vld [vmem:[%s352 + $0x28] sm:$0xf]
        %v462 = vld [vmem:[%s352 + $0x2c] sm:$0xf]
        %v463 = vld [vmem:[%s352 + $0x30] sm:$0xf]
        %v464 = vld [vmem:[%s352 + $0x34] sm:$0xf]
        %v465 = vld [vmem:[%s352 + $0x38] sm:$0xf]
        %v466 = vld [vmem:[%s352 + $0x3c] sm:$0xf]
        %v483 = vunpack.c.l.b16 %v451
        %v484 = vunpack.c.l.b16 %v452
        %v485 = vunpack.c.l.b16 %v453
        %v486 = vunpack.c.l.b16 %v454
        %v487 = vunpack.c.l.b16 %v455
        %v488 = vunpack.c.l.b16 %v456
        %v489 = vunpack.c.l.b16 %v457
        %v490 = vunpack.c.l.b16 %v458
        %v491 = vunpack.c.l.b16 %v459
        %v492 = vunpack.c.l.b16 %v460
        %v493 = vunpack.c.l.b16 %v461
        %v494 = vunpack.c.l.b16 %v462
        %v495 = vunpack.c.l.b16 %v463
        %v496 = vunpack.c.l.b16 %v464
        %v497 = vunpack.c.l.b16 %v465
        %v498 = vunpack.c.l.b16 %v466
        %v499 = vpack.c.b16 %v484, %v483
        %v500 = vpack.c.b16 %v486, %v485
        %v501 = vpack.c.b16 %v488, %v487
        %v502 = vpack.c.b16 %v490, %v489
        %v503 = vpack.c.b16 %v492, %v491
        %v504 = vpack.c.b16 %v494, %v493
        %v505 = vpack.c.b16 %v496, %v495
        %v506 = vpack.c.b16 %v498, %v497
        %v531 = vunpack.c.l.b16 %v435
        %v532 = vunpack.c.l.b16 %v436
        %v533 = vunpack.c.l.b16 %v437
        %v534 = vunpack.c.l.b16 %v438
        %v535 = vunpack.c.l.b16 %v439
        %v536 = vunpack.c.l.b16 %v440
        %v537 = vunpack.c.l.b16 %v441
        %v538 = vunpack.c.l.b16 %v442
        %v539 = vunpack.c.l.b16 %v443
        %v540 = vunpack.c.l.b16 %v444
        %v541 = vunpack.c.l.b16 %v445
        %v542 = vunpack.c.l.b16 %v446
        %v543 = vunpack.c.l.b16 %v447
        %v544 = vunpack.c.l.b16 %v448
        %v545 = vunpack.c.l.b16 %v449
        %v546 = vunpack.c.l.b16 %v450
        %v547 = vpack.c.b16 %v532, %v531
        %v548 = vpack.c.b16 %v534, %v533
        %v549 = vpack.c.b16 %v536, %v535
        %v550 = vpack.c.b16 %v538, %v537
        %v551 = vpack.c.b16 %v540, %v539
        %v552 = vpack.c.b16 %v542, %v541
        %v553 = vpack.c.b16 %v544, %v543
        %v554 = vpack.c.b16 %v546, %v545
        %563 = vmatprep.subr.bf16.mxu0 0
        %564 = vmatpush1.bf16.msra.mxu0 %v547
        %565 = vmatprep.subr.bf16.mxu0 0
        %566 = vmatpush1.bf16.msra.mxu0 %v548
        %567 = vmatprep.subr.bf16.mxu0 0
        %568 = vmatpush1.bf16.msra.mxu0 %v549
        %569 = vmatprep.subr.bf16.mxu0 0
        %570 = vmatpush1.bf16.msra.mxu0 %v550
        %571 = vmatprep.subr.bf16.mxu0 0
        %572 = vmatpush1.bf16.msra.mxu0 %v551
        %573 = vmatprep.subr.bf16.mxu0 0
        %574 = vmatpush1.bf16.msra.mxu0 %v552
        %575 = vmatprep.subr.bf16.mxu0 0
        %576 = vmatpush1.bf16.msra.mxu0 %v553
        %577 = vmatprep.subr.bf16.mxu0 0
        %578 = vmatpush1.bf16.msra.mxu0 %v554
        %579 = vmatprep.subr.bf16.mxu0 0
        %580 = vmatpush1.bf16.msra.mxu0 0
        %581 = vmatprep.subr.bf16.mxu0 0
        %582 = vmatpush1.bf16.msra.mxu0 0
        %583 = vmatprep.subr.bf16.mxu0 0
        %584 = vmatpush1.bf16.msra.mxu0 0
        %585 = vmatprep.subr.bf16.mxu0 0
        %586 = vmatpush1.bf16.msra.mxu0 0
        %587 = vmatprep.subr.bf16.mxu0 0
        %588 = vmatpush1.bf16.msra.mxu0 0
        %589 = vmatprep.subr.bf16.mxu0 0
        %590 = vmatpush1.bf16.msra.mxu0 0
        %591 = vmatprep.subr.bf16.mxu0 0
        %592 = vmatpush1.bf16.msra.mxu0 0
        %593 = vmatprep.subr.bf16.mxu0 0
        %594 = vmatpush1.bf16.msra.mxu0 0
        %595 = vmatprep.mubr.bf16.mxu0 0
        %596 = vmatmul.mubr.bf16.gmra.mrb[0].mxu0 %v499
        %v597 = vpop.f32.mrb[0].mxu0
        %v598 = vadd.f32 0.0, %v597
        %v599 = vpop.f32.mrb[0].mxu0
        %v600 = vpop.f32.mrb[0].mxu0
        %v601 = vadd.f32 0.0, %v600
        %v602 = vpop.f32.mrb[0].mxu0
        %603 = vmatprep.mubr.bf16.mxu0 0
        %604 = vmatmul.mubr.bf16.gmra.mrb[0].mxu0 %v500
        %v605 = vpop.f32.mrb[0].mxu0
        %v606 = vadd.f32 0.0, %v605
        %v607 = vpop.f32.mrb[0].mxu0
        %v608 = vpop.f32.mrb[0].mxu0
        %v609 = vadd.f32 0.0, %v608
        %v610 = vpop.f32.mrb[0].mxu0
        %611 = vmatprep.mubr.bf16.mxu0 0
        %612 = vmatmul.mubr.bf16.gmra.mrb[0].mxu0 %v501
        %v613 = vpop.f32.mrb[0].mxu0
        %v614 = vadd.f32 0.0, %v613
        %v615 = vpop.f32.mrb[0].mxu0
        %v616 = vpop.f32.mrb[0].mxu0
        %v617 = vadd.f32 0.0, %v616
        %v618 = vpop.f32.mrb[0].mxu0
        %619 = vmatprep.mubr.bf16.mxu0 0
        %620 = vmatmul.mubr.bf16.gmra.mrb[0].mxu0 %v502
        %v621 = vpop.f32.mrb[0].mxu0
        %v622 = vadd.f32 0.0, %v621
        %v623 = vpop.f32.mrb[0].mxu0
        %v624 = vpop.f32.mrb[0].mxu0
        %v625 = vadd.f32 0.0, %v624
        %v626 = vpop.f32.mrb[0].mxu0
        %627 = vmatprep.mubr.bf16.mxu0 0
        %628 = vmatmul.mubr.bf16.gmra.mrb[0].mxu0 %v503
        %v629 = vpop.f32.mrb[0].mxu0
        %v630 = vadd.f32 0.0, %v629
        %v631 = vpop.f32.mrb[0].mxu0
        %v632 = vpop.f32.mrb[0].mxu0
        %v633 = vadd.f32 0.0, %v632
        %v634 = vpop.f32.mrb[0].mxu0
        %635 = vmatprep.mubr.bf16.mxu0 0
        %636 = vmatmul.mubr.bf16.gmra.mrb[0].mxu0 %v504
        %v637 = vpop.f32.mrb[0].mxu0
        %v638 = vadd.f32 0.0, %v637
        %v639 = vpop.f32.mrb[0].mxu0
        %v640 = vpop.f32.mrb[0].mxu0
        %v641 = vadd.f32 0.0, %v640
        %v642 = vpop.f32.mrb[0].mxu0
        %643 = vmatprep.mubr.bf16.mxu0 0
        %644 = vmatmul.mubr.bf16.gmra.mrb[0].mxu0 %v505
        %v645 = vpop.f32.mrb[0].mxu0
        %v646 = vadd.f32 0.0, %v645
        %v647 = vpop.f32.mrb[0].mxu0
        %v648 = vpop.f32.mrb[0].mxu0
        %v649 = vadd.f32 0.0, %v648
        %v650 = vpop.f32.mrb[0].mxu0
        %651 = vmatprep.mubr.bf16.mxu0 0
        %652 = vmatmul.mubr.bf16.gmra.mrb[0].mxu0 %v506
        %v653 = vpop.f32.mrb[0].mxu0
        %v654 = vadd.f32 0.0, %v653
        %v655 = vpop.f32.mrb[0].mxu0
        %v656 = vpop.f32.mrb[0].mxu0
        %v657 = vadd.f32 0.0, %v656
        %v658 = vpop.f32.mrb[0].mxu0
        %659 = vdwg.mxu0
        %v660 = vld [vmem:[#allocation2] sm:$0xff]
        %v661 = vld [vmem:[#allocation2 + $0x8] sm:$0xff]
        %v662 = vld [vmem:[#allocation2 + $0x10] sm:$0xff]
        %v663 = vld [vmem:[#allocation2 + $0x18] sm:$0xff]
        %v664 = vld [vmem:[#allocation2 + $0x20] sm:$0xff]
        %v665 = vld [vmem:[#allocation2 + $0x28] sm:$0xff]
        %v666 = vld [vmem:[#allocation2 + $0x30] sm:$0xff]
        %v667 = vld [vmem:[#allocation2 + $0x38] sm:$0xff]
        %v668 = vld [vmem:[#allocation2 + $0x40] sm:$0xff]
        %v669 = vld [vmem:[#allocation2 + $0x48] sm:$0xff]
        %v670 = vld [vmem:[#allocation2 + $0x50] sm:$0xff]
        %v671 = vld [vmem:[#allocation2 + $0x58] sm:$0xff]
        %v672 = vld [vmem:[#allocation2 + $0x60] sm:$0xff]
        %v673 = vld [vmem:[#allocation2 + $0x68] sm:$0xff]
        %v674 = vld [vmem:[#allocation2 + $0x70] sm:$0xff]
        %v675 = vld [vmem:[#allocation2 + $0x78] sm:$0xff]
        %v676 = vadd.f32 %v660, %v598
        %v677 = vadd.f32 %v661, %v601
        %v678 = vadd.f32 %v662, %v606
        %v679 = vadd.f32 %v663, %v609
        %v680 = vadd.f32 %v664, %v614
        %v681 = vadd.f32 %v665, %v617
        %v682 = vadd.f32 %v666, %v622
        %v683 = vadd.f32 %v667, %v625
        %v684 = vadd.f32 %v668, %v630
        %v685 = vadd.f32 %v669, %v633
        %v686 = vadd.f32 %v670, %v638
        %v687 = vadd.f32 %v671, %v641
        %v688 = vadd.f32 %v672, %v646
        %v689 = vadd.f32 %v673, %v649
        %v690 = vadd.f32 %v674, %v654
        %v691 = vadd.f32 %v675, %v657
        %vm692 = vcmask 261120
        %693 = vst.msk [vmem:[#allocation2] sm:$0xff] %vm692, %v676
        %694 = vst.msk [vmem:[#allocation2 + $0x8] sm:$0xff] %vm692, %v677
        %695 = vst.msk [vmem:[#allocation2 + $0x10] sm:$0xff] %vm692, %v678
        %696 = vst.msk [vmem:[#allocation2 + $0x18] sm:$0xff] %vm692, %v679
        %697 = vst.msk [vmem:[#allocation2 + $0x20] sm:$0xff] %vm692, %v680
        %698 = vst.msk [vmem:[#allocation2 + $0x28] sm:$0xff] %vm692, %v681
        %699 = vst.msk [vmem:[#allocation2 + $0x30] sm:$0xff] %vm692, %v682
        %700 = vst.msk [vmem:[#allocation2 + $0x38] sm:$0xff] %vm692, %v683
        %701 = vst.msk [vmem:[#allocation2 + $0x40] sm:$0xff] %vm692, %v684
        %702 = vst.msk [vmem:[#allocation2 + $0x48] sm:$0xff] %vm692, %v685
        %703 = vst.msk [vmem:[#allocation2 + $0x50] sm:$0xff] %vm692, %v686
        %704 = vst.msk [vmem:[#allocation2 + $0x58] sm:$0xff] %vm692, %v687
        %705 = vst.msk [vmem:[#allocation2 + $0x60] sm:$0xff] %vm692, %v688
        %706 = vst.msk [vmem:[#allocation2 + $0x68] sm:$0xff] %vm692, %v689
        %707 = vst.msk [vmem:[#allocation2 + $0x70] sm:$0xff] %vm692, %v690
        %708 = vst.msk [vmem:[#allocation2 + $0x78] sm:$0xff] %vm692, %v691
        %p709 = scmp.eq.s32.totalorder %s23, 2
        // Predicated region
        $region86: #{ngcf_forward.4} parent=76 // pred_check
          %p710 = pneg %p709
        $region87: #{ngcf_forward.4} parent=76 // pred_check_branch
          %712 = sbr.rel (%p710) target = $region89
        $region88: #{ngcf_forward.4} parent=76 // pred_region
          %v713 = vld [vmem:[#allocation2] sm:$0xff]
          %v714 = vld [vmem:[#allocation2 + $0x8] sm:$0xff]
          %v715 = vld [vmem:[#allocation2 + $0x10] sm:$0xff]
          %v716 = vld [vmem:[#allocation2 + $0x18] sm:$0xff]
          %v717 = vld [vmem:[#allocation2 + $0x20] sm:$0xff]
          %v718 = vld [vmem:[#allocation2 + $0x28] sm:$0xff]
          %v719 = vld [vmem:[#allocation2 + $0x30] sm:$0xff]
          %v720 = vld [vmem:[#allocation2 + $0x38] sm:$0xff]
          %v721 = vld [vmem:[#allocation2 + $0x40] sm:$0xff]
          %v722 = vld [vmem:[#allocation2 + $0x48] sm:$0xff]
          %v723 = vld [vmem:[#allocation2 + $0x50] sm:$0xff]
          %v724 = vld [vmem:[#allocation2 + $0x58] sm:$0xff]
          %v725 = vld [vmem:[#allocation2 + $0x60] sm:$0xff]
          %v726 = vld [vmem:[#allocation2 + $0x68] sm:$0xff]
          %v727 = vld [vmem:[#allocation2 + $0x70] sm:$0xff]
          %v728 = vld [vmem:[#allocation2 + $0x78] sm:$0xff]
          %v729 = vld [vmem:[%s394] sm:$0xff]
          %v730 = vld [vmem:[%s394 + $0x8] sm:$0xff]
          %v731 = vld [vmem:[%s394 + $0x10] sm:$0xff]
          %v732 = vld [vmem:[%s394 + $0x18] sm:$0xff]
          %v733 = vld [vmem:[%s394 + $0x20] sm:$0xff]
          %v734 = vld [vmem:[%s394 + $0x28] sm:$0xff]
          %v735 = vld [vmem:[%s394 + $0x30] sm:$0xff]
          %v736 = vld [vmem:[%s394 + $0x38] sm:$0xff]
          %v737 = vld [vmem:[%s394 + $0x40] sm:$0xff]
          %v738 = vld [vmem:[%s394 + $0x48] sm:$0xff]
          %v739 = vld [vmem:[%s394 + $0x50] sm:$0xff]
          %v740 = vld [vmem:[%s394 + $0x58] sm:$0xff]
          %v741 = vld [vmem:[%s394 + $0x60] sm:$0xff]
          %v742 = vld [vmem:[%s394 + $0x68] sm:$0xff]
          %v743 = vld [vmem:[%s394 + $0x70] sm:$0xff]
          %v744 = vld [vmem:[%s394 + $0x78] sm:$0xff]
          %v745 = vmul.f32 %v729, %v713
          %v746 = vmul.f32 %v730, %v714
          %v747 = vmul.f32 %v731, %v715
          %v748 = vmul.f32 %v732, %v716
          %v749 = vmul.f32 %v733, %v717
          %v750 = vmul.f32 %v734, %v718
          %v751 = vmul.f32 %v735, %v719
          %v752 = vmul.f32 %v736, %v720
          %v753 = vmul.f32 %v737, %v721
          %v754 = vmul.f32 %v738, %v722
          %v755 = vmul.f32 %v739, %v723
          %v756 = vmul.f32 %v740, %v724
          %v757 = vmul.f32 %v741, %v725
          %v758 = vmul.f32 %v742, %v726
          %v759 = vmul.f32 %v743, %v727
          %v760 = vmul.f32 %v744, %v728
          %777 = vrot.lane.b32.xlu0 %v745, 32
          %v778 = vpop.permute.xlu0 %777
          %779 = vrot.lane.b32.xlu0 %v746, 32
          %v780 = vpop.permute.xlu0 %779
          %781 = vrot.lane.b32.xlu0 %v747, 32
          %v782 = vpop.permute.xlu0 %781
          %783 = vrot.lane.b32.xlu0 %v748, 32
          %v784 = vpop.permute.xlu0 %783
          %785 = vrot.lane.b32.xlu0 %v749, 32
          %v786 = vpop.permute.xlu0 %785
          %787 = vrot.lane.b32.xlu0 %v750, 32
          %v788 = vpop.permute.xlu0 %787
          %789 = vrot.lane.b32.xlu0 %v751, 32
          %v790 = vpop.permute.xlu0 %789
          %791 = vrot.lane.b32.xlu0 %v752, 32
          %v792 = vpop.permute.xlu0 %791
          %793 = vrot.lane.b32.xlu0 %v753, 32
          %v794 = vpop.permute.xlu0 %793
          %795 = vrot.lane.b32.xlu0 %v754, 32
          %v796 = vpop.permute.xlu0 %795
          %797 = vrot.lane.b32.xlu0 %v755, 32
          %v798 = vpop.permute.xlu0 %797
          %799 = vrot.lane.b32.xlu0 %v756, 32
          %v800 = vpop.permute.xlu0 %799
          %801 = vrot.lane.b32.xlu0 %v757, 32
          %v802 = vpop.permute.xlu0 %801
          %803 = vrot.lane.b32.xlu0 %v758, 32
          %v804 = vpop.permute.xlu0 %803
          %805 = vrot.lane.b32.xlu0 %v759, 32
          %v806 = vpop.permute.xlu0 %805
          %807 = vrot.lane.b32.xlu0 %v760, 32
          %v808 = vpop.permute.xlu0 %807
          %v825 = vsel %vm692, %v713, %v778
          %v826 = vsel %vm692, %v714, %v780
          %v827 = vsel %vm692, %v715, %v782
          %v828 = vsel %vm692, %v716, %v784
          %v829 = vsel %vm692, %v717, %v786
          %v830 = vsel %vm692, %v718, %v788
          %v831 = vsel %vm692, %v719, %v790
          %v832 = vsel %vm692, %v720, %v792
          %v833 = vsel %vm692, %v721, %v794
          %v834 = vsel %vm692, %v722, %v796
          %v835 = vsel %vm692, %v723, %v798
          %v836 = vsel %vm692, %v724, %v800
          %v837 = vsel %vm692, %v725, %v802
          %v838 = vsel %vm692, %v726, %v804
          %v839 = vsel %vm692, %v727, %v806
          %v840 = vsel %vm692, %v728, %v808
          %v841 = vld [vmem:[%s3] sm:$0xff]
          %v842 = vld [vmem:[%s3 + $0x8] sm:$0xff]
          %v843 = vld [vmem:[%s3 + $0x10] sm:$0xff]
          %v844 = vld [vmem:[%s3 + $0x18] sm:$0xff]
          %v845 = vld [vmem:[%s3 + $0x20] sm:$0xff]
          %v846 = vld [vmem:[%s3 + $0x28] sm:$0xff]
          %v847 = vld [vmem:[%s3 + $0x30] sm:$0xff]
          %v848 = vld [vmem:[%s3 + $0x38] sm:$0xff]
          %v849 = vld [vmem:[%s4] sm:$0x1]
          %v851 = vlaneseq
          %v852 = vshrl.u32 %v851, 7
          %v853 = vsub.s32 0, %v852
          %v854 = vrot.slane %v849, %v853
          %vm856 = vcmask 523264
          %v858 = vsel %vm856, %v825, 0
          %v861 = vsel %vm856, %v826, 0
          %v864 = vsel %vm856, %v827, 0
          %v867 = vsel %vm856, %v828, 0
          %v870 = vsel %vm856, %v829, 0
          %v873 = vsel %vm856, %v830, 0
          %v876 = vsel %vm856, %v831, 0
          %v879 = vsel %vm856, %v832, 0
          %v882 = vsel %vm856, %v833, 0
          %v885 = vsel %vm856, %v834, 0
          %v888 = vsel %vm856, %v835, 0
          %v891 = vsel %vm856, %v836, 0
          %v894 = vsel %vm856, %v837, 0
          %v897 = vsel %vm856, %v838, 0
          %v900 = vsel %vm856, %v839, 0
          %v903 = vsel %vm856, %v840, 0
          %905 = vmatprep.subr.mxu0 0.0
          %906 = vmatpush1.msra.mxu0 %v841
          %907 = vmatprep.subr.mxu0 0.0
          %908 = vmatpush1.msra.mxu0 %v842
          %909 = vmatprep.subr.mxu0 0.0
          %910 = vmatpush1.msra.mxu0 %v843
          %911 = vmatprep.subr.mxu0 0.0
          %912 = vmatpush1.msra.mxu0 %v844
          %913 = vmatprep.subr.mxu0 0.0
          %914 = vmatpush1.msra.mxu0 %v845
          %915 = vmatprep.subr.mxu0 0.0
          %916 = vmatpush1.msra.mxu0 %v846
          %917 = vmatprep.subr.mxu0 0.0
          %918 = vmatpush1.msra.mxu0 %v847
          %919 = vmatprep.subr.mxu0 0.0
          %920 = vmatpush1.msra.mxu0 %v848
          %921 = vmatprep.subr.mxu0 0.0
          %922 = vmatpush1.msra.mxu0 0.0
          %923 = vmatprep.subr.mxu0 0.0
          %924 = vmatpush1.msra.mxu0 0.0
          %925 = vmatprep.subr.mxu0 0.0
          %926 = vmatpush1.msra.mxu0 0.0
          %927 = vmatprep.subr.mxu0 0.0
          %928 = vmatpush1.msra.mxu0 0.0
          %929 = vmatprep.subr.mxu0 0.0
          %930 = vmatpush1.msra.mxu0 0.0
          %931 = vmatprep.subr.mxu0 0.0
          %932 = vmatpush1.msra.mxu0 0.0
          %933 = vmatprep.subr.mxu0 0.0
          %934 = vmatpush1.msra.mxu0 0.0
          %935 = vmatprep.subr.mxu0 0.0
          %936 = vmatpush1.msra.mxu0 0.0
          %937 = vmatprep.subr.mxu0 0.0
          %938 = vmatpush1.msra.mxu0 0.0
          %939 = vmatprep.subr.mxu0 0.0
          %940 = vmatpush1.msra.mxu0 0.0
          %941 = vmatprep.subr.mxu0 0.0
          %942 = vmatpush1.msra.mxu0 0.0
          %943 = vmatprep.subr.mxu0 0.0
          %944 = vmatpush1.msra.mxu0 0.0
          %945 = vmatprep.subr.mxu0 0.0
          %946 = vmatpush1.msra.mxu0 0.0
          %947 = vmatprep.subr.mxu0 0.0
          %948 = vmatpush1.msra.mxu0 0.0
          %949 = vmatprep.subr.mxu0 0.0
          %950 = vmatpush1.msra.mxu0 0.0
          %951 = vmatprep.subr.mxu0 0.0
          %952 = vmatpush1.msra.mxu0 0.0
          %953 = vmatprep.subr.mxu0 0.0
          %954 = vmatpush1.msra.mxu0 0.0
          %955 = vmatprep.subr.mxu0 0.0
          %956 = vmatpush1.msra.mxu0 0.0
          %957 = vmatprep.subr.mxu0 0.0
          %958 = vmatpush1.msra.mxu0 0.0
          %959 = vmatprep.subr.mxu0 0.0
          %960 = vmatpush1.msra.mxu0 0.0
          %961 = vmatprep.subr.mxu0 0.0
          %962 = vmatpush1.msra.mxu0 0.0
          %963 = vmatprep.subr.mxu0 0.0
          %964 = vmatpush1.msra.mxu0 0.0
          %965 = vmatprep.subr.mxu0 0.0
          %966 = vmatpush1.msra.mxu0 0.0
          %967 = vmatprep.subr.mxu0 0.0
          %968 = vmatpush1.msra.mxu0 0.0
          %969 = vmatprep.mubr.f32.mxu0 0.0
          %970 = vmatmul.mubr.f32.gmra.mrb[0].mxu0 %v858
          %v971 = vpop.f32.mrb[0].mxu0
          %v972 = vadd.f32 %v854, %v971
          %v973 = vpop.f32.mrb[0].mxu0
          %974 = vmatprep.mubr.f32.mxu0 0.0
          %975 = vmatmul.mubr.f32.gmra.mrb[0].mxu0 %v861
          %v976 = vpop.f32.mrb[0].mxu0
          %v977 = vadd.f32 %v854, %v976
          %v978 = vpop.f32.mrb[0].mxu0
          %979 = vmatprep.mubr.f32.mxu0 0.0
          %980 = vmatmul.mubr.f32.gmra.mrb[0].mxu0 %v864
          %v981 = vpop.f32.mrb[0].mxu0
          %v982 = vadd.f32 %v854, %v981
          %v983 = vpop.f32.mrb[0].mxu0
          %984 = vmatprep.mubr.f32.mxu0 0.0
          %985 = vmatmul.mubr.f32.gmra.mrb[0].mxu0 %v867
          %v986 = vpop.f32.mrb[0].mxu0
          %v987 = vadd.f32 %v854, %v986
          %v988 = vpop.f32.mrb[0].mxu0
          %989 = vmatprep.mubr.f32.mxu0 0.0
          %990 = vmatmul.mubr.f32.gmra.mrb[0].mxu0 %v870
          %v991 = vpop.f32.mrb[0].mxu0
          %v992 = vadd.f32 %v854, %v991
          %v993 = vpop.f32.mrb[0].mxu0
          %994 = vmatprep.mubr.f32.mxu0 0.0
          %995 = vmatmul.mubr.f32.gmra.mrb[0].mxu0 %v873
          %v996 = vpop.f32.mrb[0].mxu0
          %v997 = vadd.f32 %v854, %v996
          %v998 = vpop.f32.mrb[0].mxu0
          %999 = vmatprep.mubr.f32.mxu0 0.0
          %1000 = vmatmul.mubr.f32.gmra.mrb[0].mxu0 %v876
          %v1001 = vpop.f32.mrb[0].mxu0
          %v1002 = vadd.f32 %v854, %v1001
          %v1003 = vpop.f32.mrb[0].mxu0
          %1004 = vmatprep.mubr.f32.mxu0 0.0
          %1005 = vmatmul.mubr.f32.gmra.mrb[0].mxu0 %v879
          %v1006 = vpop.f32.mrb[0].mxu0
          %v1007 = vadd.f32 %v854, %v1006
          %v1008 = vpop.f32.mrb[0].mxu0
          %1009 = vmatprep.mubr.f32.mxu0 0.0
          %1010 = vmatmul.mubr.f32.gmra.mrb[0].mxu0 %v882
          %v1011 = vpop.f32.mrb[0].mxu0
          %v1012 = vadd.f32 %v854, %v1011
          %v1013 = vpop.f32.mrb[0].mxu0
          %1014 = vmatprep.mubr.f32.mxu0 0.0
          %1015 = vmatmul.mubr.f32.gmra.mrb[0].mxu0 %v885
          %v1016 = vpop.f32.mrb[0].mxu0
          %v1017 = vadd.f32 %v854, %v1016
          %v1018 = vpop.f32.mrb[0].mxu0
          %1019 = vmatprep.mubr.f32.mxu0 0.0
          %1020 = vmatmul.mubr.f32.gmra.mrb[0].mxu0 %v888
          %v1021 = vpop.f32.mrb[0].mxu0
          %v1022 = vadd.f32 %v854, %v1021
          %v1023 = vpop.f32.mrb[0].mxu0
          %1024 = vmatprep.mubr.f32.mxu0 0.0
          %1025 = vmatmul.mubr.f32.gmra.mrb[0].mxu0 %v891
          %v1026 = vpop.f32.mrb[0].mxu0
          %v1027 = vadd.f32 %v854, %v1026
          %v1028 = vpop.f32.mrb[0].mxu0
          %1029 = vmatprep.mubr.f32.mxu0 0.0
          %1030 = vmatmul.mubr.f32.gmra.mrb[0].mxu0 %v894
          %v1031 = vpop.f32.mrb[0].mxu0
          %v1032 = vadd.f32 %v854, %v1031
          %v1033 = vpop.f32.mrb[0].mxu0
          %1034 = vmatprep.mubr.f32.mxu0 0.0
          %1035 = vmatmul.mubr.f32.gmra.mrb[0].mxu0 %v897
          %v1036 = vpop.f32.mrb[0].mxu0
          %v1037 = vadd.f32 %v854, %v1036
          %v1038 = vpop.f32.mrb[0].mxu0
          %1039 = vmatprep.mubr.f32.mxu0 0.0
          %1040 = vmatmul.mubr.f32.gmra.mrb[0].mxu0 %v900
          %v1041 = vpop.f32.mrb[0].mxu0
          %v1042 = vadd.f32 %v854, %v1041
          %v1043 = vpop.f32.mrb[0].mxu0
          %1044 = vmatprep.mubr.f32.mxu0 0.0
          %1045 = vmatmul.mubr.f32.gmra.mrb[0].mxu0 %v903
          %v1046 = vpop.f32.mrb[0].mxu0
          %v1047 = vadd.f32 %v854, %v1046
          %v1048 = vpop.f32.mrb[0].mxu0
          %1049 = vdwg.mxu0
          %vm1050 = vcmp.ge.f32.partialorder %v972, 0.0
          %vm1051 = vcmp.ge.f32.partialorder %v977, 0.0
          %vm1052 = vcmp.ge.f32.partialorder %v982, 0.0
          %vm1053 = vcmp.ge.f32.partialorder %v987, 0.0
          %vm1054 = vcmp.ge.f32.partialorder %v992, 0.0
          %vm1055 = vcmp.ge.f32.partialorder %v997, 0.0
          %vm1056 = vcmp.ge.f32.partialorder %v1002, 0.0
          %vm1057 = vcmp.ge.f32.partialorder %v1007, 0.0
          %vm1058 = vcmp.ge.f32.partialorder %v1012, 0.0
          %vm1059 = vcmp.ge.f32.partialorder %v1017, 0.0
          %vm1060 = vcmp.ge.f32.partialorder %v1022, 0.0
          %vm1061 = vcmp.ge.f32.partialorder %v1027, 0.0
          %vm1062 = vcmp.ge.f32.partialorder %v1032, 0.0
          %vm1063 = vcmp.ge.f32.partialorder %v1037, 0.0
          %vm1064 = vcmp.ge.f32.partialorder %v1042, 0.0
          %vm1065 = vcmp.ge.f32.partialorder %v1047, 0.0
          %v1066 = vmul.f32 %v972, 0.2
          %v1067 = vmul.f32 %v977, 0.2
          %v1068 = vmul.f32 %v982, 0.2
          %v1069 = vmul.f32 %v987, 0.2
          %v1070 = vmul.f32 %v992, 0.2
          %v1071 = vmul.f32 %v997, 0.2
          %v1072 = vmul.f32 %v1002, 0.2
          %v1073 = vmul.f32 %v1007, 0.2
          %v1074 = vmul.f32 %v1012, 0.2
          %v1075 = vmul.f32 %v1017, 0.2
          %v1076 = vmul.f32 %v1022, 0.2
          %v1077 = vmul.f32 %v1027, 0.2
          %v1078 = vmul.f32 %v1032, 0.2
          %v1079 = vmul.f32 %v1037, 0.2
          %v1080 = vmul.f32 %v1042, 0.2
          %v1081 = vmul.f32 %v1047, 0.2
          %v1082 = vsel %vm1050, %v972, %v1066
          %v1083 = vsel %vm1051, %v977, %v1067
          %v1084 = vsel %vm1052, %v982, %v1068
          %v1085 = vsel %vm1053, %v987, %v1069
          %v1086 = vsel %vm1054, %v992, %v1070
          %v1087 = vsel %vm1055, %v997, %v1071
          %v1088 = vsel %vm1056, %v1002, %v1072
          %v1089 = vsel %vm1057, %v1007, %v1073
          %v1090 = vsel %vm1058, %v1012, %v1074
          %v1091 = vsel %vm1059, %v1017, %v1075
          %v1092 = vsel %vm1060, %v1022, %v1076
          %v1093 = vsel %vm1061, %v1027, %v1077
          %v1094 = vsel %vm1062, %v1032, %v1078
          %v1095 = vsel %vm1063, %v1037, %v1079
          %v1096 = vsel %vm1064, %v1042, %v1080
          %v1097 = vsel %vm1065, %v1047, %v1081
          %v1098 = vmul.f32 %v1082, %v1082
          %v1099 = vmul.f32 %v1083, %v1083
          %v1100 = vmul.f32 %v1084, %v1084
          %v1101 = vmul.f32 %v1085, %v1085
          %v1102 = vmul.f32 %v1086, %v1086
          %v1103 = vmul.f32 %v1087, %v1087
          %v1104 = vmul.f32 %v1088, %v1088
          %v1105 = vmul.f32 %v1089, %v1089
          %v1106 = vmul.f32 %v1090, %v1090
          %v1107 = vmul.f32 %v1091, %v1091
          %v1108 = vmul.f32 %v1092, %v1092
          %v1109 = vmul.f32 %v1093, %v1093
          %v1110 = vmul.f32 %v1094, %v1094
          %v1111 = vmul.f32 %v1095, %v1095
          %v1112 = vmul.f32 %v1096, %v1096
          %v1113 = vmul.f32 %v1097, %v1097
          %v1114 = vsel %vm692, %v1098, 0.0
          %1115 = vadd.xlane.f32.xlu0 %v1114
          %v1116 = vpop.xlane.xlu0 %1115
          %v1117 = vsel %vm692, %v1099, 0.0
          %1118 = vadd.xlane.f32.xlu0 %v1117
          %v1119 = vpop.xlane.xlu0 %1118
          %v1120 = vsel %vm692, %v1100, 0.0
          %1121 = vadd.xlane.f32.xlu0 %v1120
          %v1122 = vpop.xlane.xlu0 %1121
          %v1123 = vsel %vm692, %v1101, 0.0
          %1124 = vadd.xlane.f32.xlu0 %v1123
          %v1125 = vpop.xlane.xlu0 %1124
          %v1126 = vsel %vm692, %v1102, 0.0
          %1127 = vadd.xlane.f32.xlu0 %v1126
          %v1128 = vpop.xlane.xlu0 %1127
          %v1129 = vsel %vm692, %v1103, 0.0
          %1130 = vadd.xlane.f32.xlu0 %v1129
          %v1131 = vpop.xlane.xlu0 %1130
          %v1132 = vsel %vm692, %v1104, 0.0
          %1133 = vadd.xlane.f32.xlu0 %v1132
          %v1134 = vpop.xlane.xlu0 %1133
          %v1135 = vsel %vm692, %v1105, 0.0
          %1136 = vadd.xlane.f32.xlu0 %v1135
          %v1137 = vpop.xlane.xlu0 %1136
          %v1138 = vsel %vm692, %v1106, 0.0
          %1139 = vadd.xlane.f32.xlu0 %v1138
          %v1140 = vpop.xlane.xlu0 %1139
          %v1141 = vsel %vm692, %v1107, 0.0
          %1142 = vadd.xlane.f32.xlu0 %v1141
          %v1143 = vpop.xlane.xlu0 %1142
          %v1144 = vsel %vm692, %v1108, 0.0
          %1145 = vadd.xlane.f32.xlu0 %v1144
          %v1146 = vpop.xlane.xlu0 %1145
          %v1147 = vsel %vm692, %v1109, 0.0
          %1148 = vadd.xlane.f32.xlu0 %v1147
          %v1149 = vpop.xlane.xlu0 %1148
          %v1150 = vsel %vm692, %v1110, 0.0
          %1151 = vadd.xlane.f32.xlu0 %v1150
          %v1152 = vpop.xlane.xlu0 %1151
          %v1153 = vsel %vm692, %v1111, 0.0
          %1154 = vadd.xlane.f32.xlu0 %v1153
          %v1155 = vpop.xlane.xlu0 %1154
          %v1156 = vsel %vm692, %v1112, 0.0
          %1157 = vadd.xlane.f32.xlu0 %v1156
          %v1158 = vpop.xlane.xlu0 %1157
          %v1159 = vsel %vm692, %v1113, 0.0
          %1160 = vadd.xlane.f32.xlu0 %v1159
          %v1161 = vpop.xlane.xlu0 %1160
          %v1162 = vmax.f32 %v1116, 1e-24
          %v1163 = vmax.f32 %v1119, 1e-24
          %v1164 = vmax.f32 %v1122, 1e-24
          %v1165 = vmax.f32 %v1125, 1e-24
          %v1166 = vmax.f32 %v1128, 1e-24
          %v1167 = vmax.f32 %v1131, 1e-24
          %v1168 = vmax.f32 %v1134, 1e-24
          %v1169 = vmax.f32 %v1137, 1e-24
          %v1170 = vmax.f32 %v1140, 1e-24
          %v1171 = vmax.f32 %v1143, 1e-24
          %v1172 = vmax.f32 %v1146, 1e-24
          %v1173 = vmax.f32 %v1149, 1e-24
          %v1174 = vmax.f32 %v1152, 1e-24
          %v1175 = vmax.f32 %v1155, 1e-24
          %v1176 = vmax.f32 %v1158, 1e-24
          %v1177 = vmax.f32 %v1161, 1e-24
          %v1178 = vrsqrt.pop %v1162
          %v1179 = vrsqrt.pop %v1163
          %v1180 = vrsqrt.pop %v1164
          %v1181 = vrsqrt.pop %v1165
          %v1182 = vrsqrt.pop %v1166
          %v1183 = vrsqrt.pop %v1167
          %v1184 = vrsqrt.pop %v1168
          %v1185 = vrsqrt.pop %v1169
          %v1186 = vrsqrt.pop %v1170
          %v1187 = vrsqrt.pop %v1171
          %v1188 = vrsqrt.pop %v1172
          %v1189 = vrsqrt.pop %v1173
          %v1190 = vrsqrt.pop %v1174
          %v1191 = vrsqrt.pop %v1175
          %v1192 = vrsqrt.pop %v1176
          %v1193 = vrsqrt.pop %v1177
          %v1194 = vmul.f32 %v1082, %v1178
          %v1195 = vmul.f32 %v1083, %v1179
          %v1196 = vmul.f32 %v1084, %v1180
          %v1197 = vmul.f32 %v1085, %v1181
          %v1198 = vmul.f32 %v1086, %v1182
          %v1199 = vmul.f32 %v1087, %v1183
          %v1200 = vmul.f32 %v1088, %v1184
          %v1201 = vmul.f32 %v1089, %v1185
          %v1202 = vmul.f32 %v1090, %v1186
          %v1203 = vmul.f32 %v1091, %v1187
          %v1204 = vmul.f32 %v1092, %v1188
          %v1205 = vmul.f32 %v1093, %v1189
          %v1206 = vmul.f32 %v1094, %v1190
          %v1207 = vmul.f32 %v1095, %v1191
          %v1208 = vmul.f32 %v1096, %v1192
          %v1209 = vmul.f32 %v1097, %v1193
          %1210 = vst.msk [vmem:[%s400] sm:$0xff] %vm692, %v1082
          %1211 = vst.msk [vmem:[%s400 + $0x8] sm:$0xff] %vm692, %v1083
          %1212 = vst.msk [vmem:[%s400 + $0x10] sm:$0xff] %vm692, %v1084
          %1213 = vst.msk [vmem:[%s400 + $0x18] sm:$0xff] %vm692, %v1085
          %1214 = vst.msk [vmem:[%s400 + $0x20] sm:$0xff] %vm692, %v1086
          %1215 = vst.msk [vmem:[%s400 + $0x28] sm:$0xff] %vm692, %v1087
          %1216 = vst.msk [vmem:[%s400 + $0x30] sm:$0xff] %vm692, %v1088
          %1217 = vst.msk [vmem:[%s400 + $0x38] sm:$0xff] %vm692, %v1089
          %1218 = vst.msk [vmem:[%s400 + $0x40] sm:$0xff] %vm692, %v1090
          %1219 = vst.msk [vmem:[%s400 + $0x48] sm:$0xff] %vm692, %v1091
          %1220 = vst.msk [vmem:[%s400 + $0x50] sm:$0xff] %vm692, %v1092
          %1221 = vst.msk [vmem:[%s400 + $0x58] sm:$0xff] %vm692, %v1093
          %1222 = vst.msk [vmem:[%s400 + $0x60] sm:$0xff] %vm692, %v1094
          %1223 = vst.msk [vmem:[%s400 + $0x68] sm:$0xff] %vm692, %v1095
          %1224 = vst.msk [vmem:[%s400 + $0x70] sm:$0xff] %vm692, %v1096
          %1225 = vst.msk [vmem:[%s400 + $0x78] sm:$0xff] %vm692, %v1097
          %1226 = vst.msk [vmem:[%s406] sm:$0xff] %vm692, %v1194
          %1227 = vst.msk [vmem:[%s406 + $0x8] sm:$0xff] %vm692, %v1195
          %1228 = vst.msk [vmem:[%s406 + $0x10] sm:$0xff] %vm692, %v1196
          %1229 = vst.msk [vmem:[%s406 + $0x18] sm:$0xff] %vm692, %v1197
          %1230 = vst.msk [vmem:[%s406 + $0x20] sm:$0xff] %vm692, %v1198
          %1231 = vst.msk [vmem:[%s406 + $0x28] sm:$0xff] %vm692, %v1199
          %1232 = vst.msk [vmem:[%s406 + $0x30] sm:$0xff] %vm692, %v1200
          %1233 = vst.msk [vmem:[%s406 + $0x38] sm:$0xff] %vm692, %v1201
          %1234 = vst.msk [vmem:[%s406 + $0x40] sm:$0xff] %vm692, %v1202
          %1235 = vst.msk [vmem:[%s406 + $0x48] sm:$0xff] %vm692, %v1203
          %1236 = vst.msk [vmem:[%s406 + $0x50] sm:$0xff] %vm692, %v1204
          %1237 = vst.msk [vmem:[%s406 + $0x58] sm:$0xff] %vm692, %v1205
          %1238 = vst.msk [vmem:[%s406 + $0x60] sm:$0xff] %vm692, %v1206
          %1239 = vst.msk [vmem:[%s406 + $0x68] sm:$0xff] %vm692, %v1207
          %1240 = vst.msk [vmem:[%s406 + $0x70] sm:$0xff] %vm692, %v1208
          %1241 = vst.msk [vmem:[%s406 + $0x78] sm:$0xff] %vm692, %v1209
        $region89: #{ngcf_forward.4} parent=76 // pred_fallthru
          _
        %s1242 = smul.u32 16, %s22
        %p1243 = scmp.lt.s32.totalorder %s1242, 31
        %s1244 = scalar_select %p1243, %s1242, 31
        %s1245 = smul.addr %s1244, 8
        %s1246 = scalar_lea.vmem %s5, %s1245
        %s1247 = smul.u32 16, %s22
        %p1248 = scmp.lt.s32.totalorder %s1247, 31
        %s1249 = scalar_select %p1248, %s1247, 31
        %s1250 = smul.addr %s1249, 8
        %s1251 = scalar_lea.vmem %s6, %s1250
        // Predicated region
        $region90: #{ngcf_forward.4} parent=76 // pred_check
          %p1252 = pneg %p165
        $region91: #{ngcf_forward.4} parent=76 // pred_check_branch
          %1254 = sbr.rel (%p1252) target = $region93
        $region92: #{ngcf_forward.4} parent=76 // pred_region
          %s1255 = smul.u32 16, %s22
        $region93: #{ngcf_forward.4} parent=76 // pred_fallthru
          _
        // Predicated region
        $region94: #{ngcf_forward.4} parent=76 // pred_check
          %p1256 = pneg %p191
        $region95: #{ngcf_forward.4} parent=76 // pred_check_branch
          %1258 = sbr.rel (%p1256) target = $region97
        $region96: #{ngcf_forward.4} parent=76 // pred_region
          %s1259 = smul.u32 16, %s22
        $region97: #{ngcf_forward.4} parent=76 // pred_fallthru
          _
      $region77: #{ngcf_forward.4} parent=5 // pred_fallthru
        _
      %p1260 = scmp.le.s32.totalorder 2, %s13
      // Predicated region
      $region98: #{ngcf_forward.4} parent=5 // pred_check
        %p1261 = pneg %p1260
      $region99: #{ngcf_forward.4} parent=5 // pred_check_branch
        %1263 = sbr.rel (%p1261) target = $region101
      $region100: #{ngcf_forward.4} parent=5 // pred_region
        %s1264 = ssub.s32 %s13, 2
        // Predicated region
        $region102: #{ngcf_forward.4} parent=100 // pred_check
          %p1265 = pneg %p171
        $region103: #{ngcf_forward.4} parent=100 // pred_check_branch
          %1267 = sbr.rel (%p1265) target = $region105
        $region104: #{ngcf_forward.4} parent=100 // pred_region
          %s1268 = smul.u32 16, %s24
          %p1269 = scmp.lt.s32.totalorder %s1268, 31
          %s1270 = scalar_select %p1269, %s1268, 31
          %s1271 = smul.addr %s1270, 8
          %s1272 = scalar_lea.vmem %s5, %s1271
        $region105: #{ngcf_forward.4} parent=100 // pred_fallthru
          _
        // Predicated region
        $region106: #{ngcf_forward.4} parent=100 // pred_check
          %p1273 = pneg %p197
        $region107: #{ngcf_forward.4} parent=100 // pred_check_branch
          %1275 = sbr.rel (%p1273) target = $region109
        $region108: #{ngcf_forward.4} parent=100 // pred_region
          %s1276 = smul.u32 16, %s24
          %p1277 = scmp.lt.s32.totalorder %s1276, 31
          %s1278 = scalar_select %p1277, %s1276, 31
          %s1279 = smul.addr %s1278, 8
          %s1280 = scalar_lea.vmem %s6, %s1279
        $region109: #{ngcf_forward.4} parent=100 // pred_fallthru
          _
      $region101: #{ngcf_forward.4} parent=5 // pred_fallthru
        _
    $region6: #{ngcf_forward.4} parent=1 // loop_footer
      %s17 = sadd.s32 1, %s13
    $region7: #{ngcf_forward.4} parent=1 // loop_footer_branch
      %12 = sbr.rel target = $region3
    $region8: #{ngcf_forward.4} parent=1 // loop_exit
      _

// kernel: ngcf_forward.7
$region0: #{ngcf_forward.7}
  #allocation0 [shape = 'u32[]', space=smem, size = 0x4, offset = 0x4, fixed_abs, tag = 'smem constant byte address 0x4 - core index']
  #allocation1 [shape = 'u32[144,128]{1,0:T(1,128)}', space=vmem, size = 0x12000, scoped, tag = 'internal scratch']
  #allocation2 [shape = 'f32[128,32]{1,0:T(8,128)}', space=vmem, size = 0x10000, scoped, tag = 'scratch operand']
  %s0 = inlined_call_operand.vmem [shape: bf16[256,384], index: 0, kind: input, shape index: {}]
  %s1 = inlined_call_operand.vmem [shape: bf16[256,32], index: 1, kind: input, shape index: {}]
  %s2 = inlined_call_operand.vmem [shape: f32[384,32], index: 2, kind: input, shape index: {}]
  %s3 = inlined_call_operand.vmem [shape: f32[64,32], index: 3, kind: input, shape index: {}]
  %s4 = inlined_call_operand.vmem [shape: f32[1,32], index: 4, kind: input, shape index: {}]
  %s5 = inlined_call_operand.vmem [shape: f32[384,32], index: 5, kind: output, shape index: {}]
  %s6 = sld [smem:[#allocation0]]
  $region102: #{ngcf_forward.7} parent=0
    _
  %s8 = ssub.s32 1, %s6
  %s9 = scalar_select 0, %s8, %s6
  $region1: #{ngcf_forward.7} parent=0
    #allocation3 [shape = 'u8[65536]{0}', space=vmem, size = 0x10000, scoped, tag = 'input window, operand 0']
    loop: start=0, step=1, limit=8
    $region2: #{ngcf_forward.7} parent=1 // loop_pre_header
      _
    $region3: #{ngcf_forward.7} parent=1 // loop_header
      %s11 = sphi 0, %s15
      %p12 = scmp.ge.s32.totalorder %s11, 8
      %s18 = sphi 0, %s30
      %s19 = sphi 0, %s26
      %s20 = sphi 0, %s18
      %s21 = sphi 0, %s19
      %s22 = sphi 0, %s20
      %s23 = sphi 0, %s21
      %s35 = sphi 0, %s37
      %s38 = sphi 0, %s35
      %s39 = sphi 0, %s38
      %s55 = sphi 0, %s39
      %s59 = sphi 0, %s59
      %s61 = sphi 0, %s59
      %s62 = sphi 0, %s61
      %s76 = sphi 0, %s62
      %s82 = sphi 0, %s84
      %s85 = sphi 0, %s82
      %s86 = sphi 0, %s85
      %s102 = sphi 0, %s86
      %s106 = sphi 0, %s106
      %s108 = sphi 0, %s106
      %s109 = sphi 0, %s108
      %s123 = sphi 0, %s109
      %s127 = sphi 0, %s127
      %s129 = sphi 0, %s127
      %s130 = sphi 0, %s129
      %s144 = sphi 0, %s130
      %s150 = sphi 0, %s152
      %s153 = sphi 0, %s150
      %s154 = sphi 0, %s153
      %s170 = sphi 0, %s154
    $region4: #{ngcf_forward.7} parent=1 // loop_header_branch
      %14 = sbr.rel (%p12) target = $region8
    $region5: #{ngcf_forward.7} parent=1 // loop_body
      %s16 = ssub.s32 %s11, 1
      %s17 = ssub.s32 %s11, 2
      %s24 = sadd.s32 1, %s19
      %p25 = scmp.ge.s32.totalorder %s24, 2
      %s26 = scalar_select %p25, 0, %s24
      %s27 = sadd.s32 1, %s18
      %s28 = scalar_select %p25, %s27, %s18
      %p29 = scmp.ge.s32.totalorder %s28, 3
      %s30 = scalar_select %p29, 0, %s28
      %s31 = ssub.s32 %s19, %s26
      %s32 = ssub.s32 %s18, %s30
      %s33 = sor.u32 %s31, %s32
      %p34 = scmp.eq.s32.totalorder %s33, 0
      %s36 = sadd.s32 %s35, 1
      %s37 = scalar_select %p34, %s35, %s36
      %p40 = pneg %p34
      %p41 = scmp.eq.s32.totalorder %s11, 5
      %p42 = por %p40, %p41
      %p43 = scmp.ne.s32.totalorder %s35, %s38
      %p44 = scmp.eq.s32.totalorder %s11, 0
      %p45 = por %p43, %p44
      %p46 = scmp.ne.s32.totalorder %s35, %s38
      %p47 = scmp.eq.s32.totalorder %s16, 5
      %p48 = por %p46, %p47
      %p49 = scmp.ne.s32.totalorder %s38, %s39
      %p50 = scmp.eq.s32.totalorder %s16, 0
      %p51 = por %p49, %p50
      %p52 = scmp.ne.s32.totalorder %s38, %s39
      %p53 = scmp.eq.s32.totalorder %s17, 5
      %p54 = por %p52, %p53
      %p56 = scmp.ne.s32.totalorder %s39, %s55
      %p57 = scmp.eq.s32.totalorder %s17, 0
      %p58 = por %p56, %p57
      %s60 = sadd.s32 %s59, 1
      %p63 = scmp.eq.s32.totalorder %s11, 5
      %p64 = scmp.ne.s32.totalorder %s59, %s61
      %p65 = scmp.eq.s32.totalorder %s11, 0
      %p66 = por %p64, %p65
      %p67 = scmp.ne.s32.totalorder %s59, %s61
      %p68 = scmp.eq.s32.totalorder %s16, 5
      %p69 = por %p67, %p68
      %p70 = scmp.ne.s32.totalorder %s61, %s62
      %p71 = scmp.eq.s32.totalorder %s16, 0
      %p72 = por %p70, %p71
      %p73 = scmp.ne.s32.totalorder %s61, %s62
      %p74 = scmp.eq.s32.totalorder %s17, 5
      %p75 = por %p73, %p74
      %p77 = scmp.ne.s32.totalorder %s62, %s76
      %p78 = scmp.eq.s32.totalorder %s17, 0
      %p79 = por %p77, %p78
      %s80 = ssub.s32 %s18, %s30
      %p81 = scmp.eq.s32.totalorder %s80, 0
      %s83 = sadd.s32 %s82, 1
      %s84 = scalar_select %p81, %s82, %s83
      %p87 = pneg %p81
      %p88 = scmp.eq.s32.totalorder %s11, 5
      %p89 = por %p87, %p88
      %p90 = scmp.ne.s32.totalorder %s82, %s85
      %p91 = scmp.eq.s32.totalorder %s11, 0
      %p92 = por %p90, %p91
      %p93 = scmp.ne.s32.totalorder %s82, %s85
      %p94 = scmp.eq.s32.totalorder %s16, 5
      %p95 = por %p93, %p94
      %p96 = scmp.ne.s32.totalorder %s85, %s86
      %p97 = scmp.eq.s32.totalorder %s16, 0
      %p98 = por %p96, %p97
      %p99 = scmp.ne.s32.totalorder %s85, %s86
      %p100 = scmp.eq.s32.totalorder %s17, 5
      %p101 = por %p99, %p100
      %p103 = scmp.ne.s32.totalorder %s86, %s102
      %p104 = scmp.eq.s32.totalorder %s17, 0
      %p105 = por %p103, %p104
      %s107 = sadd.s32 %s106, 1
      %p110 = scmp.eq.s32.totalorder %s11, 5
      %p111 = scmp.ne.s32.totalorder %s106, %s108
      %p112 = scmp.eq.s32.totalorder %s11, 0
      %p113 = por %p111, %p112
      %p114 = scmp.ne.s32.totalorder %s106, %s108
      %p115 = scmp.eq.s32.totalorder %s16, 5
      %p116 = por %p114, %p115
      %p117 = scmp.ne.s32.totalorder %s108, %s109
      %p118 = scmp.eq.s32.totalorder %s16, 0
      %p119 = por %p117, %p118
      %p120 = scmp.ne.s32.totalorder %s108, %s109
      %p121 = scmp.eq.s32.totalorder %s17, 5
      %p122 = por %p120, %p121
      %p124 = scmp.ne.s32.totalorder %s109, %s123
      %p125 = scmp.eq.s32.totalorder %s17, 0
      %p126 = por %p124, %p125
      %s128 = sadd.s32 %s127, 1
      %p131 = scmp.eq.s32.totalorder %s11, 5
      %p132 = scmp.ne.s32.totalorder %s127, %s129
      %p133 = scmp.eq.s32.totalorder %s11, 0
      %p134 = por %p132, %p133
      %p135 = scmp.ne.s32.totalorder %s127, %s129
      %p136 = scmp.eq.s32.totalorder %s16, 5
      %p137 = por %p135, %p136
      %p138 = scmp.ne.s32.totalorder %s129, %s130
      %p139 = scmp.eq.s32.totalorder %s16, 0
      %p140 = por %p138, %p139
      %p141 = scmp.ne.s32.totalorder %s129, %s130
      %p142 = scmp.eq.s32.totalorder %s17, 5
      %p143 = por %p141, %p142
      %p145 = scmp.ne.s32.totalorder %s130, %s144
      %p146 = scmp.eq.s32.totalorder %s17, 0
      %p147 = por %p145, %p146
      %s148 = ssub.s32 %s18, %s30
      %p149 = scmp.eq.s32.totalorder %s148, 0
      %s151 = sadd.s32 %s150, 1
      %s152 = scalar_select %p149, %s150, %s151
      %p155 = pneg %p149
      %p156 = scmp.eq.s32.totalorder %s11, 5
      %p157 = por %p155, %p156
      %p158 = scmp.ne.s32.totalorder %s150, %s153
      %p159 = scmp.eq.s32.totalorder %s11, 0
      %p160 = por %p158, %p159
      %p161 = scmp.ne.s32.totalorder %s150, %s153
      %p162 = scmp.eq.s32.totalorder %s16, 5
      %p163 = por %p161, %p162
      %p164 = scmp.ne.s32.totalorder %s153, %s154
      %p165 = scmp.eq.s32.totalorder %s16, 0
      %p166 = por %p164, %p165
      %p167 = scmp.ne.s32.totalorder %s153, %s154
      %p168 = scmp.eq.s32.totalorder %s17, 5
      %p169 = por %p167, %p168
      %p171 = scmp.ne.s32.totalorder %s154, %s170
      %p172 = scmp.eq.s32.totalorder %s17, 0
      %p173 = por %p171, %p172
      %p174 = scmp.le.s32.totalorder 1, %s11
      %p175 = scmp.lt.s32.totalorder %s11, 7
      %p176 = pnand %p174, %p175
      %p177 = pneg %p176
      // Predicated region
      $region9: #{ngcf_forward.7} parent=5 // pred_check
        _
      $region10: #{ngcf_forward.7} parent=5 // pred_check_branch
        %179 = sbr.rel (%p176) target = $region12
      $region11: #{ngcf_forward.7} parent=5 // pred_region
        %s180 = ssub.s32 %s11, 1
        // Predicated region
        $region13: #{ngcf_forward.7} parent=11 // pred_check
          %p181 = pneg %p72
        $region14: #{ngcf_forward.7} parent=11 // pred_check_branch
          %183 = sbr.rel (%p181) target = $region16
        $region15: #{ngcf_forward.7} parent=11 // pred_region
          _
        $region16: #{ngcf_forward.7} parent=11 // pred_fallthru
          _
        // Predicated region
        $region17: #{ngcf_forward.7} parent=11 // pred_check
          %p184 = pneg %p119
        $region18: #{ngcf_forward.7} parent=11 // pred_check_branch
          %186 = sbr.rel (%p184) target = $region20
        $region19: #{ngcf_forward.7} parent=11 // pred_region
          _
        $region20: #{ngcf_forward.7} parent=11 // pred_fallthru
          _
        // Predicated region
        $region21: #{ngcf_forward.7} parent=11 // pred_check
          %p187 = pneg %p140
        $region22: #{ngcf_forward.7} parent=11 // pred_check_branch
          %189 = sbr.rel (%p187) target = $region24
        $region23: #{ngcf_forward.7} parent=11 // pred_region
          _
        $region24: #{ngcf_forward.7} parent=11 // pred_fallthru
          _
      $region12: #{ngcf_forward.7} parent=5 // pred_fallthru
        _
      %p190 = scmp.lt.s32.totalorder %s11, 6
      // Predicated region
      $region25: #{ngcf_forward.7} parent=5 // pred_check
        %p191 = pneg %p190
      $region26: #{ngcf_forward.7} parent=5 // pred_check_branch
        %193 = sbr.rel (%p191) target = $region28
      $region27: #{ngcf_forward.7} parent=5 // pred_region
        // Predicated region
        $region29: #{ngcf_forward.7} parent=27 // pred_check
          %p194 = pneg %p45
        $region30: #{ngcf_forward.7} parent=27 // pred_check_branch
          %196 = sbr.rel (%p194) target = $region32
        $region31: #{ngcf_forward.7} parent=27 // pred_region
          %s197 = sand.u32 %s35, 1
          %s198 = sand.u32 %s35, 1
          %s199 = smul.addr %s198, 64
          %s200 = scalar_lea.vmem [#allocation3], %s199
          %s201 = smul.u32 16, %s19
          %s202 = smul.addr %s201, 3
          %s203 = sadd.s32 %s18, %s202
          %s204 = smul.addr %s203, 4
          %s205 = scalar_lea.vmem %s0, %s204
          // Predicated region
          $region33: #{ngcf_forward.7} parent=31 // pred_check
            _
          $region34: #{ngcf_forward.7} parent=31 // pred_check_branch
            %207 = sbr.rel (0) target = $region36
          $region35: #{ngcf_forward.7} parent=31 // pred_region
            // Predicated region
            $region37: #{ngcf_forward.7} parent=35 // pred_check
              _
            $region38: #{ngcf_forward.7} parent=35 // pred_check_branch
              %209 = sbr.rel target = $region40
            $region39: #{ngcf_forward.7} parent=35 // pred_region
              // Predicated region
              $region52: #{ngcf_forward.7} parent=39 // pred_check
                _
              $region53: #{ngcf_forward.7} parent=39 // pred_check_branch
                %254 = sbr.rel (0) target = $region55
              $region54: #{ngcf_forward.7} parent=39 // pred_region
                loop: start=0, step=1, limit=1
                $region56: #{ngcf_forward.7} parent=54 // loop_pre_header
                  _
                $region57: #{ngcf_forward.7} parent=54 // loop_header
                  %s256 = sphi 0, %s260
                  %p257 = scmp.ge.s32.totalorder %s256, 1
                  %s261 = sphi %s205, %s205
                  %s262 = sphi %s200, %s200
                $region58: #{ngcf_forward.7} parent=54 // loop_header_branch
                  %259 = sbr.rel (%p257) target = $region62
                $region59: #{ngcf_forward.7} parent=54 // loop_body
                  _
                $region60: #{ngcf_forward.7} parent=54 // loop_footer
                  %s260 = sadd.s32 1, %s256
                $region61: #{ngcf_forward.7} parent=54 // loop_footer_branch
                  %255 = sbr.rel target = $region57
                $region62: #{ngcf_forward.7} parent=54 // loop_exit
                  _
                loop: start=0, step=1, limit=1
                $region63: #{ngcf_forward.7} parent=54 // loop_pre_header
                  _
                $region64: #{ngcf_forward.7} parent=54 // loop_header
                  %s265 = sphi 0, %s269
                  %p266 = scmp.ge.s32.totalorder %s265, 1
                  %s270 = sphi %s205, %s205
                  %s271 = sphi %s200, %s200
                $region65: #{ngcf_forward.7} parent=54 // loop_header_branch
                  %268 = sbr.rel (%p266) target = $region69
                $region66: #{ngcf_forward.7} parent=54 // loop_body
                  %v272 = vld [vmem:[%s270] sm:$0xf]
                  %273 = vst [vmem:[%s271] sm:$0xf] %v272
                  %v274 = vld [vmem:[%s270 + $0xc] sm:$0xf]
                  %275 = vst [vmem:[%s271 + $0x4] sm:$0xf] %v274
                  %v276 = vld [vmem:[%s270 + $0x18] sm:$0xf]
                  %277 = vst [vmem:[%s271 + $0x8] sm:$0xf] %v276
                  %v278 = vld [vmem:[%s270 + $0x24] sm:$0xf]
                  %279 = vst [vmem:[%s271 + $0xc] sm:$0xf] %v278
                  %v280 = vld [vmem:[%s270 + $0x30] sm:$0xf]
                  %281 = vst [vmem:[%s271 + $0x10] sm:$0xf] %v280
                  %v282 = vld [vmem:[%s270 + $0x3c] sm:$0xf]
                  %283 = vst [vmem:[%s271 + $0x14] sm:$0xf] %v282
                  %v284 = vld [vmem:[%s270 + $0x48] sm:$0xf]
                  %285 = vst [vmem:[%s271 + $0x18] sm:$0xf] %v284
                  %v286 = vld [vmem:[%s270 + $0x54] sm:$0xf]
                  %287 = vst [vmem:[%s271 + $0x1c] sm:$0xf] %v286
                  %v288 = vld [vmem:[%s270 + $0x60] sm:$0xf]
                  %289 = vst [vmem:[%s271 + $0x20] sm:$0xf] %v288
                  %v290 = vld [vmem:[%s270 + $0x6c] sm:$0xf]
                  %291 = vst [vmem:[%s271 + $0x24] sm:$0xf] %v290
                  %v292 = vld [vmem:[%s270 + $0x78] sm:$0xf]
                  %293 = vst [vmem:[%s271 + $0x28] sm:$0xf] %v292
                  %v294 = vld [vmem:[%s270 + $0x84] sm:$0xf]
                  %295 = vst [vmem:[%s271 + $0x2c] sm:$0xf] %v294
                  %v296 = vld [vmem:[%s270 + $0x90] sm:$0xf]
                  %297 = vst [vmem:[%s271 + $0x30] sm:$0xf] %v296
                  %v298 = vld [vmem:[%s270 + $0x9c] sm:$0xf]
                  %299 = vst [vmem:[%s271 + $0x34] sm:$0xf] %v298
                  %v300 = vld [vmem:[%s270 + $0xa8] sm:$0xf]
                  %301 = vst [vmem:[%s271 + $0x38] sm:$0xf] %v300
                  %v302 = vld [vmem:[%s270 + $0xb4] sm:$0xf]
                  %303 = vst [vmem:[%s271 + $0x3c] sm:$0xf] %v302
                $region67: #{ngcf_forward.7} parent=54 // loop_footer
                  %s269 = sadd.s32 1, %s265
                $region68: #{ngcf_forward.7} parent=54 // loop_footer_branch
                  %264 = sbr.rel target = $region64
                $region69: #{ngcf_forward.7} parent=54 // loop_exit
                  _
              $region55: #{ngcf_forward.7} parent=39 // pred_fallthru
                _
            $region40: #{ngcf_forward.7} parent=35 // pred_fallthru
              _
            // Predicated region
            $region41: #{ngcf_forward.7} parent=35 // pred_check
              _
            $region42: #{ngcf_forward.7} parent=35 // pred_check_branch
              %211 = sbr.rel (0) target = $region44
            $region43: #{ngcf_forward.7} parent=35 // pred_region
              loop: start=0, step=1, limit=1
              $region45: #{ngcf_forward.7} parent=43 // loop_pre_header
                _
              $region46: #{ngcf_forward.7} parent=43 // loop_header
                %s214 = sphi 0, %s218
                %p215 = scmp.ge.s32.totalorder %s214, 1
                %s219 = sphi %s205, %s205
                %s220 = sphi %s200, %s200
              $region47: #{ngcf_forward.7} parent=43 // loop_header_branch
                %217 = sbr.rel (%p215) target = $region51
              $region48: #{ngcf_forward.7} parent=43 // loop_body
                %v221 = vld [vmem:[%s219] sm:$0xf]
                %222 = vst [vmem:[%s220] sm:$0xf] %v221
                %v223 = vld [vmem:[%s219 + $0xc] sm:$0xf]
                %224 = vst [vmem:[%s220 + $0x4] sm:$0xf] %v223
                %v225 = vld [vmem:[%s219 + $0x18] sm:$0xf]
                %226 = vst [vmem:[%s220 + $0x8] sm:$0xf] %v225
                %v227 = vld [vmem:[%s219 + $0x24] sm:$0xf]
                %228 = vst [vmem:[%s220 + $0xc] sm:$0xf] %v227
                %v229 = vld [vmem:[%s219 + $0x30] sm:$0xf]
                %230 = vst [vmem:[%s220 + $0x10] sm:$0xf] %v229
                %v231 = vld [vmem:[%s219 + $0x3c] sm:$0xf]
                %232 = vst [vmem:[%s220 + $0x14] sm:$0xf] %v231
                %v233 = vld [vmem:[%s219 + $0x48] sm:$0xf]
                %234 = vst [vmem:[%s220 + $0x18] sm:$0xf] %v233
                %v235 = vld [vmem:[%s219 + $0x54] sm:$0xf]
                %236 = vst [vmem:[%s220 + $0x1c] sm:$0xf] %v235
                %v237 = vld [vmem:[%s219 + $0x60] sm:$0xf]
                %238 = vst [vmem:[%s220 + $0x20] sm:$0xf] %v237
                %v239 = vld [vmem:[%s219 + $0x6c] sm:$0xf]
                %240 = vst [vmem:[%s220 + $0x24] sm:$0xf] %v239
                %v241 = vld [vmem:[%s219 + $0x78] sm:$0xf]
                %242 = vst [vmem:[%s220 + $0x28] sm:$0xf] %v241
                %v243 = vld [vmem:[%s219 + $0x84] sm:$0xf]
                %244 = vst [vmem:[%s220 + $0x2c] sm:$0xf] %v243
                %v245 = vld [vmem:[%s219 + $0x90] sm:$0xf]
                %246 = vst [vmem:[%s220 + $0x30] sm:$0xf] %v245
                %v247 = vld [vmem:[%s219 + $0x9c] sm:$0xf]
                %248 = vst [vmem:[%s220 + $0x34] sm:$0xf] %v247
                %v249 = vld [vmem:[%s219 + $0xa8] sm:$0xf]
                %250 = vst [vmem:[%s220 + $0x38] sm:$0xf] %v249
                %v251 = vld [vmem:[%s219 + $0xb4] sm:$0xf]
                %252 = vst [vmem:[%s220 + $0x3c] sm:$0xf] %v251
              $region49: #{ngcf_forward.7} parent=43 // loop_footer
                %s218 = sadd.s32 1, %s214
              $region50: #{ngcf_forward.7} parent=43 // loop_footer_branch
                %213 = sbr.rel target = $region46
              $region51: #{ngcf_forward.7} parent=43 // loop_exit
                _
            $region44: #{ngcf_forward.7} parent=35 // pred_fallthru
              _
          $region36: #{ngcf_forward.7} parent=31 // pred_fallthru
            _
          %304 = vnop
        $region32: #{ngcf_forward.7} parent=27 // pred_fallthru
          _
        // Predicated region
        $region70: #{ngcf_forward.7} parent=27 // pred_check
          %p305 = pneg %p92
        $region71: #{ngcf_forward.7} parent=27 // pred_check_branch
          %307 = sbr.rel (%p305) target = $region73
        $region72: #{ngcf_forward.7} parent=27 // pred_region
          %s308 = smul.u32 16, %s18
          %p309 = scmp.lt.s32.totalorder %s308, 47
          %s310 = scalar_select %p309, %s308, 47
          %s311 = smul.addr %s310, 8
          %s312 = scalar_lea.vmem %s2, %s311
          %s313 = smul.u32 16, %s18
        $region73: #{ngcf_forward.7} parent=27 // pred_fallthru
          _
      $region28: #{ngcf_forward.7} parent=5 // pred_fallthru
        _
      %p314 = scmp.le.s32.totalorder 1, %s11
      %p315 = scmp.lt.s32.totalorder %s11, 7
      %p316 = pnand %p314, %p315
      %p317 = pneg %p316
      // Predicated region
      $region74: #{ngcf_forward.7} parent=5 // pred_check
        _
      $region75: #{ngcf_forward.7} parent=5 // pred_check_branch
        %319 = sbr.rel (%p316) target = $region77
      $region76: #{ngcf_forward.7} parent=5 // pred_region
        %s320 = ssub.s32 %s11, 1
        %s321 = sand.u32 %s38, 1
        %s322 = sand.u32 %s38, 1
        %s323 = smul.addr %s322, 64
        %s324 = scalar_lea.vmem [#allocation3], %s323
        // Predicated region
        $region78: #{ngcf_forward.7} parent=76 // pred_check
          %p325 = pneg %p51
        $region79: #{ngcf_forward.7} parent=76 // pred_check_branch
          %327 = sbr.rel (%p325) target = $region81
        $region80: #{ngcf_forward.7} parent=76 // pred_region
          _
        $region81: #{ngcf_forward.7} parent=76 // pred_fallthru
          _
        %s328 = sand.u32 %s38, 1
        %s329 = sand.u32 %s38, 1
        %s330 = smul.addr %s329, 64
        %s331 = scalar_lea.vmem [#allocation3], %s330
        %p332 = pneg %p51
        %p333 = pneg %p48
        %p334 = pneg %p72
        %p335 = pneg %p69
        %s336 = smul.u32 16, %s20
        %p337 = scmp.lt.s32.totalorder %s336, 47
        %s338 = scalar_select %p337, %s336, 47
        %s339 = smul.addr %s338, 8
        %s340 = scalar_lea.vmem %s2, %s339
        %p341 = pneg %p98
        %p342 = pneg %p95
        %p343 = pneg %p119
        %p344 = pneg %p116
        %p345 = pneg %p140
        %p346 = pneg %p137
        %p347 = pneg %p166
        %p348 = pneg %p163
        %s349 = smul.u32 16, %s20
        %p350 = scmp.lt.s32.totalorder %s349, 47
        %s351 = scalar_select %p350, %s349, 47
        %s352 = smul.addr %s351, 8
        %s353 = scalar_lea.vmem %s5, %s352
        %s354 = smul.u32 16, %s21
        %s355 = smul.u32 16, %s20
        %p356 = scmp.lt.s32.totalorder %s355, 47
        %s357 = scalar_select %p356, %s355, 47
        %s358 = smul.addr %s357, 8
        %s359 = scalar_lea.vmem %s2, %s358
        %s360 = smul.u32 16, %s20
        %s361 = smul.u32 16, %s20
        %p362 = scmp.lt.s32.totalorder %s361, 47
        %s363 = scalar_select %p362, %s361, 47
        %s364 = smul.addr %s363, 8
        %s365 = scalar_lea.vmem %s5, %s364
        %s366 = smul.u32 16, %s20
        %p368 = scmp.eq.s32.totalorder %s21, 0
        // Predicated region
        $region82: #{ngcf_forward.7} parent=76 // pred_check
          %p369 = pneg %p368
        $region83: #{ngcf_forward.7} parent=76 // pred_check_branch
          %371 = sbr.rel (%p369) target = $region85
        $region84: #{ngcf_forward.7} parent=76 // pred_region
          %vm372 = vcmask 261120
          %373 = vst.msk [vmem:[#allocation2] sm:$0xff] %vm372, 0.0
          %374 = vst.msk [vmem:[#allocation2 + $0x8] sm:$0xff] %vm372, 0.0
          %375 = vst.msk [vmem:[#allocation2 + $0x10] sm:$0xff] %vm372, 0.0
          %376 = vst.msk [vmem:[#allocation2 + $0x18] sm:$0xff] %vm372, 0.0
          %377 = vst.msk [vmem:[#allocation2 + $0x20] sm:$0xff] %vm372, 0.0
          %378 = vst.msk [vmem:[#allocation2 + $0x28] sm:$0xff] %vm372, 0.0
          %379 = vst.msk [vmem:[#allocation2 + $0x30] sm:$0xff] %vm372, 0.0
          %380 = vst.msk [vmem:[#allocation2 + $0x38] sm:$0xff] %vm372, 0.0
          %381 = vst.msk [vmem:[#allocation2 + $0x40] sm:$0xff] %vm372, 0.0
          %382 = vst.msk [vmem:[#allocation2 + $0x48] sm:$0xff] %vm372, 0.0
          %383 = vst.msk [vmem:[#allocation2 + $0x50] sm:$0xff] %vm372, 0.0
          %384 = vst.msk [vmem:[#allocation2 + $0x58] sm:$0xff] %vm372, 0.0
          %385 = vst.msk [vmem:[#allocation2 + $0x60] sm:$0xff] %vm372, 0.0
          %386 = vst.msk [vmem:[#allocation2 + $0x68] sm:$0xff] %vm372, 0.0
          %387 = vst.msk [vmem:[#allocation2 + $0x70] sm:$0xff] %vm372, 0.0
          %388 = vst.msk [vmem:[#allocation2 + $0x78] sm:$0xff] %vm372, 0.0
        $region85: #{ngcf_forward.7} parent=76 // pred_fallthru
          _
        %s389 = smul.u32 %s21, 128
        %s390 = sshra.s32 %s389, 3
        %s391 = sand.u32 %s389, 7
        %s392 = smul.addr %s390, 4
        %s393 = scalar_lea.vmem %s1, %s392
        %v394 = vld [vmem:[%s393] sm:$0xf]
        %v395 = vld [vmem:[%s393 + $0x4] sm:$0xf]
        %v396 = vld [vmem:[%s393 + $0x8] sm:$0xf]
        %v397 = vld [vmem:[%s393 + $0xc] sm:$0xf]
        %v398 = vld [vmem:[%s393 + $0x10] sm:$0xf]
        %v399 = vld [vmem:[%s393 + $0x14] sm:$0xf]
        %v400 = vld [vmem:[%s393 + $0x18] sm:$0xf]
        %v401 = vld [vmem:[%s393 + $0x1c] sm:$0xf]
        %v402 = vld [vmem:[%s393 + $0x20] sm:$0xf]
        %v403 = vld [vmem:[%s393 + $0x24] sm:$0xf]
        %v404 = vld [vmem:[%s393 + $0x28] sm:$0xf]
        %v405 = vld [vmem:[%s393 + $0x2c] sm:$0xf]
        %v406 = vld [vmem:[%s393 + $0x30] sm:$0xf]
        %v407 = vld [vmem:[%s393 + $0x34] sm:$0xf]
        %v408 = vld [vmem:[%s393 + $0x38] sm:$0xf]
        %v409 = vld [vmem:[%s393 + $0x3c] sm:$0xf]
        %v410 = vld [vmem:[%s324] sm:$0xf]
        %v411 = vld [vmem:[%s324 + $0x4] sm:$0xf]
        %v412 = vld [vmem:[%s324 + $0x8] sm:$0xf]
        %v413 = vld [vmem:[%s324 + $0xc] sm:$0xf]
        %v414 = vld [vmem:[%s324 + $0x10] sm:$0xf]
        %v415 = vld [vmem:[%s324 + $0x14] sm:$0xf]
        %v416 = vld [vmem:[%s324 + $0x18] sm:$0xf]
        %v417 = vld [vmem:[%s324 + $0x1c] sm:$0xf]
        %v418 = vld [vmem:[%s324 + $0x20] sm:$0xf]
        %v419 = vld [vmem:[%s324 + $0x24] sm:$0xf]
        %v420 = vld [vmem:[%s324 + $0x28] sm:$0xf]
        %v421 = vld [vmem:[%s324 + $0x2c] sm:$0xf]
        %v422 = vld [vmem:[%s324 + $0x30] sm:$0xf]
        %v423 = vld [vmem:[%s324 + $0x34] sm:$0xf]
        %v424 = vld [vmem:[%s324 + $0x38] sm:$0xf]
        %v425 = vld [vmem:[%s324 + $0x3c] sm:$0xf]
        %v442 = vunpack.c.l.b16 %v410
        %v443 = vunpack.c.l.b16 %v411
        %v444 = vunpack.c.l.b16 %v412
        %v445 = vunpack.c.l.b16 %v413
        %v446 = vunpack.c.l.b16 %v414
        %v447 = vunpack.c.l.b16 %v415
        %v448 = vunpack.c.l.b16 %v416
        %v449 = vunpack.c.l.b16 %v417
        %v450 = vunpack.c.l.b16 %v418
        %v451 = vunpack.c.l.b16 %v419
        %v452 = vunpack.c.l.b16 %v420
        %v453 = vunpack.c.l.b16 %v421
        %v454 = vunpack.c.l.b16 %v422
        %v455 = vunpack.c.l.b16 %v423
        %v456 = vunpack.c.l.b16 %v424
        %v457 = vunpack.c.l.b16 %v425
        %v458 = vpack.c.b16 %v443, %v442
        %v459 = vpack.c.b16 %v445, %v444
        %v460 = vpack.c.b16 %v447, %v446
        %v461 = vpack.c.b16 %v449, %v448
        %v462 = vpack.c.b16 %v451, %v450
        %v463 = vpack.c.b16 %v453, %v452
        %v464 = vpack.c.b16 %v455, %v454
        %v465 = vpack.c.b16 %v457, %v456
        %474 = vxpose.xlu0.c.b16.start [1/8] %v458, 128
        %475 = vxpose.xlu0.c.b16.cont [2/8] %v459, 128
        %476 = vxpose.xlu0.c.b16.cont [3/8] %v460, 128
        %477 = vxpose.xlu0.c.b16.cont [4/8] %v461, 128
        %478 = vxpose.xlu0.c.b16.cont [5/8] %v462, 128
        %479 = vxpose.xlu0.c.b16.cont [6/8] %v463, 128
        %480 = vxpose.xlu0.c.b16.cont [7/8] %v464, 128
        %481 = vxpose.xlu0.c.b16.end [8/8] %v465, 128
        %v482 = vpop.trf.xlu0
        %v483 = vpop.trf.xlu0
        %v484 = vpop.trf.xlu0
        %v485 = vpop.trf.xlu0
        %v486 = vpop.trf.xlu0
        %v487 = vpop.trf.xlu0
        %v488 = vpop.trf.xlu0
        %v489 = vpop.trf.xlu0
        %v506 = vunpack.c.l.b16 %v394
        %v507 = vunpack.c.l.b16 %v395
        %v508 = vunpack.c.l.b16 %v396
        %v509 = vunpack.c.l.b16 %v397
        %v510 = vunpack.c.l.b16 %v398
        %v511 = vunpack.c.l.b16 %v399
        %v512 = vunpack.c.l.b16 %v400
        %v513 = vunpack.c.l.b16 %v401
        %v514 = vunpack.c.l.b16 %v402
        %v515 = vunpack.c.l.b16 %v403
        %v516 = vunpack.c.l.b16 %v404
        %v517 = vunpack.c.l.b16 %v405
        %v518 = vunpack.c.l.b16 %v406
        %v519 = vunpack.c.l.b16 %v407
        %v520 = vunpack.c.l.b16 %v408
        %v521 = vunpack.c.l.b16 %v409
        %v522 = vpack.c.b16 %v507, %v506
        %v523 = vpack.c.b16 %v509, %v508
        %v524 = vpack.c.b16 %v511, %v510
        %v525 = vpack.c.b16 %v513, %v512
        %v526 = vpack.c.b16 %v515, %v514
        %v527 = vpack.c.b16 %v517, %v516
        %v528 = vpack.c.b16 %v519, %v518
        %v529 = vpack.c.b16 %v521, %v520
        %538 = vmatprep.subr.bf16.mxu0 0
        %539 = vmatpush1.bf16.msra.mxu0 %v522
        %540 = vmatprep.subr.bf16.mxu0 0
        %541 = vmatpush1.bf16.msra.mxu0 %v523
        %542 = vmatprep.subr.bf16.mxu0 0
        %543 = vmatpush1.bf16.msra.mxu0 %v524
        %544 = vmatprep.subr.bf16.mxu0 0
        %545 = vmatpush1.bf16.msra.mxu0 %v525
        %546 = vmatprep.subr.bf16.mxu0 0
        %547 = vmatpush1.bf16.msra.mxu0 %v526
        %548 = vmatprep.subr.bf16.mxu0 0
        %549 = vmatpush1.bf16.msra.mxu0 %v527
        %550 = vmatprep.subr.bf16.mxu0 0
        %551 = vmatpush1.bf16.msra.mxu0 %v528
        %552 = vmatprep.subr.bf16.mxu0 0
        %553 = vmatpush1.bf16.msra.mxu0 %v529
        %554 = vmatprep.subr.bf16.mxu0 0
        %555 = vmatpush1.bf16.msra.mxu0 0
        %556 = vmatprep.subr.bf16.mxu0 0
        %557 = vmatpush1.bf16.msra.mxu0 0
        %558 = vmatprep.subr.bf16.mxu0 0
        %559 = vmatpush1.bf16.msra.mxu0 0
        %560 = vmatprep.subr.bf16.mxu0 0
        %561 = vmatpush1.bf16.msra.mxu0 0
        %562 = vmatprep.subr.bf16.mxu0 0
        %563 = vmatpush1.bf16.msra.mxu0 0
        %564 = vmatprep.subr.bf16.mxu0 0
        %565 = vmatpush1.bf16.msra.mxu0 0
        %566 = vmatprep.subr.bf16.mxu0 0
        %567 = vmatpush1.bf16.msra.mxu0 0
        %568 = vmatprep.subr.bf16.mxu0 0
        %569 = vmatpush1.bf16.msra.mxu0 0
        %570 = vmatprep.mubr.bf16.mxu0 0
        %571 = vmatmul.mubr.bf16.gmra.mrb[0].mxu0 %v482
        %v572 = vpop.f32.mrb[0].mxu0
        %v573 = vadd.f32 0.0, %v572
        %v574 = vpop.f32.mrb[0].mxu0
        %v575 = vpop.f32.mrb[0].mxu0
        %v576 = vadd.f32 0.0, %v575
        %v577 = vpop.f32.mrb[0].mxu0
        %578 = vmatprep.mubr.bf16.mxu0 0
        %579 = vmatmul.mubr.bf16.gmra.mrb[0].mxu0 %v483
        %v580 = vpop.f32.mrb[0].mxu0
        %v581 = vadd.f32 0.0, %v580
        %v582 = vpop.f32.mrb[0].mxu0
        %v583 = vpop.f32.mrb[0].mxu0
        %v584 = vadd.f32 0.0, %v583
        %v585 = vpop.f32.mrb[0].mxu0
        %586 = vmatprep.mubr.bf16.mxu0 0
        %587 = vmatmul.mubr.bf16.gmra.mrb[0].mxu0 %v484
        %v588 = vpop.f32.mrb[0].mxu0
        %v589 = vadd.f32 0.0, %v588
        %v590 = vpop.f32.mrb[0].mxu0
        %v591 = vpop.f32.mrb[0].mxu0
        %v592 = vadd.f32 0.0, %v591
        %v593 = vpop.f32.mrb[0].mxu0
        %594 = vmatprep.mubr.bf16.mxu0 0
        %595 = vmatmul.mubr.bf16.gmra.mrb[0].mxu0 %v485
        %v596 = vpop.f32.mrb[0].mxu0
        %v597 = vadd.f32 0.0, %v596
        %v598 = vpop.f32.mrb[0].mxu0
        %v599 = vpop.f32.mrb[0].mxu0
        %v600 = vadd.f32 0.0, %v599
        %v601 = vpop.f32.mrb[0].mxu0
        %602 = vmatprep.mubr.bf16.mxu0 0
        %603 = vmatmul.mubr.bf16.gmra.mrb[0].mxu0 %v486
        %v604 = vpop.f32.mrb[0].mxu0
        %v605 = vadd.f32 0.0, %v604
        %v606 = vpop.f32.mrb[0].mxu0
        %v607 = vpop.f32.mrb[0].mxu0
        %v608 = vadd.f32 0.0, %v607
        %v609 = vpop.f32.mrb[0].mxu0
        %610 = vmatprep.mubr.bf16.mxu0 0
        %611 = vmatmul.mubr.bf16.gmra.mrb[0].mxu0 %v487
        %v612 = vpop.f32.mrb[0].mxu0
        %v613 = vadd.f32 0.0, %v612
        %v614 = vpop.f32.mrb[0].mxu0
        %v615 = vpop.f32.mrb[0].mxu0
        %v616 = vadd.f32 0.0, %v615
        %v617 = vpop.f32.mrb[0].mxu0
        %618 = vmatprep.mubr.bf16.mxu0 0
        %619 = vmatmul.mubr.bf16.gmra.mrb[0].mxu0 %v488
        %v620 = vpop.f32.mrb[0].mxu0
        %v621 = vadd.f32 0.0, %v620
        %v622 = vpop.f32.mrb[0].mxu0
        %v623 = vpop.f32.mrb[0].mxu0
        %v624 = vadd.f32 0.0, %v623
        %v625 = vpop.f32.mrb[0].mxu0
        %626 = vmatprep.mubr.bf16.mxu0 0
        %627 = vmatmul.mubr.bf16.gmra.mrb[0].mxu0 %v489
        %v628 = vpop.f32.mrb[0].mxu0
        %v629 = vadd.f32 0.0, %v628
        %v630 = vpop.f32.mrb[0].mxu0
        %v631 = vpop.f32.mrb[0].mxu0
        %v632 = vadd.f32 0.0, %v631
        %v633 = vpop.f32.mrb[0].mxu0
        %634 = vdwg.mxu0
        %v635 = vld [vmem:[#allocation2] sm:$0xff]
        %v636 = vld [vmem:[#allocation2 + $0x8] sm:$0xff]
        %v637 = vld [vmem:[#allocation2 + $0x10] sm:$0xff]
        %v638 = vld [vmem:[#allocation2 + $0x18] sm:$0xff]
        %v639 = vld [vmem:[#allocation2 + $0x20] sm:$0xff]
        %v640 = vld [vmem:[#allocation2 + $0x28] sm:$0xff]
        %v641 = vld [vmem:[#allocation2 + $0x30] sm:$0xff]
        %v642 = vld [vmem:[#allocation2 + $0x38] sm:$0xff]
        %v643 = vld [vmem:[#allocation2 + $0x40] sm:$0xff]
        %v644 = vld [vmem:[#allocation2 + $0x48] sm:$0xff]
        %v645 = vld [vmem:[#allocation2 + $0x50] sm:$0xff]
        %v646 = vld [vmem:[#allocation2 + $0x58] sm:$0xff]
        %v647 = vld [vmem:[#allocation2 + $0x60] sm:$0xff]
        %v648 = vld [vmem:[#allocation2 + $0x68] sm:$0xff]
        %v649 = vld [vmem:[#allocation2 + $0x70] sm:$0xff]
        %v650 = vld [vmem:[#allocation2 + $0x78] sm:$0xff]
        %v651 = vadd.f32 %v635, %v573
        %v652 = vadd.f32 %v636, %v576
        %v653 = vadd.f32 %v637, %v581
        %v654 = vadd.f32 %v638, %v584
        %v655 = vadd.f32 %v639, %v589
        %v656 = vadd.f32 %v640, %v592
        %v657 = vadd.f32 %v641, %v597
        %v658 = vadd.f32 %v642, %v600
        %v659 = vadd.f32 %v643, %v605
        %v660 = vadd.f32 %v644, %v608
        %v661 = vadd.f32 %v645, %v613
        %v662 = vadd.f32 %v646, %v616
        %v663 = vadd.f32 %v647, %v621
        %v664 = vadd.f32 %v648, %v624
        %v665 = vadd.f32 %v649, %v629
        %v666 = vadd.f32 %v650, %v632
        %vm667 = vcmask 261120
        %668 = vst.msk [vmem:[#allocation2] sm:$0xff] %vm667, %v651
        %669 = vst.msk [vmem:[#allocation2 + $0x8] sm:$0xff] %vm667, %v652
        %670 = vst.msk [vmem:[#allocation2 + $0x10] sm:$0xff] %vm667, %v653
        %671 = vst.msk [vmem:[#allocation2 + $0x18] sm:$0xff] %vm667, %v654
        %672 = vst.msk [vmem:[#allocation2 + $0x20] sm:$0xff] %vm667, %v655
        %673 = vst.msk [vmem:[#allocation2 + $0x28] sm:$0xff] %vm667, %v656
        %674 = vst.msk [vmem:[#allocation2 + $0x30] sm:$0xff] %vm667, %v657
        %675 = vst.msk [vmem:[#allocation2 + $0x38] sm:$0xff] %vm667, %v658
        %676 = vst.msk [vmem:[#allocation2 + $0x40] sm:$0xff] %vm667, %v659
        %677 = vst.msk [vmem:[#allocation2 + $0x48] sm:$0xff] %vm667, %v660
        %678 = vst.msk [vmem:[#allocation2 + $0x50] sm:$0xff] %vm667, %v661
        %679 = vst.msk [vmem:[#allocation2 + $0x58] sm:$0xff] %vm667, %v662
        %680 = vst.msk [vmem:[#allocation2 + $0x60] sm:$0xff] %vm667, %v663
        %681 = vst.msk [vmem:[#allocation2 + $0x68] sm:$0xff] %vm667, %v664
        %682 = vst.msk [vmem:[#allocation2 + $0x70] sm:$0xff] %vm667, %v665
        %683 = vst.msk [vmem:[#allocation2 + $0x78] sm:$0xff] %vm667, %v666
        %p684 = scmp.eq.s32.totalorder %s21, 1
        // Predicated region
        $region86: #{ngcf_forward.7} parent=76 // pred_check
          %p685 = pneg %p684
        $region87: #{ngcf_forward.7} parent=76 // pred_check_branch
          %687 = sbr.rel (%p685) target = $region89
        $region88: #{ngcf_forward.7} parent=76 // pred_region
          %v688 = vld [vmem:[#allocation2] sm:$0xff]
          %v689 = vld [vmem:[#allocation2 + $0x8] sm:$0xff]
          %v690 = vld [vmem:[#allocation2 + $0x10] sm:$0xff]
          %v691 = vld [vmem:[#allocation2 + $0x18] sm:$0xff]
          %v692 = vld [vmem:[#allocation2 + $0x20] sm:$0xff]
          %v693 = vld [vmem:[#allocation2 + $0x28] sm:$0xff]
          %v694 = vld [vmem:[#allocation2 + $0x30] sm:$0xff]
          %v695 = vld [vmem:[#allocation2 + $0x38] sm:$0xff]
          %v696 = vld [vmem:[#allocation2 + $0x40] sm:$0xff]
          %v697 = vld [vmem:[#allocation2 + $0x48] sm:$0xff]
          %v698 = vld [vmem:[#allocation2 + $0x50] sm:$0xff]
          %v699 = vld [vmem:[#allocation2 + $0x58] sm:$0xff]
          %v700 = vld [vmem:[#allocation2 + $0x60] sm:$0xff]
          %v701 = vld [vmem:[#allocation2 + $0x68] sm:$0xff]
          %v702 = vld [vmem:[#allocation2 + $0x70] sm:$0xff]
          %v703 = vld [vmem:[#allocation2 + $0x78] sm:$0xff]
          %v704 = vld [vmem:[%s359] sm:$0xff]
          %v705 = vld [vmem:[%s359 + $0x8] sm:$0xff]
          %v706 = vld [vmem:[%s359 + $0x10] sm:$0xff]
          %v707 = vld [vmem:[%s359 + $0x18] sm:$0xff]
          %v708 = vld [vmem:[%s359 + $0x20] sm:$0xff]
          %v709 = vld [vmem:[%s359 + $0x28] sm:$0xff]
          %v710 = vld [vmem:[%s359 + $0x30] sm:$0xff]
          %v711 = vld [vmem:[%s359 + $0x38] sm:$0xff]
          %v712 = vld [vmem:[%s359 + $0x40] sm:$0xff]
          %v713 = vld [vmem:[%s359 + $0x48] sm:$0xff]
          %v714 = vld [vmem:[%s359 + $0x50] sm:$0xff]
          %v715 = vld [vmem:[%s359 + $0x58] sm:$0xff]
          %v716 = vld [vmem:[%s359 + $0x60] sm:$0xff]
          %v717 = vld [vmem:[%s359 + $0x68] sm:$0xff]
          %v718 = vld [vmem:[%s359 + $0x70] sm:$0xff]
          %v719 = vld [vmem:[%s359 + $0x78] sm:$0xff]
          %v720 = vmul.f32 %v704, %v688
          %v721 = vmul.f32 %v705, %v689
          %v722 = vmul.f32 %v706, %v690
          %v723 = vmul.f32 %v707, %v691
          %v724 = vmul.f32 %v708, %v692
          %v725 = vmul.f32 %v709, %v693
          %v726 = vmul.f32 %v710, %v694
          %v727 = vmul.f32 %v711, %v695
          %v728 = vmul.f32 %v712, %v696
          %v729 = vmul.f32 %v713, %v697
          %v730 = vmul.f32 %v714, %v698
          %v731 = vmul.f32 %v715, %v699
          %v732 = vmul.f32 %v716, %v700
          %v733 = vmul.f32 %v717, %v701
          %v734 = vmul.f32 %v718, %v702
          %v735 = vmul.f32 %v719, %v703
          %752 = vrot.lane.b32.xlu0 %v720, 32
          %v753 = vpop.permute.xlu0 %752
          %754 = vrot.lane.b32.xlu0 %v721, 32
          %v755 = vpop.permute.xlu0 %754
          %756 = vrot.lane.b32.xlu0 %v722, 32
          %v757 = vpop.permute.xlu0 %756
          %758 = vrot.lane.b32.xlu0 %v723, 32
          %v759 = vpop.permute.xlu0 %758
          %760 = vrot.lane.b32.xlu0 %v724, 32
          %v761 = vpop.permute.xlu0 %760
          %762 = vrot.lane.b32.xlu0 %v725, 32
          %v763 = vpop.permute.xlu0 %762
          %764 = vrot.lane.b32.xlu0 %v726, 32
          %v765 = vpop.permute.xlu0 %764
          %766 = vrot.lane.b32.xlu0 %v727, 32
          %v767 = vpop.permute.xlu0 %766
          %768 = vrot.lane.b32.xlu0 %v728, 32
          %v769 = vpop.permute.xlu0 %768
          %770 = vrot.lane.b32.xlu0 %v729, 32
          %v771 = vpop.permute.xlu0 %770
          %772 = vrot.lane.b32.xlu0 %v730, 32
          %v773 = vpop.permute.xlu0 %772
          %774 = vrot.lane.b32.xlu0 %v731, 32
          %v775 = vpop.permute.xlu0 %774
          %776 = vrot.lane.b32.xlu0 %v732, 32
          %v777 = vpop.permute.xlu0 %776
          %778 = vrot.lane.b32.xlu0 %v733, 32
          %v779 = vpop.permute.xlu0 %778
          %780 = vrot.lane.b32.xlu0 %v734, 32
          %v781 = vpop.permute.xlu0 %780
          %782 = vrot.lane.b32.xlu0 %v735, 32
          %v783 = vpop.permute.xlu0 %782
          %v800 = vsel %vm667, %v688, %v753
          %v801 = vsel %vm667, %v689, %v755
          %v802 = vsel %vm667, %v690, %v757
          %v803 = vsel %vm667, %v691, %v759
          %v804 = vsel %vm667, %v692, %v761
          %v805 = vsel %vm667, %v693, %v763
          %v806 = vsel %vm667, %v694, %v765
          %v807 = vsel %vm667, %v695, %v767
          %v808 = vsel %vm667, %v696, %v769
          %v809 = vsel %vm667, %v697, %v771
          %v810 = vsel %vm667, %v698, %v773
          %v811 = vsel %vm667, %v699, %v775
          %v812 = vsel %vm667, %v700, %v777
          %v813 = vsel %vm667, %v701, %v779
          %v814 = vsel %vm667, %v702, %v781
          %v815 = vsel %vm667, %v703, %v783
          %v816 = vld [vmem:[%s3] sm:$0xff]
          %v817 = vld [vmem:[%s3 + $0x8] sm:$0xff]
          %v818 = vld [vmem:[%s3 + $0x10] sm:$0xff]
          %v819 = vld [vmem:[%s3 + $0x18] sm:$0xff]
          %v820 = vld [vmem:[%s3 + $0x20] sm:$0xff]
          %v821 = vld [vmem:[%s3 + $0x28] sm:$0xff]
          %v822 = vld [vmem:[%s3 + $0x30] sm:$0xff]
          %v823 = vld [vmem:[%s3 + $0x38] sm:$0xff]
          %v824 = vld [vmem:[%s4] sm:$0x1]
          %v826 = vlaneseq
          %v827 = vshrl.u32 %v826, 7
          %v828 = vsub.s32 0, %v827
          %v829 = vrot.slane %v824, %v828
          %vm831 = vcmask 523264
          %v833 = vsel %vm831, %v800, 0
          %v836 = vsel %vm831, %v801, 0
          %v839 = vsel %vm831, %v802, 0
          %v842 = vsel %vm831, %v803, 0
          %v845 = vsel %vm831, %v804, 0
          %v848 = vsel %vm831, %v805, 0
          %v851 = vsel %vm831, %v806, 0
          %v854 = vsel %vm831, %v807, 0
          %v857 = vsel %vm831, %v808, 0
          %v860 = vsel %vm831, %v809, 0
          %v863 = vsel %vm831, %v810, 0
          %v866 = vsel %vm831, %v811, 0
          %v869 = vsel %vm831, %v812, 0
          %v872 = vsel %vm831, %v813, 0
          %v875 = vsel %vm831, %v814, 0
          %v878 = vsel %vm831, %v815, 0
          %880 = vmatprep.subr.mxu0 0.0
          %881 = vmatpush1.msra.mxu0 %v816
          %882 = vmatprep.subr.mxu0 0.0
          %883 = vmatpush1.msra.mxu0 %v817
          %884 = vmatprep.subr.mxu0 0.0
          %885 = vmatpush1.msra.mxu0 %v818
          %886 = vmatprep.subr.mxu0 0.0
          %887 = vmatpush1.msra.mxu0 %v819
          %888 = vmatprep.subr.mxu0 0.0
          %889 = vmatpush1.msra.mxu0 %v820
          %890 = vmatprep.subr.mxu0 0.0
          %891 = vmatpush1.msra.mxu0 %v821
          %892 = vmatprep.subr.mxu0 0.0
          %893 = vmatpush1.msra.mxu0 %v822
          %894 = vmatprep.subr.mxu0 0.0
          %895 = vmatpush1.msra.mxu0 %v823
          %896 = vmatprep.subr.mxu0 0.0
          %897 = vmatpush1.msra.mxu0 0.0
          %898 = vmatprep.subr.mxu0 0.0
          %899 = vmatpush1.msra.mxu0 0.0
          %900 = vmatprep.subr.mxu0 0.0
          %901 = vmatpush1.msra.mxu0 0.0
          %902 = vmatprep.subr.mxu0 0.0
          %903 = vmatpush1.msra.mxu0 0.0
          %904 = vmatprep.subr.mxu0 0.0
          %905 = vmatpush1.msra.mxu0 0.0
          %906 = vmatprep.subr.mxu0 0.0
          %907 = vmatpush1.msra.mxu0 0.0
          %908 = vmatprep.subr.mxu0 0.0
          %909 = vmatpush1.msra.mxu0 0.0
          %910 = vmatprep.subr.mxu0 0.0
          %911 = vmatpush1.msra.mxu0 0.0
          %912 = vmatprep.subr.mxu0 0.0
          %913 = vmatpush1.msra.mxu0 0.0
          %914 = vmatprep.subr.mxu0 0.0
          %915 = vmatpush1.msra.mxu0 0.0
          %916 = vmatprep.subr.mxu0 0.0
          %917 = vmatpush1.msra.mxu0 0.0
          %918 = vmatprep.subr.mxu0 0.0
          %919 = vmatpush1.msra.mxu0 0.0
          %920 = vmatprep.subr.mxu0 0.0
          %921 = vmatpush1.msra.mxu0 0.0
          %922 = vmatprep.subr.mxu0 0.0
          %923 = vmatpush1.msra.mxu0 0.0
          %924 = vmatprep.subr.mxu0 0.0
          %925 = vmatpush1.msra.mxu0 0.0
          %926 = vmatprep.subr.mxu0 0.0
          %927 = vmatpush1.msra.mxu0 0.0
          %928 = vmatprep.subr.mxu0 0.0
          %929 = vmatpush1.msra.mxu0 0.0
          %930 = vmatprep.subr.mxu0 0.0
          %931 = vmatpush1.msra.mxu0 0.0
          %932 = vmatprep.subr.mxu0 0.0
          %933 = vmatpush1.msra.mxu0 0.0
          %934 = vmatprep.subr.mxu0 0.0
          %935 = vmatpush1.msra.mxu0 0.0
          %936 = vmatprep.subr.mxu0 0.0
          %937 = vmatpush1.msra.mxu0 0.0
          %938 = vmatprep.subr.mxu0 0.0
          %939 = vmatpush1.msra.mxu0 0.0
          %940 = vmatprep.subr.mxu0 0.0
          %941 = vmatpush1.msra.mxu0 0.0
          %942 = vmatprep.subr.mxu0 0.0
          %943 = vmatpush1.msra.mxu0 0.0
          %944 = vmatprep.mubr.f32.mxu0 0.0
          %945 = vmatmul.mubr.f32.gmra.mrb[0].mxu0 %v833
          %v946 = vpop.f32.mrb[0].mxu0
          %v947 = vadd.f32 %v829, %v946
          %v948 = vpop.f32.mrb[0].mxu0
          %949 = vmatprep.mubr.f32.mxu0 0.0
          %950 = vmatmul.mubr.f32.gmra.mrb[0].mxu0 %v836
          %v951 = vpop.f32.mrb[0].mxu0
          %v952 = vadd.f32 %v829, %v951
          %v953 = vpop.f32.mrb[0].mxu0
          %954 = vmatprep.mubr.f32.mxu0 0.0
          %955 = vmatmul.mubr.f32.gmra.mrb[0].mxu0 %v839
          %v956 = vpop.f32.mrb[0].mxu0
          %v957 = vadd.f32 %v829, %v956
          %v958 = vpop.f32.mrb[0].mxu0
          %959 = vmatprep.mubr.f32.mxu0 0.0
          %960 = vmatmul.mubr.f32.gmra.mrb[0].mxu0 %v842
          %v961 = vpop.f32.mrb[0].mxu0
          %v962 = vadd.f32 %v829, %v961
          %v963 = vpop.f32.mrb[0].mxu0
          %964 = vmatprep.mubr.f32.mxu0 0.0
          %965 = vmatmul.mubr.f32.gmra.mrb[0].mxu0 %v845
          %v966 = vpop.f32.mrb[0].mxu0
          %v967 = vadd.f32 %v829, %v966
          %v968 = vpop.f32.mrb[0].mxu0
          %969 = vmatprep.mubr.f32.mxu0 0.0
          %970 = vmatmul.mubr.f32.gmra.mrb[0].mxu0 %v848
          %v971 = vpop.f32.mrb[0].mxu0
          %v972 = vadd.f32 %v829, %v971
          %v973 = vpop.f32.mrb[0].mxu0
          %974 = vmatprep.mubr.f32.mxu0 0.0
          %975 = vmatmul.mubr.f32.gmra.mrb[0].mxu0 %v851
          %v976 = vpop.f32.mrb[0].mxu0
          %v977 = vadd.f32 %v829, %v976
          %v978 = vpop.f32.mrb[0].mxu0
          %979 = vmatprep.mubr.f32.mxu0 0.0
          %980 = vmatmul.mubr.f32.gmra.mrb[0].mxu0 %v854
          %v981 = vpop.f32.mrb[0].mxu0
          %v982 = vadd.f32 %v829, %v981
          %v983 = vpop.f32.mrb[0].mxu0
          %984 = vmatprep.mubr.f32.mxu0 0.0
          %985 = vmatmul.mubr.f32.gmra.mrb[0].mxu0 %v857
          %v986 = vpop.f32.mrb[0].mxu0
          %v987 = vadd.f32 %v829, %v986
          %v988 = vpop.f32.mrb[0].mxu0
          %989 = vmatprep.mubr.f32.mxu0 0.0
          %990 = vmatmul.mubr.f32.gmra.mrb[0].mxu0 %v860
          %v991 = vpop.f32.mrb[0].mxu0
          %v992 = vadd.f32 %v829, %v991
          %v993 = vpop.f32.mrb[0].mxu0
          %994 = vmatprep.mubr.f32.mxu0 0.0
          %995 = vmatmul.mubr.f32.gmra.mrb[0].mxu0 %v863
          %v996 = vpop.f32.mrb[0].mxu0
          %v997 = vadd.f32 %v829, %v996
          %v998 = vpop.f32.mrb[0].mxu0
          %999 = vmatprep.mubr.f32.mxu0 0.0
          %1000 = vmatmul.mubr.f32.gmra.mrb[0].mxu0 %v866
          %v1001 = vpop.f32.mrb[0].mxu0
          %v1002 = vadd.f32 %v829, %v1001
          %v1003 = vpop.f32.mrb[0].mxu0
          %1004 = vmatprep.mubr.f32.mxu0 0.0
          %1005 = vmatmul.mubr.f32.gmra.mrb[0].mxu0 %v869
          %v1006 = vpop.f32.mrb[0].mxu0
          %v1007 = vadd.f32 %v829, %v1006
          %v1008 = vpop.f32.mrb[0].mxu0
          %1009 = vmatprep.mubr.f32.mxu0 0.0
          %1010 = vmatmul.mubr.f32.gmra.mrb[0].mxu0 %v872
          %v1011 = vpop.f32.mrb[0].mxu0
          %v1012 = vadd.f32 %v829, %v1011
          %v1013 = vpop.f32.mrb[0].mxu0
          %1014 = vmatprep.mubr.f32.mxu0 0.0
          %1015 = vmatmul.mubr.f32.gmra.mrb[0].mxu0 %v875
          %v1016 = vpop.f32.mrb[0].mxu0
          %v1017 = vadd.f32 %v829, %v1016
          %v1018 = vpop.f32.mrb[0].mxu0
          %1019 = vmatprep.mubr.f32.mxu0 0.0
          %1020 = vmatmul.mubr.f32.gmra.mrb[0].mxu0 %v878
          %v1021 = vpop.f32.mrb[0].mxu0
          %v1022 = vadd.f32 %v829, %v1021
          %v1023 = vpop.f32.mrb[0].mxu0
          %1024 = vdwg.mxu0
          %vm1025 = vcmp.ge.f32.partialorder %v947, 0.0
          %vm1026 = vcmp.ge.f32.partialorder %v952, 0.0
          %vm1027 = vcmp.ge.f32.partialorder %v957, 0.0
          %vm1028 = vcmp.ge.f32.partialorder %v962, 0.0
          %vm1029 = vcmp.ge.f32.partialorder %v967, 0.0
          %vm1030 = vcmp.ge.f32.partialorder %v972, 0.0
          %vm1031 = vcmp.ge.f32.partialorder %v977, 0.0
          %vm1032 = vcmp.ge.f32.partialorder %v982, 0.0
          %vm1033 = vcmp.ge.f32.partialorder %v987, 0.0
          %vm1034 = vcmp.ge.f32.partialorder %v992, 0.0
          %vm1035 = vcmp.ge.f32.partialorder %v997, 0.0
          %vm1036 = vcmp.ge.f32.partialorder %v1002, 0.0
          %vm1037 = vcmp.ge.f32.partialorder %v1007, 0.0
          %vm1038 = vcmp.ge.f32.partialorder %v1012, 0.0
          %vm1039 = vcmp.ge.f32.partialorder %v1017, 0.0
          %vm1040 = vcmp.ge.f32.partialorder %v1022, 0.0
          %v1041 = vmul.f32 %v947, 0.2
          %v1042 = vmul.f32 %v952, 0.2
          %v1043 = vmul.f32 %v957, 0.2
          %v1044 = vmul.f32 %v962, 0.2
          %v1045 = vmul.f32 %v967, 0.2
          %v1046 = vmul.f32 %v972, 0.2
          %v1047 = vmul.f32 %v977, 0.2
          %v1048 = vmul.f32 %v982, 0.2
          %v1049 = vmul.f32 %v987, 0.2
          %v1050 = vmul.f32 %v992, 0.2
          %v1051 = vmul.f32 %v997, 0.2
          %v1052 = vmul.f32 %v1002, 0.2
          %v1053 = vmul.f32 %v1007, 0.2
          %v1054 = vmul.f32 %v1012, 0.2
          %v1055 = vmul.f32 %v1017, 0.2
          %v1056 = vmul.f32 %v1022, 0.2
          %v1057 = vsel %vm1025, %v947, %v1041
          %v1058 = vsel %vm1026, %v952, %v1042
          %v1059 = vsel %vm1027, %v957, %v1043
          %v1060 = vsel %vm1028, %v962, %v1044
          %v1061 = vsel %vm1029, %v967, %v1045
          %v1062 = vsel %vm1030, %v972, %v1046
          %v1063 = vsel %vm1031, %v977, %v1047
          %v1064 = vsel %vm1032, %v982, %v1048
          %v1065 = vsel %vm1033, %v987, %v1049
          %v1066 = vsel %vm1034, %v992, %v1050
          %v1067 = vsel %vm1035, %v997, %v1051
          %v1068 = vsel %vm1036, %v1002, %v1052
          %v1069 = vsel %vm1037, %v1007, %v1053
          %v1070 = vsel %vm1038, %v1012, %v1054
          %v1071 = vsel %vm1039, %v1017, %v1055
          %v1072 = vsel %vm1040, %v1022, %v1056
          %v1073 = vmul.f32 %v1057, %v1057
          %v1074 = vmul.f32 %v1058, %v1058
          %v1075 = vmul.f32 %v1059, %v1059
          %v1076 = vmul.f32 %v1060, %v1060
          %v1077 = vmul.f32 %v1061, %v1061
          %v1078 = vmul.f32 %v1062, %v1062
          %v1079 = vmul.f32 %v1063, %v1063
          %v1080 = vmul.f32 %v1064, %v1064
          %v1081 = vmul.f32 %v1065, %v1065
          %v1082 = vmul.f32 %v1066, %v1066
          %v1083 = vmul.f32 %v1067, %v1067
          %v1084 = vmul.f32 %v1068, %v1068
          %v1085 = vmul.f32 %v1069, %v1069
          %v1086 = vmul.f32 %v1070, %v1070
          %v1087 = vmul.f32 %v1071, %v1071
          %v1088 = vmul.f32 %v1072, %v1072
          %v1089 = vsel %vm667, %v1073, 0.0
          %1090 = vadd.xlane.f32.xlu0 %v1089
          %v1091 = vpop.xlane.xlu0 %1090
          %v1092 = vsel %vm667, %v1074, 0.0
          %1093 = vadd.xlane.f32.xlu0 %v1092
          %v1094 = vpop.xlane.xlu0 %1093
          %v1095 = vsel %vm667, %v1075, 0.0
          %1096 = vadd.xlane.f32.xlu0 %v1095
          %v1097 = vpop.xlane.xlu0 %1096
          %v1098 = vsel %vm667, %v1076, 0.0
          %1099 = vadd.xlane.f32.xlu0 %v1098
          %v1100 = vpop.xlane.xlu0 %1099
          %v1101 = vsel %vm667, %v1077, 0.0
          %1102 = vadd.xlane.f32.xlu0 %v1101
          %v1103 = vpop.xlane.xlu0 %1102
          %v1104 = vsel %vm667, %v1078, 0.0
          %1105 = vadd.xlane.f32.xlu0 %v1104
          %v1106 = vpop.xlane.xlu0 %1105
          %v1107 = vsel %vm667, %v1079, 0.0
          %1108 = vadd.xlane.f32.xlu0 %v1107
          %v1109 = vpop.xlane.xlu0 %1108
          %v1110 = vsel %vm667, %v1080, 0.0
          %1111 = vadd.xlane.f32.xlu0 %v1110
          %v1112 = vpop.xlane.xlu0 %1111
          %v1113 = vsel %vm667, %v1081, 0.0
          %1114 = vadd.xlane.f32.xlu0 %v1113
          %v1115 = vpop.xlane.xlu0 %1114
          %v1116 = vsel %vm667, %v1082, 0.0
          %1117 = vadd.xlane.f32.xlu0 %v1116
          %v1118 = vpop.xlane.xlu0 %1117
          %v1119 = vsel %vm667, %v1083, 0.0
          %1120 = vadd.xlane.f32.xlu0 %v1119
          %v1121 = vpop.xlane.xlu0 %1120
          %v1122 = vsel %vm667, %v1084, 0.0
          %1123 = vadd.xlane.f32.xlu0 %v1122
          %v1124 = vpop.xlane.xlu0 %1123
          %v1125 = vsel %vm667, %v1085, 0.0
          %1126 = vadd.xlane.f32.xlu0 %v1125
          %v1127 = vpop.xlane.xlu0 %1126
          %v1128 = vsel %vm667, %v1086, 0.0
          %1129 = vadd.xlane.f32.xlu0 %v1128
          %v1130 = vpop.xlane.xlu0 %1129
          %v1131 = vsel %vm667, %v1087, 0.0
          %1132 = vadd.xlane.f32.xlu0 %v1131
          %v1133 = vpop.xlane.xlu0 %1132
          %v1134 = vsel %vm667, %v1088, 0.0
          %1135 = vadd.xlane.f32.xlu0 %v1134
          %v1136 = vpop.xlane.xlu0 %1135
          %v1137 = vmax.f32 %v1091, 1e-24
          %v1138 = vmax.f32 %v1094, 1e-24
          %v1139 = vmax.f32 %v1097, 1e-24
          %v1140 = vmax.f32 %v1100, 1e-24
          %v1141 = vmax.f32 %v1103, 1e-24
          %v1142 = vmax.f32 %v1106, 1e-24
          %v1143 = vmax.f32 %v1109, 1e-24
          %v1144 = vmax.f32 %v1112, 1e-24
          %v1145 = vmax.f32 %v1115, 1e-24
          %v1146 = vmax.f32 %v1118, 1e-24
          %v1147 = vmax.f32 %v1121, 1e-24
          %v1148 = vmax.f32 %v1124, 1e-24
          %v1149 = vmax.f32 %v1127, 1e-24
          %v1150 = vmax.f32 %v1130, 1e-24
          %v1151 = vmax.f32 %v1133, 1e-24
          %v1152 = vmax.f32 %v1136, 1e-24
          %v1153 = vrsqrt.pop %v1137
          %v1154 = vrsqrt.pop %v1138
          %v1155 = vrsqrt.pop %v1139
          %v1156 = vrsqrt.pop %v1140
          %v1157 = vrsqrt.pop %v1141
          %v1158 = vrsqrt.pop %v1142
          %v1159 = vrsqrt.pop %v1143
          %v1160 = vrsqrt.pop %v1144
          %v1161 = vrsqrt.pop %v1145
          %v1162 = vrsqrt.pop %v1146
          %v1163 = vrsqrt.pop %v1147
          %v1164 = vrsqrt.pop %v1148
          %v1165 = vrsqrt.pop %v1149
          %v1166 = vrsqrt.pop %v1150
          %v1167 = vrsqrt.pop %v1151
          %v1168 = vrsqrt.pop %v1152
          %v1169 = vmul.f32 %v1057, %v1153
          %v1170 = vmul.f32 %v1058, %v1154
          %v1171 = vmul.f32 %v1059, %v1155
          %v1172 = vmul.f32 %v1060, %v1156
          %v1173 = vmul.f32 %v1061, %v1157
          %v1174 = vmul.f32 %v1062, %v1158
          %v1175 = vmul.f32 %v1063, %v1159
          %v1176 = vmul.f32 %v1064, %v1160
          %v1177 = vmul.f32 %v1065, %v1161
          %v1178 = vmul.f32 %v1066, %v1162
          %v1179 = vmul.f32 %v1067, %v1163
          %v1180 = vmul.f32 %v1068, %v1164
          %v1181 = vmul.f32 %v1069, %v1165
          %v1182 = vmul.f32 %v1070, %v1166
          %v1183 = vmul.f32 %v1071, %v1167
          %v1184 = vmul.f32 %v1072, %v1168
          %1185 = vst.msk [vmem:[%s365] sm:$0xff] %vm667, %v1169
          %1186 = vst.msk [vmem:[%s365 + $0x8] sm:$0xff] %vm667, %v1170
          %1187 = vst.msk [vmem:[%s365 + $0x10] sm:$0xff] %vm667, %v1171
          %1188 = vst.msk [vmem:[%s365 + $0x18] sm:$0xff] %vm667, %v1172
          %1189 = vst.msk [vmem:[%s365 + $0x20] sm:$0xff] %vm667, %v1173
          %1190 = vst.msk [vmem:[%s365 + $0x28] sm:$0xff] %vm667, %v1174
          %1191 = vst.msk [vmem:[%s365 + $0x30] sm:$0xff] %vm667, %v1175
          %1192 = vst.msk [vmem:[%s365 + $0x38] sm:$0xff] %vm667, %v1176
          %1193 = vst.msk [vmem:[%s365 + $0x40] sm:$0xff] %vm667, %v1177
          %1194 = vst.msk [vmem:[%s365 + $0x48] sm:$0xff] %vm667, %v1178
          %1195 = vst.msk [vmem:[%s365 + $0x50] sm:$0xff] %vm667, %v1179
          %1196 = vst.msk [vmem:[%s365 + $0x58] sm:$0xff] %vm667, %v1180
          %1197 = vst.msk [vmem:[%s365 + $0x60] sm:$0xff] %vm667, %v1181
          %1198 = vst.msk [vmem:[%s365 + $0x68] sm:$0xff] %vm667, %v1182
          %1199 = vst.msk [vmem:[%s365 + $0x70] sm:$0xff] %vm667, %v1183
          %1200 = vst.msk [vmem:[%s365 + $0x78] sm:$0xff] %vm667, %v1184
        $region89: #{ngcf_forward.7} parent=76 // pred_fallthru
          _
        %s1201 = smul.u32 16, %s20
        %p1202 = scmp.lt.s32.totalorder %s1201, 47
        %s1203 = scalar_select %p1202, %s1201, 47
        %s1204 = smul.addr %s1203, 8
        %s1205 = scalar_lea.vmem %s5, %s1204
        // Predicated region
        $region90: #{ngcf_forward.7} parent=76 // pred_check
          %p1206 = pneg %p163
        $region91: #{ngcf_forward.7} parent=76 // pred_check_branch
          %1208 = sbr.rel (%p1206) target = $region93
        $region92: #{ngcf_forward.7} parent=76 // pred_region
          %s1209 = smul.u32 16, %s20
        $region93: #{ngcf_forward.7} parent=76 // pred_fallthru
          _
      $region77: #{ngcf_forward.7} parent=5 // pred_fallthru
        _
      %p1210 = scmp.le.s32.totalorder 2, %s11
      // Predicated region
      $region94: #{ngcf_forward.7} parent=5 // pred_check
        %p1211 = pneg %p1210
      $region95: #{ngcf_forward.7} parent=5 // pred_check_branch
        %1213 = sbr.rel (%p1211) target = $region97
      $region96: #{ngcf_forward.7} parent=5 // pred_region
        %s1214 = ssub.s32 %s11, 2
        // Predicated region
        $region98: #{ngcf_forward.7} parent=96 // pred_check
          %p1215 = pneg %p169
        $region99: #{ngcf_forward.7} parent=96 // pred_check_branch
          %1217 = sbr.rel (%p1215) target = $region101
        $region100: #{ngcf_forward.7} parent=96 // pred_region
          %s1218 = smul.u32 16, %s22
          %p1219 = scmp.lt.s32.totalorder %s1218, 47
          %s1220 = scalar_select %p1219, %s1218, 47
          %s1221 = smul.addr %s1220, 8
          %s1222 = scalar_lea.vmem %s5, %s1221
        $region101: #{ngcf_forward.7} parent=96 // pred_fallthru
          _
      $region97: #{ngcf_forward.7} parent=5 // pred_fallthru
        _
    $region6: #{ngcf_forward.7} parent=1 // loop_footer
      %s15 = sadd.s32 1, %s11
    $region7: #{ngcf_forward.7} parent=1 // loop_footer_branch
      %10 = sbr.rel target = $region3
    $region8: #{ngcf_forward.7} parent=1 // loop_exit
      _

</llo_original>
